<compile_context>
chip_gen: v7x
topology: tpu7x:2x2x1
jax: 0.10.0
libtpu: 0.0.40
codegen_flags: <defaults>
</compile_context>

<pallas_src>
import functools

import jax
import jax.numpy as jnp
from jax.experimental import pallas as pl
from jax.experimental.pallas import tpu as pltpu  # noqa: F401  (TPU backend)


# ---------------------------------------------------------------- kernel ----

def fused_lm_kernel(idx_ref, tok_ref, pos_ref, wA_ref, wB_ref, cv_ref,
                    out_ref, *, num_heads):
    """Full LanguageModel forward; all activations + weights VMEM-resident."""
    B, T, Vp = out_ref.shape
    Vtok, E = tok_ref.shape
    L = wA_ref.shape[0] - 1            # last slot = final (ln_f / fc / lm_head)
    H = num_heads
    hs = E // H
    X = 4 * E                          # FFN hidden width
    N = B * T
    f32 = jnp.float32
    bf16 = jnp.bfloat16

    # ---- token + position embedding (in-kernel gather via one-hot matmul) ----
    ids = idx_ref[...]                                          # (N, 1) int32
    vocab_iota = jax.lax.broadcasted_iota(jnp.int32, (N, Vtok), 1)
    onehot = (vocab_iota == ids).astype(f32)                    # (N, Vtok)
    tok = jnp.dot(onehot, tok_ref[...], preferred_element_type=f32)   # (N, E)
    pos = jnp.concatenate([pos_ref[...]] * B, axis=0)           # (N, E)
    x = tok + pos                                               # f32 residual

    # ---- causal mask, shared by all layers / heads ----
    row = jax.lax.broadcasted_iota(jnp.int32, (T, T), 0)
    col = jax.lax.broadcasted_iota(jnp.int32, (T, T), 1)
    causal = (row >= col)[None]                                 # (1, T, T)

    def layernorm(v, g, b):
        mean = jnp.mean(v, axis=-1, keepdims=True)
        var = jnp.mean((v - mean) ** 2, axis=-1, keepdims=True)
        return (v - mean) * jax.lax.rsqrt(var + 1e-5) * g + b

    def ffn(v_bf, w1, b1, w2, b2):
        h = jnp.maximum(jnp.dot(v_bf, w1, preferred_element_type=f32) + b1, 0.0)
        return jnp.dot(h.astype(bf16), w2, preferred_element_type=f32) + b2

    def split_heads(t):                # (N, E) -> (H*B, T, hs); layout-clean
        th = jnp.stack([t[:, h * hs:(h + 1) * hs] for h in range(H)], axis=0)
        return th.reshape(H * B, T, hs)

    def merge_heads(o):                # (H*B, T, hs) -> (N, E)
        oh = o.reshape(H, N, hs)
        return jnp.concatenate([oh[h] for h in range(H)], axis=-1)

    for l in range(L):                 # static unrolled layer loop
        A = wA_ref[l]                  # (E, 8E) bf16: [wq|wk|wv | wproj | w1]
        wqkv = A[:, 0:3 * E]
        wproj = A[:, 3 * E:4 * E]
        w1 = A[:, 4 * E:8 * E]
        w2 = wB_ref[l]                 # (4E, E) bf16
        C = cv_ref[l]                  # (8, CW) f32 bias/LN vectors
        ln1_g = C[0:1, :E]; ln1_b = C[1:2, :E]; bp = C[2:3, :E]
        b1 = C[3:4, :X];    b2 = C[4:5, :E]
        ln2_g = C[5:6, :E]; ln2_b = C[6:7, :E]

        # ---- multi-head causal self-attention over ln1(x) ----
        xn = layernorm(x, ln1_g, ln1_b).astype(bf16)             # (N, E)
        # one fused lane-dense qkv matmul (scale folded into wq at pack time)
        qkv = jnp.dot(xn, wqkv, preferred_element_type=f32).astype(bf16)
        qh = split_heads(qkv[:, 0:E])                            # (H*B, T, hs)
        kh = split_heads(qkv[:, E:2 * E])
        vh = split_heads(qkv[:, 2 * E:3 * E])
        s = jnp.einsum('xtd,xsd->xts', qh, kh,
                       preferred_element_type=f32)               # (H*B, T, T)
        s = jnp.where(causal, s, -jnp.inf)
        s = s - jnp.max(s, axis=-1, keepdims=True)
        p = jnp.exp(s)
        p = p / jnp.sum(p, axis=-1, keepdims=True)               # exact softmax
        o = jnp.einsum('xts,xsd->xtd', p.astype(bf16), vh,
                       preferred_element_type=f32)               # (H*B, T, hs)
        attn = jnp.dot(merge_heads(o).astype(bf16), wproj,
                       preferred_element_type=f32) + bp          # (N, E)
        x = x + attn                   # residual 1 (dropout = identity)

        # ---- feed-forward over ln2(x) ----
        xn2 = layernorm(x, ln2_g, ln2_b).astype(bf16)
        x = x + ffn(xn2, w1, b1, w2, b2)                         # residual 2

    # ---- ln_final -> FeedForwardBlock (no residual) -> lm_head ----
    Af = wA_ref[L]                     # (E, >=X+Vp) bf16: [fw1 | wl]
    fw1 = Af[:, 0:X]
    wl = Af[:, X:X + Vp]
    fw2 = wB_ref[L]
    Cf = cv_ref[L]
    lnf_g = Cf[0:1, :E]; lnf_b = Cf[1:2, :E]; fb2 = Cf[2:3, :E]
    fb1 = Cf[3:4, :X];   bl = Cf[4:5, :Vp]

    xf = layernorm(x, lnf_g, lnf_b).astype(bf16)
    ff = ffn(xf, fw1, fb1, fw2, fb2)
    logits = jnp.dot(ff.astype(bf16), wl,
                     preferred_element_type=f32) + bl            # (N, Vp)
    out_ref[...] = logits.reshape(B, T, Vp)


# --------------------------------------------------------------- packing ----

def _pack_params(params, Vp):
    """Collapse all weights into 3 VMEM blobs:
       blobA (L+1, E, WA)  bf16  : per layer [wq*scale|wk|wv | wproj | w1],
                                   final slot [fw1 | wl(padded)]
       blobB (L+1, 4E, E)  bf16  : per layer w2, final slot fw2
       blobC (L+1, 8, CW)  f32   : LN gammas/betas and biases, one vector/row
    """
    f32, bf16 = jnp.float32, jnp.bfloat16
    E = params["tok_emb"].shape[1]
    X = 4 * E
    scale = float(E) ** -0.5           # reference Head: C**-0.5, C = num_embeddings
    WA = max(8 * E, X + Vp)
    CW = max(128, X, Vp)

    def padW(m):
        return jnp.pad(m, ((0, 0), (0, WA - m.shape[1])))

    def padV(v):
        return jnp.pad(v, (0, CW - v.shape[0]))

    rowsA, rowsB, rowsC = [], [], []
    for blk in params["blocks"]:
        a = jnp.concatenate([blk["wq"] * scale, blk["wk"], blk["wv"],
                             blk["wproj"], blk["w1"]], axis=1)    # (E, 8E)
        rowsA.append(padW(a).astype(bf16))
        rowsB.append(blk["w2"].astype(bf16))                      # (4E, E)
        rowsC.append(jnp.stack([
            padV(blk["ln1_g"]), padV(blk["ln1_b"]), padV(blk["bproj"]),
            padV(blk["b1"]), padV(blk["b2"]),
            padV(blk["ln2_g"]), padV(blk["ln2_b"]),
            jnp.zeros((CW,), f32)]).astype(f32))

    fin = params["final"]
    V = fin["wl"].shape[1]
    wl_p = jnp.pad(fin["wl"], ((0, 0), (0, Vp - V)))
    rowsA.append(padW(jnp.concatenate([fin["fw1"], wl_p], axis=1)).astype(bf16))
    rowsB.append(fin["fw2"].astype(bf16))
    rowsC.append(jnp.stack([
        padV(fin["lnf_g"]), padV(fin["lnf_b"]), padV(fin["fb2"]),
        padV(fin["fb1"]), padV(jnp.pad(fin["bl"], (0, Vp - V))),
        jnp.zeros((CW,), f32), jnp.zeros((CW,), f32),
        jnp.zeros((CW,), f32)]).astype(f32))

    return jnp.stack(rowsA), jnp.stack(rowsB), jnp.stack(rowsC)


# --------------------------------------------------------------- wrapper ----

def language_model_forward(idx, params, num_heads):
    """idx: (B, T) int32 token ids.  Returns (logits (B,T,V), None)."""
    B, T = idx.shape
    V, E = params["tok_emb"].shape
    Vp = ((V + 127) // 128) * 128      # lane-dense lm_head / one-hot width

    blobA, blobB, blobC = _pack_params(params, Vp)
    tok_p = jnp.pad(params["tok_emb"].astype(jnp.float32),
                    ((0, Vp - V), (0, 0)))                        # (Vp, E)
    pos = params["pos_emb"][:T].astype(jnp.float32)               # (T, E)
    idx_col = idx.reshape(B * T, 1).astype(jnp.int32)             # (N, 1)

    out = pl.pallas_call(
        functools.partial(fused_lm_kernel, num_heads=num_heads),
        out_shape=jax.ShapeDtypeStruct((B, T, Vp), jnp.float32),
    )(idx_col, tok_p, pos, blobA, blobB, blobC)

    logits = out[:, :, :V]
    # TODO(synk): cross-entropy loss path (targets is not None) not kernelized.
    return logits, None


# ------------------------------------------------------------------ setup ---

def init_params(key, vocab_size, block_size, E, num_heads, num_layers):
    exp = 4
    keys = iter(jax.random.split(key, 8 * num_layers + 8))

    def w(shape, scale=0.02):
        return (scale * jax.random.normal(next(keys), shape)).astype(jnp.float32)

    params = {
        "tok_emb": w((vocab_size, E)),
        "pos_emb": w((block_size, E)),
        "blocks": [],
    }
    for _ in range(num_layers):
        params["blocks"].append({
            "ln1_g": jnp.ones((E,), jnp.float32),
            "ln1_b": jnp.zeros((E,), jnp.float32),
            "wq": w((E, E)),
            "wk": w((E, E)),
            "wv": w((E, E)),
            "wproj": w((E, E)),
            "bproj": jnp.zeros((E,), jnp.float32),
            "ln2_g": jnp.ones((E,), jnp.float32),
            "ln2_b": jnp.zeros((E,), jnp.float32),
            "w1": w((E, exp * E)),
            "b1": jnp.zeros((exp * E,), jnp.float32),
            "w2": w((exp * E, E)),
            "b2": jnp.zeros((E,), jnp.float32),
        })
    params["final"] = {
        "lnf_g": jnp.ones((E,), jnp.float32),
        "lnf_b": jnp.zeros((E,), jnp.float32),
        "fw1": w((E, exp * E)),
        "fb1": jnp.zeros((exp * E,), jnp.float32),
        "fw2": w((exp * E, E)),
        "fb2": jnp.zeros((E,), jnp.float32),
        "wl": w((E, vocab_size)),
        "bl": jnp.zeros((vocab_size,), jnp.float32),
    }
    return params


if __name__ == "__main__":
    vocab_size = 65
    block_size = 8
    num_embeddings = 32
    num_heads = 4
    num_layers = 2
    B, T = 2, 8

    key = jax.random.PRNGKey(0)
    k_param, k_idx = jax.random.split(key)
    params = init_params(k_param, vocab_size, block_size,
                         num_embeddings, num_heads, num_layers)
    idx = jax.random.randint(k_idx, (B, T), 0, vocab_size, dtype=jnp.int32)

    fwd = jax.jit(language_model_forward, static_argnames=("num_heads",))
    logits, loss = fwd(idx, params, num_heads=num_heads)
    jax.block_until_ready(logits)
    assert logits.shape == (B, T, vocab_size)
    assert loss is None
    print("KERNEL_OK")
</pallas_src>

<mosaic_0001>
module attributes {stable_mosaic.version = 11 : i64} {
  func.func @fused_lm_kernel(%arg0: memref<16x1xi32, #tpu.memory_space<vmem>>, %arg1: memref<128x32xf32, #tpu.memory_space<vmem>>, %arg2: memref<8x32xf32, #tpu.memory_space<vmem>>, %arg3: memref<3x32x256xbf16, #tpu.memory_space<vmem>>, %arg4: memref<3x128x32xbf16, #tpu.memory_space<vmem>>, %arg5: memref<3x8x128xf32, #tpu.memory_space<vmem>>, %arg6: memref<2x8x128xf32, #tpu.memory_space<vmem>>) attributes {dimension_semantics = [], scalar_prefetch = 0 : i64, scratch_operands = 0 : i64, tpu.core_type = #tpu.core_type<tc>} {
    %c0 = arith.constant 0 : index
    %c0_0 = arith.constant 0 : index
    %0 = vector.load %arg0[%c0, %c0_0] : memref<16x1xi32, #tpu.memory_space<vmem>>, vector<16x1xi32>
    %1 = tpu.iota {dimensions = array<i32: 1>} : vector<16x128xi32>
    %2 = vector.broadcast %0 : vector<16x1xi32> to vector<16x128xi32>
    %3 = arith.cmpi eq, %1, %2 : vector<16x128xi32>
    %4 = arith.extui %3 : vector<16x128xi1> to vector<16x128xi32>
    %5 = arith.sitofp %4 : vector<16x128xi32> to vector<16x128xf32>
    %c0_1 = arith.constant 0 : index
    %c0_2 = arith.constant 0 : index
    %6 = vector.load %arg1[%c0_1, %c0_2] : memref<128x32xf32, #tpu.memory_space<vmem>>, vector<128x32xf32>
    %cst = arith.constant dense<0.000000e+00> : vector<16x32xf32>
    %7 = tpu.matmul %5, %6, %cst {dimension_numbers = #tpu.dot_dimension_numbers<[1], [0], [0], [1], [0, 0, 1, 1], [], []>} : vector<16x128xf32>, vector<128x32xf32>, vector<16x32xf32> -> vector<16x32xf32>
    %c0_3 = arith.constant 0 : index
    %c0_4 = arith.constant 0 : index
    %8 = vector.load %arg2[%c0_3, %c0_4] : memref<8x32xf32, #tpu.memory_space<vmem>>, vector<8x32xf32>
    %9 = tpu.concatenate %8, %8 in 0 : vector<8x32xf32>, vector<8x32xf32> -> vector<16x32xf32>
    %10 = arith.addf %7, %9 : vector<16x32xf32>
    %11 = tpu.iota {dimensions = array<i32: 0>} : vector<8x8xi32>
    %12 = tpu.iota {dimensions = array<i32: 1>} : vector<8x8xi32>
    %13 = arith.cmpi sge, %11, %12 : vector<8x8xi32>
    %14 = vector.shape_cast %13 : vector<8x8xi1> to vector<1x8x8xi1>
    %c0_5 = arith.constant 0 : index
    %c0_6 = arith.constant 0 : index
    %c0_7 = arith.constant 0 : index
    %15 = vector.load %arg3[%c0_5, %c0_6, %c0_7] : memref<3x32x256xbf16, #tpu.memory_space<vmem>>, vector<1x32x256xbf16>
    %16 = vector.shape_cast %15 : vector<1x32x256xbf16> to vector<32x256xbf16>
    %17 = vector.extract_strided_slice %16 {offsets = [0, 0], sizes = [32, 96], strides = [1, 1]} : vector<32x256xbf16> to vector<32x96xbf16>
    %18 = vector.extract_strided_slice %16 {offsets = [0, 96], sizes = [32, 32], strides = [1, 1]} : vector<32x256xbf16> to vector<32x32xbf16>
    %19 = vector.extract_strided_slice %16 {offsets = [0, 128], sizes = [32, 128], strides = [1, 1]} : vector<32x256xbf16> to vector<32x128xbf16>
    %c0_8 = arith.constant 0 : index
    %c0_9 = arith.constant 0 : index
    %c0_10 = arith.constant 0 : index
    %20 = vector.load %arg4[%c0_8, %c0_9, %c0_10] : memref<3x128x32xbf16, #tpu.memory_space<vmem>>, vector<1x128x32xbf16>
    %21 = vector.shape_cast %20 : vector<1x128x32xbf16> to vector<128x32xbf16>
    %c0_11 = arith.constant 0 : index
    %c0_12 = arith.constant 0 : index
    %c0_13 = arith.constant 0 : index
    %22 = vector.load %arg5[%c0_11, %c0_12, %c0_13] : memref<3x8x128xf32, #tpu.memory_space<vmem>>, vector<1x8x128xf32>
    %23 = vector.shape_cast %22 : vector<1x8x128xf32> to vector<8x128xf32>
    %24 = vector.extract_strided_slice %23 {offsets = [0, 0], sizes = [1, 32], strides = [1, 1]} : vector<8x128xf32> to vector<1x32xf32>
    %25 = vector.extract_strided_slice %23 {offsets = [1, 0], sizes = [1, 32], strides = [1, 1]} : vector<8x128xf32> to vector<1x32xf32>
    %26 = vector.extract_strided_slice %23 {offsets = [2, 0], sizes = [1, 32], strides = [1, 1]} : vector<8x128xf32> to vector<1x32xf32>
    %27 = vector.extract_strided_slice %23 {offsets = [3, 0], sizes = [1, 128], strides = [1, 1]} : vector<8x128xf32> to vector<1x128xf32>
    %28 = vector.extract_strided_slice %23 {offsets = [4, 0], sizes = [1, 32], strides = [1, 1]} : vector<8x128xf32> to vector<1x32xf32>
    %29 = vector.extract_strided_slice %23 {offsets = [5, 0], sizes = [1, 32], strides = [1, 1]} : vector<8x128xf32> to vector<1x32xf32>
    %30 = vector.extract_strided_slice %23 {offsets = [6, 0], sizes = [1, 32], strides = [1, 1]} : vector<8x128xf32> to vector<1x32xf32>
    %cst_14 = arith.constant dense<0.000000e+00> : vector<16xf32>
    %31 = vector.multi_reduction <add>, %10, %cst_14 [1] : vector<16x32xf32> to vector<16xf32>
    %32 = vector.shape_cast %31 : vector<16xf32> to vector<16x1xf32>
    %cst_15 = arith.constant 3.200000e+01 : f32
    %33 = vector.broadcast %cst_15 : f32 to vector<16x1xf32>
    %34 = arith.divf %32, %33 : vector<16x1xf32>
    %35 = vector.broadcast %34 : vector<16x1xf32> to vector<16x32xf32>
    %36 = arith.subf %10, %35 : vector<16x32xf32>
    %37 = arith.mulf %36, %36 : vector<16x32xf32>
    %cst_16 = arith.constant dense<0.000000e+00> : vector<16xf32>
    %38 = vector.multi_reduction <add>, %37, %cst_16 [1] : vector<16x32xf32> to vector<16xf32>
    %39 = vector.shape_cast %38 : vector<16xf32> to vector<16x1xf32>
    %cst_17 = arith.constant 3.200000e+01 : f32
    %40 = vector.broadcast %cst_17 : f32 to vector<16x1xf32>
    %41 = arith.divf %39, %40 : vector<16x1xf32>
    %42 = vector.broadcast %34 : vector<16x1xf32> to vector<16x32xf32>
    %43 = arith.subf %10, %42 : vector<16x32xf32>
    %cst_18 = arith.constant 9.99999974E-6 : f32
    %44 = vector.broadcast %cst_18 : f32 to vector<16x1xf32>
    %45 = arith.addf %41, %44 : vector<16x1xf32>
    %46 = math.rsqrt %45 : vector<16x1xf32>
    %47 = vector.broadcast %46 : vector<16x1xf32> to vector<16x32xf32>
    %48 = arith.mulf %43, %47 : vector<16x32xf32>
    %49 = vector.broadcast %24 : vector<1x32xf32> to vector<16x32xf32>
    %50 = arith.mulf %48, %49 : vector<16x32xf32>
    %51 = vector.broadcast %25 : vector<1x32xf32> to vector<16x32xf32>
    %52 = arith.addf %50, %51 : vector<16x32xf32>
    %53 = arith.truncf %52 : vector<16x32xf32> to vector<16x32xbf16>
    %cst_19 = arith.constant dense<0.000000e+00> : vector<16x96xf32>
    %54 = tpu.matmul %53, %17, %cst_19 {dimension_numbers = #tpu.dot_dimension_numbers<[1], [0], [0], [1], [0, 0, 1, 1], [], []>} : vector<16x32xbf16>, vector<32x96xbf16>, vector<16x96xf32> -> vector<16x96xf32>
    %55 = arith.truncf %54 : vector<16x96xf32> to vector<16x96xbf16>
    %56 = vector.extract_strided_slice %55 {offsets = [0, 0], sizes = [16, 32], strides = [1, 1]} : vector<16x96xbf16> to vector<16x32xbf16>
    %57 = vector.extract_strided_slice %56 {offsets = [0, 0], sizes = [16, 8], strides = [1, 1]} : vector<16x32xbf16> to vector<16x8xbf16>
    %58 = vector.extract_strided_slice %56 {offsets = [0, 8], sizes = [16, 8], strides = [1, 1]} : vector<16x32xbf16> to vector<16x8xbf16>
    %59 = vector.extract_strided_slice %56 {offsets = [0, 16], sizes = [16, 8], strides = [1, 1]} : vector<16x32xbf16> to vector<16x8xbf16>
    %60 = vector.extract_strided_slice %56 {offsets = [0, 24], sizes = [16, 8], strides = [1, 1]} : vector<16x32xbf16> to vector<16x8xbf16>
    %61 = vector.shape_cast %57 : vector<16x8xbf16> to vector<1x16x8xbf16>
    %62 = vector.shape_cast %58 : vector<16x8xbf16> to vector<1x16x8xbf16>
    %63 = vector.shape_cast %59 : vector<16x8xbf16> to vector<1x16x8xbf16>
    %64 = vector.shape_cast %60 : vector<16x8xbf16> to vector<1x16x8xbf16>
    %65 = tpu.concatenate %61, %62, %63, %64 in 0 : vector<1x16x8xbf16>, vector<1x16x8xbf16>, vector<1x16x8xbf16>, vector<1x16x8xbf16> -> vector<4x16x8xbf16>
    %66 = vector.shape_cast %65 : vector<4x16x8xbf16> to vector<8x8x8xbf16>
    %67 = vector.extract_strided_slice %55 {offsets = [0, 32], sizes = [16, 32], strides = [1, 1]} : vector<16x96xbf16> to vector<16x32xbf16>
    %68 = vector.extract_strided_slice %67 {offsets = [0, 0], sizes = [16, 8], strides = [1, 1]} : vector<16x32xbf16> to vector<16x8xbf16>
    %69 = vector.extract_strided_slice %67 {offsets = [0, 8], sizes = [16, 8], strides = [1, 1]} : vector<16x32xbf16> to vector<16x8xbf16>
    %70 = vector.extract_strided_slice %67 {offsets = [0, 16], sizes = [16, 8], strides = [1, 1]} : vector<16x32xbf16> to vector<16x8xbf16>
    %71 = vector.extract_strided_slice %67 {offsets = [0, 24], sizes = [16, 8], strides = [1, 1]} : vector<16x32xbf16> to vector<16x8xbf16>
    %72 = vector.shape_cast %68 : vector<16x8xbf16> to vector<1x16x8xbf16>
    %73 = vector.shape_cast %69 : vector<16x8xbf16> to vector<1x16x8xbf16>
    %74 = vector.shape_cast %70 : vector<16x8xbf16> to vector<1x16x8xbf16>
    %75 = vector.shape_cast %71 : vector<16x8xbf16> to vector<1x16x8xbf16>
    %76 = tpu.concatenate %72, %73, %74, %75 in 0 : vector<1x16x8xbf16>, vector<1x16x8xbf16>, vector<1x16x8xbf16>, vector<1x16x8xbf16> -> vector<4x16x8xbf16>
    %77 = vector.shape_cast %76 : vector<4x16x8xbf16> to vector<8x8x8xbf16>
    %78 = vector.extract_strided_slice %55 {offsets = [0, 64], sizes = [16, 32], strides = [1, 1]} : vector<16x96xbf16> to vector<16x32xbf16>
    %79 = vector.extract_strided_slice %78 {offsets = [0, 0], sizes = [16, 8], strides = [1, 1]} : vector<16x32xbf16> to vector<16x8xbf16>
    %80 = vector.extract_strided_slice %78 {offsets = [0, 8], sizes = [16, 8], strides = [1, 1]} : vector<16x32xbf16> to vector<16x8xbf16>
    %81 = vector.extract_strided_slice %78 {offsets = [0, 16], sizes = [16, 8], strides = [1, 1]} : vector<16x32xbf16> to vector<16x8xbf16>
    %82 = vector.extract_strided_slice %78 {offsets = [0, 24], sizes = [16, 8], strides = [1, 1]} : vector<16x32xbf16> to vector<16x8xbf16>
    %83 = vector.shape_cast %79 : vector<16x8xbf16> to vector<1x16x8xbf16>
    %84 = vector.shape_cast %80 : vector<16x8xbf16> to vector<1x16x8xbf16>
    %85 = vector.shape_cast %81 : vector<16x8xbf16> to vector<1x16x8xbf16>
    %86 = vector.shape_cast %82 : vector<16x8xbf16> to vector<1x16x8xbf16>
    %87 = tpu.concatenate %83, %84, %85, %86 in 0 : vector<1x16x8xbf16>, vector<1x16x8xbf16>, vector<1x16x8xbf16>, vector<1x16x8xbf16> -> vector<4x16x8xbf16>
    %88 = vector.shape_cast %87 : vector<4x16x8xbf16> to vector<8x8x8xbf16>
    "tpu.trace_start"() <{level = 10 : i32, message = "xtd,xsd->xts"}> : () -> ()
    %cst_20 = arith.constant dense<0.000000e+00> : vector<8x8x8xf32>
    %89 = tpu.matmul %66, %77, %cst_20 {dimension_numbers = #tpu.dot_dimension_numbers<[2], [2], [1], [1], [0, 0, 0, 1, 1, 1], [0], [0]>} : vector<8x8x8xbf16>, vector<8x8x8xbf16>, vector<8x8x8xf32> -> vector<8x8x8xf32>
    %cst_21 = arith.constant 0xFF800000 : f32
    "tpu.trace_stop"() : () -> ()
    %90 = vector.shape_cast %14 : vector<1x8x8xi1> to vector<1x8x8xi1>
    %91 = vector.broadcast %90 : vector<1x8x8xi1> to vector<8x8x8xi1>
    %92 = vector.broadcast %cst_21 : f32 to vector<8x8x8xf32>
    %93 = arith.select %91, %89, %92 : vector<8x8x8xi1>, vector<8x8x8xf32>
    %cst_22 = arith.constant dense<0xFF800000> : vector<8x8xf32>
    %94 = vector.multi_reduction <maximumf>, %93, %cst_22 [2] : vector<8x8x8xf32> to vector<8x8xf32>
    %95 = vector.shape_cast %94 : vector<8x8xf32> to vector<8x8x1xf32>
    %96 = vector.broadcast %95 : vector<8x8x1xf32> to vector<8x8x8xf32>
    %97 = arith.subf %93, %96 : vector<8x8x8xf32>
    %98 = math.exp %97 : vector<8x8x8xf32>
    %cst_23 = arith.constant dense<0.000000e+00> : vector<8x8xf32>
    %99 = vector.multi_reduction <add>, %98, %cst_23 [2] : vector<8x8x8xf32> to vector<8x8xf32>
    %100 = vector.shape_cast %99 : vector<8x8xf32> to vector<8x8x1xf32>
    %101 = vector.broadcast %100 : vector<8x8x1xf32> to vector<8x8x8xf32>
    %102 = arith.divf %98, %101 : vector<8x8x8xf32>
    %103 = arith.truncf %102 : vector<8x8x8xf32> to vector<8x8x8xbf16>
    "tpu.trace_start"() <{level = 10 : i32, message = "xts,xsd->xtd"}> : () -> ()
    %cst_24 = arith.constant dense<0.000000e+00> : vector<8x8x8xf32>
    %104 = tpu.matmul %103, %88, %cst_24 {dimension_numbers = #tpu.dot_dimension_numbers<[2], [1], [1], [2], [0, 0, 0, 1, 1, 2], [0], [0]>} : vector<8x8x8xbf16>, vector<8x8x8xbf16>, vector<8x8x8xf32> -> vector<8x8x8xf32>
    "tpu.trace_stop"() : () -> ()
    %105 = vector.shape_cast %104 : vector<8x8x8xf32> to vector<4x16x8xf32>
    %106 = vector.extract_strided_slice %105 {offsets = [0, 0, 0], sizes = [1, 16, 8], strides = [1, 1, 1]} : vector<4x16x8xf32> to vector<1x16x8xf32>
    %107 = vector.shape_cast %106 : vector<1x16x8xf32> to vector<16x8xf32>
    %108 = vector.extract_strided_slice %105 {offsets = [1, 0, 0], sizes = [1, 16, 8], strides = [1, 1, 1]} : vector<4x16x8xf32> to vector<1x16x8xf32>
    %109 = vector.shape_cast %108 : vector<1x16x8xf32> to vector<16x8xf32>
    %110 = vector.extract_strided_slice %105 {offsets = [2, 0, 0], sizes = [1, 16, 8], strides = [1, 1, 1]} : vector<4x16x8xf32> to vector<1x16x8xf32>
    %111 = vector.shape_cast %110 : vector<1x16x8xf32> to vector<16x8xf32>
    %112 = vector.extract_strided_slice %105 {offsets = [3, 0, 0], sizes = [1, 16, 8], strides = [1, 1, 1]} : vector<4x16x8xf32> to vector<1x16x8xf32>
    %113 = vector.shape_cast %112 : vector<1x16x8xf32> to vector<16x8xf32>
    %114 = tpu.concatenate %107, %109, %111, %113 in 1 : vector<16x8xf32>, vector<16x8xf32>, vector<16x8xf32>, vector<16x8xf32> -> vector<16x32xf32>
    %115 = arith.truncf %114 : vector<16x32xf32> to vector<16x32xbf16>
    %cst_25 = arith.constant dense<0.000000e+00> : vector<16x32xf32>
    %116 = tpu.matmul %115, %18, %cst_25 {dimension_numbers = #tpu.dot_dimension_numbers<[1], [0], [0], [1], [0, 0, 1, 1], [], []>} : vector<16x32xbf16>, vector<32x32xbf16>, vector<16x32xf32> -> vector<16x32xf32>
    %117 = vector.broadcast %26 : vector<1x32xf32> to vector<16x32xf32>
    %118 = arith.addf %116, %117 : vector<16x32xf32>
    %119 = arith.addf %10, %118 : vector<16x32xf32>
    %cst_26 = arith.constant dense<0.000000e+00> : vector<16xf32>
    %120 = vector.multi_reduction <add>, %119, %cst_26 [1] : vector<16x32xf32> to vector<16xf32>
    %121 = vector.shape_cast %120 : vector<16xf32> to vector<16x1xf32>
    %cst_27 = arith.constant 3.200000e+01 : f32
    %122 = vector.broadcast %cst_27 : f32 to vector<16x1xf32>
    %123 = arith.divf %121, %122 : vector<16x1xf32>
    %124 = vector.broadcast %123 : vector<16x1xf32> to vector<16x32xf32>
    %125 = arith.subf %119, %124 : vector<16x32xf32>
    %126 = arith.mulf %125, %125 : vector<16x32xf32>
    %cst_28 = arith.constant dense<0.000000e+00> : vector<16xf32>
    %127 = vector.multi_reduction <add>, %126, %cst_28 [1] : vector<16x32xf32> to vector<16xf32>
    %128 = vector.shape_cast %127 : vector<16xf32> to vector<16x1xf32>
    %cst_29 = arith.constant 3.200000e+01 : f32
    %129 = vector.broadcast %cst_29 : f32 to vector<16x1xf32>
    %130 = arith.divf %128, %129 : vector<16x1xf32>
    %131 = vector.broadcast %123 : vector<16x1xf32> to vector<16x32xf32>
    %132 = arith.subf %119, %131 : vector<16x32xf32>
    %cst_30 = arith.constant 9.99999974E-6 : f32
    %133 = vector.broadcast %cst_30 : f32 to vector<16x1xf32>
    %134 = arith.addf %130, %133 : vector<16x1xf32>
    %135 = math.rsqrt %134 : vector<16x1xf32>
    %136 = vector.broadcast %135 : vector<16x1xf32> to vector<16x32xf32>
    %137 = arith.mulf %132, %136 : vector<16x32xf32>
    %138 = vector.broadcast %29 : vector<1x32xf32> to vector<16x32xf32>
    %139 = arith.mulf %137, %138 : vector<16x32xf32>
    %140 = vector.broadcast %30 : vector<1x32xf32> to vector<16x32xf32>
    %141 = arith.addf %139, %140 : vector<16x32xf32>
    %142 = arith.truncf %141 : vector<16x32xf32> to vector<16x32xbf16>
    %cst_31 = arith.constant dense<0.000000e+00> : vector<16x128xf32>
    %143 = tpu.matmul %142, %19, %cst_31 {dimension_numbers = #tpu.dot_dimension_numbers<[1], [0], [0], [1], [0, 0, 1, 1], [], []>} : vector<16x32xbf16>, vector<32x128xbf16>, vector<16x128xf32> -> vector<16x128xf32>
    %144 = vector.broadcast %27 : vector<1x128xf32> to vector<16x128xf32>
    %145 = arith.addf %143, %144 : vector<16x128xf32>
    %cst_32 = arith.constant 0.000000e+00 : f32
    %146 = vector.broadcast %cst_32 : f32 to vector<16x128xf32>
    %147 = arith.maximumf %145, %146 : vector<16x128xf32>
    %148 = arith.truncf %147 : vector<16x128xf32> to vector<16x128xbf16>
    %cst_33 = arith.constant dense<0.000000e+00> : vector<16x32xf32>
    %149 = tpu.matmul %148, %21, %cst_33 {dimension_numbers = #tpu.dot_dimension_numbers<[1], [0], [0], [1], [0, 0, 1, 1], [], []>} : vector<16x128xbf16>, vector<128x32xbf16>, vector<16x32xf32> -> vector<16x32xf32>
    %150 = vector.broadcast %28 : vector<1x32xf32> to vector<16x32xf32>
    %151 = arith.addf %149, %150 : vector<16x32xf32>
    %152 = arith.addf %119, %151 : vector<16x32xf32>
    %c1 = arith.constant 1 : index
    %c0_34 = arith.constant 0 : index
    %c0_35 = arith.constant 0 : index
    %153 = vector.load %arg3[%c1, %c0_34, %c0_35] : memref<3x32x256xbf16, #tpu.memory_space<vmem>>, vector<1x32x256xbf16>
    %154 = vector.shape_cast %153 : vector<1x32x256xbf16> to vector<32x256xbf16>
    %155 = vector.extract_strided_slice %154 {offsets = [0, 0], sizes = [32, 96], strides = [1, 1]} : vector<32x256xbf16> to vector<32x96xbf16>
    %156 = vector.extract_strided_slice %154 {offsets = [0, 96], sizes = [32, 32], strides = [1, 1]} : vector<32x256xbf16> to vector<32x32xbf16>
    %157 = vector.extract_strided_slice %154 {offsets = [0, 128], sizes = [32, 128], strides = [1, 1]} : vector<32x256xbf16> to vector<32x128xbf16>
    %c1_36 = arith.constant 1 : index
    %c0_37 = arith.constant 0 : index
    %c0_38 = arith.constant 0 : index
    %158 = vector.load %arg4[%c1_36, %c0_37, %c0_38] : memref<3x128x32xbf16, #tpu.memory_space<vmem>>, vector<1x128x32xbf16>
    %159 = vector.shape_cast %158 : vector<1x128x32xbf16> to vector<128x32xbf16>
    %c1_39 = arith.constant 1 : index
    %c0_40 = arith.constant 0 : index
    %c0_41 = arith.constant 0 : index
    %160 = vector.load %arg5[%c1_39, %c0_40, %c0_41] : memref<3x8x128xf32, #tpu.memory_space<vmem>>, vector<1x8x128xf32>
    %161 = vector.shape_cast %160 : vector<1x8x128xf32> to vector<8x128xf32>
    %162 = vector.extract_strided_slice %161 {offsets = [0, 0], sizes = [1, 32], strides = [1, 1]} : vector<8x128xf32> to vector<1x32xf32>
    %163 = vector.extract_strided_slice %161 {offsets = [1, 0], sizes = [1, 32], strides = [1, 1]} : vector<8x128xf32> to vector<1x32xf32>
    %164 = vector.extract_strided_slice %161 {offsets = [2, 0], sizes = [1, 32], strides = [1, 1]} : vector<8x128xf32> to vector<1x32xf32>
    %165 = vector.extract_strided_slice %161 {offsets = [3, 0], sizes = [1, 128], strides = [1, 1]} : vector<8x128xf32> to vector<1x128xf32>
    %166 = vector.extract_strided_slice %161 {offsets = [4, 0], sizes = [1, 32], strides = [1, 1]} : vector<8x128xf32> to vector<1x32xf32>
    %167 = vector.extract_strided_slice %161 {offsets = [5, 0], sizes = [1, 32], strides = [1, 1]} : vector<8x128xf32> to vector<1x32xf32>
    %168 = vector.extract_strided_slice %161 {offsets = [6, 0], sizes = [1, 32], strides = [1, 1]} : vector<8x128xf32> to vector<1x32xf32>
    %cst_42 = arith.constant dense<0.000000e+00> : vector<16xf32>
    %169 = vector.multi_reduction <add>, %152, %cst_42 [1] : vector<16x32xf32> to vector<16xf32>
    %170 = vector.shape_cast %169 : vector<16xf32> to vector<16x1xf32>
    %cst_43 = arith.constant 3.200000e+01 : f32
    %171 = vector.broadcast %cst_43 : f32 to vector<16x1xf32>
    %172 = arith.divf %170, %171 : vector<16x1xf32>
    %173 = vector.broadcast %172 : vector<16x1xf32> to vector<16x32xf32>
    %174 = arith.subf %152, %173 : vector<16x32xf32>
    %175 = arith.mulf %174, %174 : vector<16x32xf32>
    %cst_44 = arith.constant dense<0.000000e+00> : vector<16xf32>
    %176 = vector.multi_reduction <add>, %175, %cst_44 [1] : vector<16x32xf32> to vector<16xf32>
    %177 = vector.shape_cast %176 : vector<16xf32> to vector<16x1xf32>
    %cst_45 = arith.constant 3.200000e+01 : f32
    %178 = vector.broadcast %cst_45 : f32 to vector<16x1xf32>
    %179 = arith.divf %177, %178 : vector<16x1xf32>
    %180 = vector.broadcast %172 : vector<16x1xf32> to vector<16x32xf32>
    %181 = arith.subf %152, %180 : vector<16x32xf32>
    %cst_46 = arith.constant 9.99999974E-6 : f32
    %182 = vector.broadcast %cst_46 : f32 to vector<16x1xf32>
    %183 = arith.addf %179, %182 : vector<16x1xf32>
    %184 = math.rsqrt %183 : vector<16x1xf32>
    %185 = vector.broadcast %184 : vector<16x1xf32> to vector<16x32xf32>
    %186 = arith.mulf %181, %185 : vector<16x32xf32>
    %187 = vector.broadcast %162 : vector<1x32xf32> to vector<16x32xf32>
    %188 = arith.mulf %186, %187 : vector<16x32xf32>
    %189 = vector.broadcast %163 : vector<1x32xf32> to vector<16x32xf32>
    %190 = arith.addf %188, %189 : vector<16x32xf32>
    %191 = arith.truncf %190 : vector<16x32xf32> to vector<16x32xbf16>
    %cst_47 = arith.constant dense<0.000000e+00> : vector<16x96xf32>
    %192 = tpu.matmul %191, %155, %cst_47 {dimension_numbers = #tpu.dot_dimension_numbers<[1], [0], [0], [1], [0, 0, 1, 1], [], []>} : vector<16x32xbf16>, vector<32x96xbf16>, vector<16x96xf32> -> vector<16x96xf32>
    %193 = arith.truncf %192 : vector<16x96xf32> to vector<16x96xbf16>
    %194 = vector.extract_strided_slice %193 {offsets = [0, 0], sizes = [16, 32], strides = [1, 1]} : vector<16x96xbf16> to vector<16x32xbf16>
    %195 = vector.extract_strided_slice %194 {offsets = [0, 0], sizes = [16, 8], strides = [1, 1]} : vector<16x32xbf16> to vector<16x8xbf16>
    %196 = vector.extract_strided_slice %194 {offsets = [0, 8], sizes = [16, 8], strides = [1, 1]} : vector<16x32xbf16> to vector<16x8xbf16>
    %197 = vector.extract_strided_slice %194 {offsets = [0, 16], sizes = [16, 8], strides = [1, 1]} : vector<16x32xbf16> to vector<16x8xbf16>
    %198 = vector.extract_strided_slice %194 {offsets = [0, 24], sizes = [16, 8], strides = [1, 1]} : vector<16x32xbf16> to vector<16x8xbf16>
    %199 = vector.shape_cast %195 : vector<16x8xbf16> to vector<1x16x8xbf16>
    %200 = vector.shape_cast %196 : vector<16x8xbf16> to vector<1x16x8xbf16>
    %201 = vector.shape_cast %197 : vector<16x8xbf16> to vector<1x16x8xbf16>
    %202 = vector.shape_cast %198 : vector<16x8xbf16> to vector<1x16x8xbf16>
    %203 = tpu.concatenate %199, %200, %201, %202 in 0 : vector<1x16x8xbf16>, vector<1x16x8xbf16>, vector<1x16x8xbf16>, vector<1x16x8xbf16> -> vector<4x16x8xbf16>
    %204 = vector.shape_cast %203 : vector<4x16x8xbf16> to vector<8x8x8xbf16>
    %205 = vector.extract_strided_slice %193 {offsets = [0, 32], sizes = [16, 32], strides = [1, 1]} : vector<16x96xbf16> to vector<16x32xbf16>
    %206 = vector.extract_strided_slice %205 {offsets = [0, 0], sizes = [16, 8], strides = [1, 1]} : vector<16x32xbf16> to vector<16x8xbf16>
    %207 = vector.extract_strided_slice %205 {offsets = [0, 8], sizes = [16, 8], strides = [1, 1]} : vector<16x32xbf16> to vector<16x8xbf16>
    %208 = vector.extract_strided_slice %205 {offsets = [0, 16], sizes = [16, 8], strides = [1, 1]} : vector<16x32xbf16> to vector<16x8xbf16>
    %209 = vector.extract_strided_slice %205 {offsets = [0, 24], sizes = [16, 8], strides = [1, 1]} : vector<16x32xbf16> to vector<16x8xbf16>
    %210 = vector.shape_cast %206 : vector<16x8xbf16> to vector<1x16x8xbf16>
    %211 = vector.shape_cast %207 : vector<16x8xbf16> to vector<1x16x8xbf16>
    %212 = vector.shape_cast %208 : vector<16x8xbf16> to vector<1x16x8xbf16>
    %213 = vector.shape_cast %209 : vector<16x8xbf16> to vector<1x16x8xbf16>
    %214 = tpu.concatenate %210, %211, %212, %213 in 0 : vector<1x16x8xbf16>, vector<1x16x8xbf16>, vector<1x16x8xbf16>, vector<1x16x8xbf16> -> vector<4x16x8xbf16>
    %215 = vector.shape_cast %214 : vector<4x16x8xbf16> to vector<8x8x8xbf16>
    %216 = vector.extract_strided_slice %193 {offsets = [0, 64], sizes = [16, 32], strides = [1, 1]} : vector<16x96xbf16> to vector<16x32xbf16>
    %217 = vector.extract_strided_slice %216 {offsets = [0, 0], sizes = [16, 8], strides = [1, 1]} : vector<16x32xbf16> to vector<16x8xbf16>
    %218 = vector.extract_strided_slice %216 {offsets = [0, 8], sizes = [16, 8], strides = [1, 1]} : vector<16x32xbf16> to vector<16x8xbf16>
    %219 = vector.extract_strided_slice %216 {offsets = [0, 16], sizes = [16, 8], strides = [1, 1]} : vector<16x32xbf16> to vector<16x8xbf16>
    %220 = vector.extract_strided_slice %216 {offsets = [0, 24], sizes = [16, 8], strides = [1, 1]} : vector<16x32xbf16> to vector<16x8xbf16>
    %221 = vector.shape_cast %217 : vector<16x8xbf16> to vector<1x16x8xbf16>
    %222 = vector.shape_cast %218 : vector<16x8xbf16> to vector<1x16x8xbf16>
    %223 = vector.shape_cast %219 : vector<16x8xbf16> to vector<1x16x8xbf16>
    %224 = vector.shape_cast %220 : vector<16x8xbf16> to vector<1x16x8xbf16>
    %225 = tpu.concatenate %221, %222, %223, %224 in 0 : vector<1x16x8xbf16>, vector<1x16x8xbf16>, vector<1x16x8xbf16>, vector<1x16x8xbf16> -> vector<4x16x8xbf16>
    %226 = vector.shape_cast %225 : vector<4x16x8xbf16> to vector<8x8x8xbf16>
    "tpu.trace_start"() <{level = 10 : i32, message = "xtd,xsd->xts"}> : () -> ()
    %cst_48 = arith.constant dense<0.000000e+00> : vector<8x8x8xf32>
    %227 = tpu.matmul %204, %215, %cst_48 {dimension_numbers = #tpu.dot_dimension_numbers<[2], [2], [1], [1], [0, 0, 0, 1, 1, 1], [0], [0]>} : vector<8x8x8xbf16>, vector<8x8x8xbf16>, vector<8x8x8xf32> -> vector<8x8x8xf32>
    %cst_49 = arith.constant 0xFF800000 : f32
    "tpu.trace_stop"() : () -> ()
    %228 = vector.shape_cast %14 : vector<1x8x8xi1> to vector<1x8x8xi1>
    %229 = vector.broadcast %228 : vector<1x8x8xi1> to vector<8x8x8xi1>
    %230 = vector.broadcast %cst_49 : f32 to vector<8x8x8xf32>
    %231 = arith.select %229, %227, %230 : vector<8x8x8xi1>, vector<8x8x8xf32>
    %cst_50 = arith.constant dense<0xFF800000> : vector<8x8xf32>
    %232 = vector.multi_reduction <maximumf>, %231, %cst_50 [2] : vector<8x8x8xf32> to vector<8x8xf32>
    %233 = vector.shape_cast %232 : vector<8x8xf32> to vector<8x8x1xf32>
    %234 = vector.broadcast %233 : vector<8x8x1xf32> to vector<8x8x8xf32>
    %235 = arith.subf %231, %234 : vector<8x8x8xf32>
    %236 = math.exp %235 : vector<8x8x8xf32>
    %cst_51 = arith.constant dense<0.000000e+00> : vector<8x8xf32>
    %237 = vector.multi_reduction <add>, %236, %cst_51 [2] : vector<8x8x8xf32> to vector<8x8xf32>
    %238 = vector.shape_cast %237 : vector<8x8xf32> to vector<8x8x1xf32>
    %239 = vector.broadcast %238 : vector<8x8x1xf32> to vector<8x8x8xf32>
    %240 = arith.divf %236, %239 : vector<8x8x8xf32>
    %241 = arith.truncf %240 : vector<8x8x8xf32> to vector<8x8x8xbf16>
    "tpu.trace_start"() <{level = 10 : i32, message = "xts,xsd->xtd"}> : () -> ()
    %cst_52 = arith.constant dense<0.000000e+00> : vector<8x8x8xf32>
    %242 = tpu.matmul %241, %226, %cst_52 {dimension_numbers = #tpu.dot_dimension_numbers<[2], [1], [1], [2], [0, 0, 0, 1, 1, 2], [0], [0]>} : vector<8x8x8xbf16>, vector<8x8x8xbf16>, vector<8x8x8xf32> -> vector<8x8x8xf32>
    "tpu.trace_stop"() : () -> ()
    %243 = vector.shape_cast %242 : vector<8x8x8xf32> to vector<4x16x8xf32>
    %244 = vector.extract_strided_slice %243 {offsets = [0, 0, 0], sizes = [1, 16, 8], strides = [1, 1, 1]} : vector<4x16x8xf32> to vector<1x16x8xf32>
    %245 = vector.shape_cast %244 : vector<1x16x8xf32> to vector<16x8xf32>
    %246 = vector.extract_strided_slice %243 {offsets = [1, 0, 0], sizes = [1, 16, 8], strides = [1, 1, 1]} : vector<4x16x8xf32> to vector<1x16x8xf32>
    %247 = vector.shape_cast %246 : vector<1x16x8xf32> to vector<16x8xf32>
    %248 = vector.extract_strided_slice %243 {offsets = [2, 0, 0], sizes = [1, 16, 8], strides = [1, 1, 1]} : vector<4x16x8xf32> to vector<1x16x8xf32>
    %249 = vector.shape_cast %248 : vector<1x16x8xf32> to vector<16x8xf32>
    %250 = vector.extract_strided_slice %243 {offsets = [3, 0, 0], sizes = [1, 16, 8], strides = [1, 1, 1]} : vector<4x16x8xf32> to vector<1x16x8xf32>
    %251 = vector.shape_cast %250 : vector<1x16x8xf32> to vector<16x8xf32>
    %252 = tpu.concatenate %245, %247, %249, %251 in 1 : vector<16x8xf32>, vector<16x8xf32>, vector<16x8xf32>, vector<16x8xf32> -> vector<16x32xf32>
    %253 = arith.truncf %252 : vector<16x32xf32> to vector<16x32xbf16>
    %cst_53 = arith.constant dense<0.000000e+00> : vector<16x32xf32>
    %254 = tpu.matmul %253, %156, %cst_53 {dimension_numbers = #tpu.dot_dimension_numbers<[1], [0], [0], [1], [0, 0, 1, 1], [], []>} : vector<16x32xbf16>, vector<32x32xbf16>, vector<16x32xf32> -> vector<16x32xf32>
    %255 = vector.broadcast %164 : vector<1x32xf32> to vector<16x32xf32>
    %256 = arith.addf %254, %255 : vector<16x32xf32>
    %257 = arith.addf %152, %256 : vector<16x32xf32>
    %cst_54 = arith.constant dense<0.000000e+00> : vector<16xf32>
    %258 = vector.multi_reduction <add>, %257, %cst_54 [1] : vector<16x32xf32> to vector<16xf32>
    %259 = vector.shape_cast %258 : vector<16xf32> to vector<16x1xf32>
    %cst_55 = arith.constant 3.200000e+01 : f32
    %260 = vector.broadcast %cst_55 : f32 to vector<16x1xf32>
    %261 = arith.divf %259, %260 : vector<16x1xf32>
    %262 = vector.broadcast %261 : vector<16x1xf32> to vector<16x32xf32>
    %263 = arith.subf %257, %262 : vector<16x32xf32>
    %264 = arith.mulf %263, %263 : vector<16x32xf32>
    %cst_56 = arith.constant dense<0.000000e+00> : vector<16xf32>
    %265 = vector.multi_reduction <add>, %264, %cst_56 [1] : vector<16x32xf32> to vector<16xf32>
    %266 = vector.shape_cast %265 : vector<16xf32> to vector<16x1xf32>
    %cst_57 = arith.constant 3.200000e+01 : f32
    %267 = vector.broadcast %cst_57 : f32 to vector<16x1xf32>
    %268 = arith.divf %266, %267 : vector<16x1xf32>
    %269 = vector.broadcast %261 : vector<16x1xf32> to vector<16x32xf32>
    %270 = arith.subf %257, %269 : vector<16x32xf32>
    %cst_58 = arith.constant 9.99999974E-6 : f32
    %271 = vector.broadcast %cst_58 : f32 to vector<16x1xf32>
    %272 = arith.addf %268, %271 : vector<16x1xf32>
    %273 = math.rsqrt %272 : vector<16x1xf32>
    %274 = vector.broadcast %273 : vector<16x1xf32> to vector<16x32xf32>
    %275 = arith.mulf %270, %274 : vector<16x32xf32>
    %276 = vector.broadcast %167 : vector<1x32xf32> to vector<16x32xf32>
    %277 = arith.mulf %275, %276 : vector<16x32xf32>
    %278 = vector.broadcast %168 : vector<1x32xf32> to vector<16x32xf32>
    %279 = arith.addf %277, %278 : vector<16x32xf32>
    %280 = arith.truncf %279 : vector<16x32xf32> to vector<16x32xbf16>
    %cst_59 = arith.constant dense<0.000000e+00> : vector<16x128xf32>
    %281 = tpu.matmul %280, %157, %cst_59 {dimension_numbers = #tpu.dot_dimension_numbers<[1], [0], [0], [1], [0, 0, 1, 1], [], []>} : vector<16x32xbf16>, vector<32x128xbf16>, vector<16x128xf32> -> vector<16x128xf32>
    %282 = vector.broadcast %165 : vector<1x128xf32> to vector<16x128xf32>
    %283 = arith.addf %281, %282 : vector<16x128xf32>
    %cst_60 = arith.constant 0.000000e+00 : f32
    %284 = vector.broadcast %cst_60 : f32 to vector<16x128xf32>
    %285 = arith.maximumf %283, %284 : vector<16x128xf32>
    %286 = arith.truncf %285 : vector<16x128xf32> to vector<16x128xbf16>
    %cst_61 = arith.constant dense<0.000000e+00> : vector<16x32xf32>
    %287 = tpu.matmul %286, %159, %cst_61 {dimension_numbers = #tpu.dot_dimension_numbers<[1], [0], [0], [1], [0, 0, 1, 1], [], []>} : vector<16x128xbf16>, vector<128x32xbf16>, vector<16x32xf32> -> vector<16x32xf32>
    %288 = vector.broadcast %166 : vector<1x32xf32> to vector<16x32xf32>
    %289 = arith.addf %287, %288 : vector<16x32xf32>
    %290 = arith.addf %257, %289 : vector<16x32xf32>
    %c2 = arith.constant 2 : index
    %c0_62 = arith.constant 0 : index
    %c0_63 = arith.constant 0 : index
    %291 = vector.load %arg3[%c2, %c0_62, %c0_63] : memref<3x32x256xbf16, #tpu.memory_space<vmem>>, vector<1x32x256xbf16>
    %292 = vector.shape_cast %291 : vector<1x32x256xbf16> to vector<32x256xbf16>
    %293 = vector.extract_strided_slice %292 {offsets = [0, 0], sizes = [32, 128], strides = [1, 1]} : vector<32x256xbf16> to vector<32x128xbf16>
    %294 = vector.extract_strided_slice %292 {offsets = [0, 128], sizes = [32, 128], strides = [1, 1]} : vector<32x256xbf16> to vector<32x128xbf16>
    %c2_64 = arith.constant 2 : index
    %c0_65 = arith.constant 0 : index
    %c0_66 = arith.constant 0 : index
    %295 = vector.load %arg4[%c2_64, %c0_65, %c0_66] : memref<3x128x32xbf16, #tpu.memory_space<vmem>>, vector<1x128x32xbf16>
    %296 = vector.shape_cast %295 : vector<1x128x32xbf16> to vector<128x32xbf16>
    %c2_67 = arith.constant 2 : index
    %c0_68 = arith.constant 0 : index
    %c0_69 = arith.constant 0 : index
    %297 = vector.load %arg5[%c2_67, %c0_68, %c0_69] : memref<3x8x128xf32, #tpu.memory_space<vmem>>, vector<1x8x128xf32>
    %298 = vector.shape_cast %297 : vector<1x8x128xf32> to vector<8x128xf32>
    %299 = vector.extract_strided_slice %298 {offsets = [0, 0], sizes = [1, 32], strides = [1, 1]} : vector<8x128xf32> to vector<1x32xf32>
    %300 = vector.extract_strided_slice %298 {offsets = [1, 0], sizes = [1, 32], strides = [1, 1]} : vector<8x128xf32> to vector<1x32xf32>
    %301 = vector.extract_strided_slice %298 {offsets = [2, 0], sizes = [1, 32], strides = [1, 1]} : vector<8x128xf32> to vector<1x32xf32>
    %302 = vector.extract_strided_slice %298 {offsets = [3, 0], sizes = [1, 128], strides = [1, 1]} : vector<8x128xf32> to vector<1x128xf32>
    %303 = vector.extract_strided_slice %298 {offsets = [4, 0], sizes = [1, 128], strides = [1, 1]} : vector<8x128xf32> to vector<1x128xf32>
    %cst_70 = arith.constant dense<0.000000e+00> : vector<16xf32>
    %304 = vector.multi_reduction <add>, %290, %cst_70 [1] : vector<16x32xf32> to vector<16xf32>
    %305 = vector.shape_cast %304 : vector<16xf32> to vector<16x1xf32>
    %cst_71 = arith.constant 3.200000e+01 : f32
    %306 = vector.broadcast %cst_71 : f32 to vector<16x1xf32>
    %307 = arith.divf %305, %306 : vector<16x1xf32>
    %308 = vector.broadcast %307 : vector<16x1xf32> to vector<16x32xf32>
    %309 = arith.subf %290, %308 : vector<16x32xf32>
    %310 = arith.mulf %309, %309 : vector<16x32xf32>
    %cst_72 = arith.constant dense<0.000000e+00> : vector<16xf32>
    %311 = vector.multi_reduction <add>, %310, %cst_72 [1] : vector<16x32xf32> to vector<16xf32>
    %312 = vector.shape_cast %311 : vector<16xf32> to vector<16x1xf32>
    %cst_73 = arith.constant 3.200000e+01 : f32
    %313 = vector.broadcast %cst_73 : f32 to vector<16x1xf32>
    %314 = arith.divf %312, %313 : vector<16x1xf32>
    %315 = vector.broadcast %307 : vector<16x1xf32> to vector<16x32xf32>
    %316 = arith.subf %290, %315 : vector<16x32xf32>
    %cst_74 = arith.constant 9.99999974E-6 : f32
    %317 = vector.broadcast %cst_74 : f32 to vector<16x1xf32>
    %318 = arith.addf %314, %317 : vector<16x1xf32>
    %319 = math.rsqrt %318 : vector<16x1xf32>
    %320 = vector.broadcast %319 : vector<16x1xf32> to vector<16x32xf32>
    %321 = arith.mulf %316, %320 : vector<16x32xf32>
    %322 = vector.broadcast %299 : vector<1x32xf32> to vector<16x32xf32>
    %323 = arith.mulf %321, %322 : vector<16x32xf32>
    %324 = vector.broadcast %300 : vector<1x32xf32> to vector<16x32xf32>
    %325 = arith.addf %323, %324 : vector<16x32xf32>
    %326 = arith.truncf %325 : vector<16x32xf32> to vector<16x32xbf16>
    %cst_75 = arith.constant dense<0.000000e+00> : vector<16x128xf32>
    %327 = tpu.matmul %326, %293, %cst_75 {dimension_numbers = #tpu.dot_dimension_numbers<[1], [0], [0], [1], [0, 0, 1, 1], [], []>} : vector<16x32xbf16>, vector<32x128xbf16>, vector<16x128xf32> -> vector<16x128xf32>
    %328 = vector.broadcast %302 : vector<1x128xf32> to vector<16x128xf32>
    %329 = arith.addf %327, %328 : vector<16x128xf32>
    %cst_76 = arith.constant 0.000000e+00 : f32
    %330 = vector.broadcast %cst_76 : f32 to vector<16x128xf32>
    %331 = arith.maximumf %329, %330 : vector<16x128xf32>
    %332 = arith.truncf %331 : vector<16x128xf32> to vector<16x128xbf16>
    %cst_77 = arith.constant dense<0.000000e+00> : vector<16x32xf32>
    %333 = tpu.matmul %332, %296, %cst_77 {dimension_numbers = #tpu.dot_dimension_numbers<[1], [0], [0], [1], [0, 0, 1, 1], [], []>} : vector<16x128xbf16>, vector<128x32xbf16>, vector<16x32xf32> -> vector<16x32xf32>
    %334 = vector.broadcast %301 : vector<1x32xf32> to vector<16x32xf32>
    %335 = arith.addf %333, %334 : vector<16x32xf32>
    %336 = arith.truncf %335 : vector<16x32xf32> to vector<16x32xbf16>
    %cst_78 = arith.constant dense<0.000000e+00> : vector<16x128xf32>
    %337 = tpu.matmul %336, %294, %cst_78 {dimension_numbers = #tpu.dot_dimension_numbers<[1], [0], [0], [1], [0, 0, 1, 1], [], []>} : vector<16x32xbf16>, vector<32x128xbf16>, vector<16x128xf32> -> vector<16x128xf32>
    %338 = vector.broadcast %303 : vector<1x128xf32> to vector<16x128xf32>
    %339 = arith.addf %337, %338 : vector<16x128xf32>
    %340 = vector.shape_cast %339 : vector<16x128xf32> to vector<2x8x128xf32>
    %c0_79 = arith.constant 0 : index
    %c0_80 = arith.constant 0 : index
    %c0_81 = arith.constant 0 : index
    %341 = vector.load %arg6[%c0_79, %c0_80, %c0_81] : memref<2x8x128xf32, #tpu.memory_space<vmem>>, vector<2x8x128xf32>
    tpu.vector_store %arg6[%c0_79, %c0_80, %c0_81], %340 {strides = array<i32>} : memref<2x8x128xf32, #tpu.memory_space<vmem>>, vector<2x8x128xf32>,
    return
  }
}

</mosaic_0001>

<llo_original>
// kernel: language_model_forward.1
$region0: #{language_model_forward.1}
  #allocation0 [shape = 'u32[]', space=smem, size = 0x4, offset = 0x4, fixed_abs, tag = 'smem constant byte address 0x4 - core index']
  #allocation1 [shape = 'u32[144,128]{1,0:T(1,128)}', space=vmem, size = 0x12000, scoped, tag = 'internal scratch']
  %s0 = inlined_call_operand.vmem [shape: s32[16,1], index: 0, kind: input, shape index: {}]
  %s1 = inlined_call_operand.vmem [shape: f32[128,32], index: 1, kind: input, shape index: {}]
  %s2 = inlined_call_operand.vmem [shape: f32[8,32], index: 2, kind: input, shape index: {}]
  %s3 = inlined_call_operand.vmem [shape: bf16[3,32,256], index: 3, kind: input, shape index: {}]
  %s4 = inlined_call_operand.vmem [shape: bf16[3,128,32], index: 4, kind: input, shape index: {}]
  %s5 = inlined_call_operand.vmem [shape: f32[3,8,128], index: 5, kind: input, shape index: {}]
  %s6 = inlined_call_operand.hbm [shape: f32[2,8,128], index: 6, kind: output, shape index: {}]
  %s7 = sld [smem:[#allocation0]]
  $region34: #{language_model_forward.1} parent=0
    _
  %s9 = ssub.s32 1, %s7
  %s10 = scalar_select 0, %s9, %s7
  $region1: #{language_model_forward.1} parent=0
    #allocation2 [shape = 'u8[8192]{0}', space=vmem, size = 0x2000, scoped, tag = 'output window, operand 0, single buffered']
    #allocation3 [shape = 's32[1]{0}', space=sflag, size = 0x4, scoped, tag = 'scoped memory for language_model_forward.1']
    %11 = vsyncpa [#allocation3], 0
    // Predicated region
    $region2: #{language_model_forward.1} parent=1 // pred_check
      _
    $region3: #{language_model_forward.1} parent=1 // pred_check_branch
      %13 = sbr.rel (0) target = $region5
    $region4: #{language_model_forward.1} parent=1 // pred_region
      _
    $region5: #{language_model_forward.1} parent=1 // pred_fallthru
      _
    // Predicated region
    $region6: #{language_model_forward.1} parent=1 // pred_check
      _
    $region7: #{language_model_forward.1} parent=1 // pred_check_branch
      %15 = sbr.rel (0) target = $region9
    $region8: #{language_model_forward.1} parent=1 // pred_region
      _
    $region9: #{language_model_forward.1} parent=1 // pred_fallthru
      _
    // Predicated region
    $region10: #{language_model_forward.1} parent=1 // pred_check
      _
    $region11: #{language_model_forward.1} parent=1 // pred_check_branch
      %17 = sbr.rel (0) target = $region13
    $region12: #{language_model_forward.1} parent=1 // pred_region
      _
    $region13: #{language_model_forward.1} parent=1 // pred_fallthru
      _
    // Predicated region
    $region14: #{language_model_forward.1} parent=1 // pred_check
      _
    $region15: #{language_model_forward.1} parent=1 // pred_check_branch
      %19 = sbr.rel (0) target = $region17
    $region16: #{language_model_forward.1} parent=1 // pred_region
      _
    $region17: #{language_model_forward.1} parent=1 // pred_fallthru
      _
    // Predicated region
    $region18: #{language_model_forward.1} parent=1 // pred_check
      _
    $region19: #{language_model_forward.1} parent=1 // pred_check_branch
      %21 = sbr.rel (0) target = $region21
    $region20: #{language_model_forward.1} parent=1 // pred_region
      _
    $region21: #{language_model_forward.1} parent=1 // pred_fallthru
      _
    // Predicated region
    $region22: #{language_model_forward.1} parent=1 // pred_check
      _
    $region23: #{language_model_forward.1} parent=1 // pred_check_branch
      %23 = sbr.rel (0) target = $region25
    $region24: #{language_model_forward.1} parent=1 // pred_region
      _
    $region25: #{language_model_forward.1} parent=1 // pred_fallthru
      _
    %v25 = vld [vmem:[%s0] sm:$0xff]
    %v26 = vld [vmem:[%s0 + $0x8] sm:$0xff]
    %v27 = vlaneseq
    %v28 = vand.u32 %v27, 127
    %29 = vset.pattern.permute.xlu0 0
    %30 = vperm.xlu0 %29, %v25
    %v31 = vpop.permute.xlu0 %30
    %32 = vset.pattern.permute.xlu0 0
    %33 = vperm.xlu0 %32, %v26
    %v34 = vpop.permute.xlu0 %33
    %vm35 = vcmp.eq.s32.totalorder %v28, %v31
    %vm36 = vcmp.eq.s32.totalorder %v28, %v34
    %v37 = vsel %vm35, 1, 0
    %v38 = vsel %vm36, 1, 0
    %v39 = vcvt.s32.f32 %v37
    %v40 = vcvt.s32.f32 %v38
    %v41 = vld [vmem:[%s1] sm:$0xff]
    %v42 = vld [vmem:[%s1 + $0x8] sm:$0xff]
    %v43 = vld [vmem:[%s1 + $0x10] sm:$0xff]
    %v44 = vld [vmem:[%s1 + $0x18] sm:$0xff]
    %v45 = vld [vmem:[%s1 + $0x20] sm:$0xff]
    %v46 = vld [vmem:[%s1 + $0x28] sm:$0xff]
    %v47 = vld [vmem:[%s1 + $0x30] sm:$0xff]
    %v48 = vld [vmem:[%s1 + $0x38] sm:$0xff]
    %v49 = vld [vmem:[%s1 + $0x40] sm:$0xff]
    %v50 = vld [vmem:[%s1 + $0x48] sm:$0xff]
    %v51 = vld [vmem:[%s1 + $0x50] sm:$0xff]
    %v52 = vld [vmem:[%s1 + $0x58] sm:$0xff]
    %v53 = vld [vmem:[%s1 + $0x60] sm:$0xff]
    %v54 = vld [vmem:[%s1 + $0x68] sm:$0xff]
    %v55 = vld [vmem:[%s1 + $0x70] sm:$0xff]
    %v56 = vld [vmem:[%s1 + $0x78] sm:$0xff]
    %v57 = vld [vmem:[%s2] sm:$0xff]
    %58 = vmatprep.subr.mxu0 0.0
    %59 = vmatpush1.msra.mxu0 %v41
    %60 = vmatprep.subr.mxu0 0.0
    %61 = vmatpush1.msra.mxu0 %v42
    %62 = vmatprep.subr.mxu0 0.0
    %63 = vmatpush1.msra.mxu0 %v43
    %64 = vmatprep.subr.mxu0 0.0
    %65 = vmatpush1.msra.mxu0 %v44
    %66 = vmatprep.subr.mxu0 0.0
    %67 = vmatpush1.msra.mxu0 %v45
    %68 = vmatprep.subr.mxu0 0.0
    %69 = vmatpush1.msra.mxu0 %v46
    %70 = vmatprep.subr.mxu0 0.0
    %71 = vmatpush1.msra.mxu0 %v47
    %72 = vmatprep.subr.mxu0 0.0
    %73 = vmatpush1.msra.mxu0 %v48
    %74 = vmatprep.subr.mxu0 0.0
    %75 = vmatpush1.msra.mxu0 %v49
    %76 = vmatprep.subr.mxu0 0.0
    %77 = vmatpush1.msra.mxu0 %v50
    %78 = vmatprep.subr.mxu0 0.0
    %79 = vmatpush1.msra.mxu0 %v51
    %80 = vmatprep.subr.mxu0 0.0
    %81 = vmatpush1.msra.mxu0 %v52
    %82 = vmatprep.subr.mxu0 0.0
    %83 = vmatpush1.msra.mxu0 %v53
    %84 = vmatprep.subr.mxu0 0.0
    %85 = vmatpush1.msra.mxu0 %v54
    %86 = vmatprep.subr.mxu0 0.0
    %87 = vmatpush1.msra.mxu0 %v55
    %88 = vmatprep.subr.mxu0 0.0
    %89 = vmatpush1.msra.mxu0 %v56
    %90 = vmatprep.subr.mxu0 0.0
    %91 = vmatpush1.msra.mxu0 0.0
    %92 = vmatprep.subr.mxu0 0.0
    %93 = vmatpush1.msra.mxu0 0.0
    %94 = vmatprep.subr.mxu0 0.0
    %95 = vmatpush1.msra.mxu0 0.0
    %96 = vmatprep.subr.mxu0 0.0
    %97 = vmatpush1.msra.mxu0 0.0
    %98 = vmatprep.subr.mxu0 0.0
    %99 = vmatpush1.msra.mxu0 0.0
    %100 = vmatprep.subr.mxu0 0.0
    %101 = vmatpush1.msra.mxu0 0.0
    %102 = vmatprep.subr.mxu0 0.0
    %103 = vmatpush1.msra.mxu0 0.0
    %104 = vmatprep.subr.mxu0 0.0
    %105 = vmatpush1.msra.mxu0 0.0
    %106 = vmatprep.subr.mxu0 0.0
    %107 = vmatpush1.msra.mxu0 0.0
    %108 = vmatprep.subr.mxu0 0.0
    %109 = vmatpush1.msra.mxu0 0.0
    %110 = vmatprep.subr.mxu0 0.0
    %111 = vmatpush1.msra.mxu0 0.0
    %112 = vmatprep.subr.mxu0 0.0
    %113 = vmatpush1.msra.mxu0 0.0
    %114 = vmatprep.subr.mxu0 0.0
    %115 = vmatpush1.msra.mxu0 0.0
    %116 = vmatprep.subr.mxu0 0.0
    %117 = vmatpush1.msra.mxu0 0.0
    %118 = vmatprep.subr.mxu0 0.0
    %119 = vmatpush1.msra.mxu0 0.0
    %120 = vmatprep.subr.mxu0 0.0
    %121 = vmatpush1.msra.mxu0 0.0
    %122 = vmatprep.mubr.f32.mxu0 0.0
    %123 = vmatmul.mubr.f32.gmra.mrb[0].mxu0 %v39
    %v124 = vpop.f32.mrb[0].mxu0
    %v125 = vadd.f32 %v57, %v124
    %v126 = vpop.f32.mrb[0].mxu0
    %127 = vmatprep.mubr.f32.mxu0 0.0
    %128 = vmatmul.mubr.f32.gmra.mrb[0].mxu0 %v40
    %v129 = vpop.f32.mrb[0].mxu0
    %v130 = vadd.f32 %v57, %v129
    %v131 = vpop.f32.mrb[0].mxu0
    %132 = vdwg.mxu0
    %v133 = vlaneseq
    %v134 = vshrl.u32 %v133, 7
    %vm135 = vcmp.ge.s32.totalorder %v134, %v28
    %v136 = vld [vmem:[%s3] sm:$0xff]
    %v137 = vld [vmem:[%s3 + $0x8] sm:$0xff]
    %v138 = vld [vmem:[%s3 + $0x10] sm:$0xff]
    %v139 = vld [vmem:[%s3 + $0x18] sm:$0xff]
    %v140 = vld [vmem:[%s4] sm:$0xf]
    %v141 = vld [vmem:[%s4 + $0x4] sm:$0xf]
    %v142 = vld [vmem:[%s4 + $0x8] sm:$0xf]
    %v143 = vld [vmem:[%s4 + $0xc] sm:$0xf]
    %v144 = vld [vmem:[%s4 + $0x10] sm:$0xf]
    %v145 = vld [vmem:[%s4 + $0x14] sm:$0xf]
    %v146 = vld [vmem:[%s4 + $0x18] sm:$0xf]
    %v147 = vld [vmem:[%s4 + $0x1c] sm:$0xf]
    %v148 = vld [vmem:[%s4 + $0x20] sm:$0xf]
    %v149 = vld [vmem:[%s4 + $0x24] sm:$0xf]
    %v150 = vld [vmem:[%s4 + $0x28] sm:$0xf]
    %v151 = vld [vmem:[%s4 + $0x2c] sm:$0xf]
    %v152 = vld [vmem:[%s4 + $0x30] sm:$0xf]
    %v153 = vld [vmem:[%s4 + $0x34] sm:$0xf]
    %v154 = vld [vmem:[%s4 + $0x38] sm:$0xf]
    %v155 = vld [vmem:[%s4 + $0x3c] sm:$0xf]
    %v156 = vld [vmem:[%s5] sm:$0xff]
    %vm157 = vcmask 261120
    %v158 = vsel %vm157, %v125, 0.0
    %159 = vadd.xlane.f32.xlu0 %v158
    %v160 = vpop.xlane.xlu0 %159
    %v161 = vsel %vm157, %v130, 0.0
    %162 = vadd.xlane.f32.xlu0 %v161
    %v163 = vpop.xlane.xlu0 %162
    %v164 = vrcp.pop 32.0
    %v165 = vmul.f32 %v160, %v164
    %v166 = vmul.f32 %v163, %v164
    %v167 = vsub.f32 %v125, %v165
    %v168 = vsub.f32 %v130, %v166
    %v169 = vmul.f32 %v167, %v167
    %v170 = vmul.f32 %v168, %v168
    %v171 = vsel %vm157, %v169, 0.0
    %172 = vadd.xlane.f32.xlu0 %v171
    %v173 = vpop.xlane.xlu0 %172
    %v174 = vsel %vm157, %v170, 0.0
    %175 = vadd.xlane.f32.xlu0 %v174
    %v176 = vpop.xlane.xlu0 %175
    %v177 = vmul.f32 %v173, %v164
    %v178 = vmul.f32 %v176, %v164
    %v179 = vadd.f32 %v177, 1e-05
    %v180 = vadd.f32 %v178, 1e-05
    %v181 = vrsqrt.pop %v179
    %v182 = vrsqrt.pop %v180
    %v183 = vmul.f32 %v167, %v181
    %v184 = vmul.f32 %v168, %v182
    %v185 = vlaneseq
    %v186 = vshrl.u32 %v185, 7
    %v187 = vsub.s32 0, %v186
    %v188 = vrot.slane %v156, %v187
    %v189 = vmul.f32 %v183, %v188
    %v190 = vmul.f32 %v184, %v188
    %v191 = vlaneseq
    %v192 = vshrl.u32 %v191, 7
    %v193 = vsub.s32 1, %v192
    %v194 = vrot.slane %v156, %v193
    %v195 = vadd.f32 %v189, %v194
    %v196 = vadd.f32 %v190, %v194
    %v197 = vpack.c.bf16 %v196, %v195
    %v202 = vunpack.c.l.b16 %v136
    %v203 = vunpack.c.l.b16 %v137
    %v204 = vunpack.c.l.b16 %v138
    %v205 = vunpack.c.l.b16 %v139
    %v206 = vpack.c.b16 %v203, %v202
    %v207 = vpack.c.b16 %v205, %v204
    %v211 = vsel %vm157, %v197, 0
    %213 = vmatprep.subr.bf16.mxu0 0
    %214 = vmatpush1.bf16.msra.mxu0 %v206
    %215 = vmatprep.subr.bf16.mxu0 0
    %216 = vmatpush1.bf16.msra.mxu0 %v207
    %217 = vmatprep.subr.bf16.mxu0 0
    %218 = vmatpush1.bf16.msra.mxu0 0
    %219 = vmatprep.subr.bf16.mxu0 0
    %220 = vmatpush1.bf16.msra.mxu0 0
    %221 = vmatprep.subr.bf16.mxu0 0
    %222 = vmatpush1.bf16.msra.mxu0 0
    %223 = vmatprep.subr.bf16.mxu0 0
    %224 = vmatpush1.bf16.msra.mxu0 0
    %225 = vmatprep.subr.bf16.mxu0 0
    %226 = vmatpush1.bf16.msra.mxu0 0
    %227 = vmatprep.subr.bf16.mxu0 0
    %228 = vmatpush1.bf16.msra.mxu0 0
    %229 = vmatprep.subr.bf16.mxu0 0
    %230 = vmatpush1.bf16.msra.mxu0 0
    %231 = vmatprep.subr.bf16.mxu0 0
    %232 = vmatpush1.bf16.msra.mxu0 0
    %233 = vmatprep.subr.bf16.mxu0 0
    %234 = vmatpush1.bf16.msra.mxu0 0
    %235 = vmatprep.subr.bf16.mxu0 0
    %236 = vmatpush1.bf16.msra.mxu0 0
    %237 = vmatprep.subr.bf16.mxu0 0
    %238 = vmatpush1.bf16.msra.mxu0 0
    %239 = vmatprep.subr.bf16.mxu0 0
    %240 = vmatpush1.bf16.msra.mxu0 0
    %241 = vmatprep.subr.bf16.mxu0 0
    %242 = vmatpush1.bf16.msra.mxu0 0
    %243 = vmatprep.subr.bf16.mxu0 0
    %244 = vmatpush1.bf16.msra.mxu0 0
    %245 = vmatprep.mubr.bf16.mxu0 0
    %246 = vmatmul.mubr.bf16.gmra.mrb[0].mxu0 %v211
    %v247 = vpop.f32.mrb[0].mxu0
    %v248 = vadd.f32 0.0, %v247
    %v249 = vpop.f32.mrb[0].mxu0
    %v250 = vpop.f32.mrb[0].mxu0
    %v251 = vadd.f32 0.0, %v250
    %v252 = vpop.f32.mrb[0].mxu0
    %253 = vdwg.mxu0
    %v254 = vpack.c.bf16 %v251, %v248
    %256 = vrot.lane.b32.xlu0 %v254, 120
    %v257 = vpop.permute.xlu0 %256
    %258 = vrot.lane.b32.xlu0 %v254, 112
    %v259 = vpop.permute.xlu0 %258
    %260 = vrot.lane.b32.xlu0 %v254, 104
    %v261 = vpop.permute.xlu0 %260
    %v262 = vunpack.c.l.b16 %v254
    %v263 = vunpack.c.h.b16 %v254
    %v264 = vunpack.c.l.b16 %v257
    %v265 = vunpack.c.h.b16 %v257
    %v266 = vunpack.c.l.b16 %v259
    %v267 = vunpack.c.h.b16 %v259
    %v268 = vunpack.c.l.b16 %v261
    %v269 = vunpack.c.h.b16 %v261
    %v270 = vpack.c.b16 %v262, %v262
    %v271 = vpack.c.b16 %v263, %v263
    %v272 = vpack.c.b16 %v264, %v264
    %v273 = vpack.c.b16 %v265, %v265
    %v274 = vpack.c.b16 %v266, %v266
    %v275 = vpack.c.b16 %v267, %v267
    %v276 = vpack.c.b16 %v268, %v268
    %v277 = vpack.c.b16 %v269, %v269
    %278 = vrot.lane.b32.xlu0 %v270, 96
    %v279 = vpop.permute.xlu0 %278
    %vm280 = vcmask 64512
    %v282 = vsel %vm280, %v270, 0
    %v285 = vsel %vm280, %v279, 0
    %287 = vmatprep.subr.bf16.mxu0 0
    %288 = vmatpush1.bf16.xpose.msra.mxu0 %v285
    %289 = vmatprep.subr.bf16.mxu0 0
    %290 = vmatpush1.bf16.xpose.msra.mxu0 0
    %291 = vmatprep.subr.bf16.mxu0 0
    %292 = vmatpush1.bf16.xpose.msra.mxu0 0
    %293 = vmatprep.subr.bf16.mxu0 0
    %294 = vmatpush1.bf16.xpose.msra.mxu0 0
    %295 = vmatprep.subr.bf16.mxu0 0
    %296 = vmatpush1.bf16.xpose.msra.mxu0 0
    %297 = vmatprep.subr.bf16.mxu0 0
    %298 = vmatpush1.bf16.xpose.msra.mxu0 0
    %299 = vmatprep.subr.bf16.mxu0 0
    %300 = vmatpush1.bf16.xpose.msra.mxu0 0
    %301 = vmatprep.subr.bf16.mxu0 0
    %302 = vmatpush1.bf16.xpose.msra.mxu0 0
    %303 = vmatprep.subr.bf16.mxu0 0
    %304 = vmatpush1.bf16.xpose.msra.mxu0 0
    %305 = vmatprep.subr.bf16.mxu0 0
    %306 = vmatpush1.bf16.xpose.msra.mxu0 0
    %307 = vmatprep.subr.bf16.mxu0 0
    %308 = vmatpush1.bf16.xpose.msra.mxu0 0
    %309 = vmatprep.subr.bf16.mxu0 0
    %310 = vmatpush1.bf16.xpose.msra.mxu0 0
    %311 = vmatprep.subr.bf16.mxu0 0
    %312 = vmatpush1.bf16.xpose.msra.mxu0 0
    %313 = vmatprep.subr.bf16.mxu0 0
    %314 = vmatpush1.bf16.xpose.msra.mxu0 0
    %315 = vmatprep.subr.bf16.mxu0 0
    %316 = vmatpush1.bf16.xpose.msra.mxu0 0
    %317 = vmatprep.subr.bf16.mxu0 0
    %318 = vmatpush1.bf16.xpose.msra.mxu0 0
    %319 = vmatprep.mubr.bf16.mxu0 0
    %320 = vmatmul.mubr.bf16.gmra.mrb[0].mxu0 %v282
    %v321 = vpop.f32.mrb[0].mxu0
    %v322 = vadd.f32 0.0, %v321
    %v323 = vpop.f32.mrb[0].mxu0
    %v324 = vpop.f32.mrb[0].mxu0
    %v325 = vpop.f32.mrb[0].mxu0
    %326 = vdwg.mxu0
    %327 = vrot.lane.b32.xlu0 %v271, 96
    %v328 = vpop.permute.xlu0 %327
    %v330 = vsel %vm280, %v271, 0
    %v333 = vsel %vm280, %v328, 0
    %335 = vmatprep.subr.bf16.mxu0 0
    %336 = vmatpush1.bf16.xpose.msra.mxu0 %v333
    %337 = vmatprep.subr.bf16.mxu0 0
    %338 = vmatpush1.bf16.xpose.msra.mxu0 0
    %339 = vmatprep.subr.bf16.mxu0 0
    %340 = vmatpush1.bf16.xpose.msra.mxu0 0
    %341 = vmatprep.subr.bf16.mxu0 0
    %342 = vmatpush1.bf16.xpose.msra.mxu0 0
    %343 = vmatprep.subr.bf16.mxu0 0
    %344 = vmatpush1.bf16.xpose.msra.mxu0 0
    %345 = vmatprep.subr.bf16.mxu0 0
    %346 = vmatpush1.bf16.xpose.msra.mxu0 0
    %347 = vmatprep.subr.bf16.mxu0 0
    %348 = vmatpush1.bf16.xpose.msra.mxu0 0
    %349 = vmatprep.subr.bf16.mxu0 0
    %350 = vmatpush1.bf16.xpose.msra.mxu0 0
    %351 = vmatprep.subr.bf16.mxu0 0
    %352 = vmatpush1.bf16.xpose.msra.mxu0 0
    %353 = vmatprep.subr.bf16.mxu0 0
    %354 = vmatpush1.bf16.xpose.msra.mxu0 0
    %355 = vmatprep.subr.bf16.mxu0 0
    %356 = vmatpush1.bf16.xpose.msra.mxu0 0
    %357 = vmatprep.subr.bf16.mxu0 0
    %358 = vmatpush1.bf16.xpose.msra.mxu0 0
    %359 = vmatprep.subr.bf16.mxu0 0
    %360 = vmatpush1.bf16.xpose.msra.mxu0 0
    %361 = vmatprep.subr.bf16.mxu0 0
    %362 = vmatpush1.bf16.xpose.msra.mxu0 0
    %363 = vmatprep.subr.bf16.mxu0 0
    %364 = vmatpush1.bf16.xpose.msra.mxu0 0
    %365 = vmatprep.subr.bf16.mxu0 0
    %366 = vmatpush1.bf16.xpose.msra.mxu0 0
    %367 = vmatprep.mubr.bf16.mxu0 0
    %368 = vmatmul.mubr.bf16.gmra.mrb[0].mxu0 %v330
    %v369 = vpop.f32.mrb[0].mxu0
    %v370 = vadd.f32 0.0, %v369
    %v371 = vpop.f32.mrb[0].mxu0
    %v372 = vpop.f32.mrb[0].mxu0
    %v373 = vpop.f32.mrb[0].mxu0
    %374 = vdwg.mxu0
    %375 = vrot.lane.b32.xlu0 %v272, 96
    %v376 = vpop.permute.xlu0 %375
    %v378 = vsel %vm280, %v272, 0
    %v381 = vsel %vm280, %v376, 0
    %383 = vmatprep.subr.bf16.mxu0 0
    %384 = vmatpush1.bf16.xpose.msra.mxu0 %v381
    %385 = vmatprep.subr.bf16.mxu0 0
    %386 = vmatpush1.bf16.xpose.msra.mxu0 0
    %387 = vmatprep.subr.bf16.mxu0 0
    %388 = vmatpush1.bf16.xpose.msra.mxu0 0
    %389 = vmatprep.subr.bf16.mxu0 0
    %390 = vmatpush1.bf16.xpose.msra.mxu0 0
    %391 = vmatprep.subr.bf16.mxu0 0
    %392 = vmatpush1.bf16.xpose.msra.mxu0 0
    %393 = vmatprep.subr.bf16.mxu0 0
    %394 = vmatpush1.bf16.xpose.msra.mxu0 0
    %395 = vmatprep.subr.bf16.mxu0 0
    %396 = vmatpush1.bf16.xpose.msra.mxu0 0
    %397 = vmatprep.subr.bf16.mxu0 0
    %398 = vmatpush1.bf16.xpose.msra.mxu0 0
    %399 = vmatprep.subr.bf16.mxu0 0
    %400 = vmatpush1.bf16.xpose.msra.mxu0 0
    %401 = vmatprep.subr.bf16.mxu0 0
    %402 = vmatpush1.bf16.xpose.msra.mxu0 0
    %403 = vmatprep.subr.bf16.mxu0 0
    %404 = vmatpush1.bf16.xpose.msra.mxu0 0
    %405 = vmatprep.subr.bf16.mxu0 0
    %406 = vmatpush1.bf16.xpose.msra.mxu0 0
    %407 = vmatprep.subr.bf16.mxu0 0
    %408 = vmatpush1.bf16.xpose.msra.mxu0 0
    %409 = vmatprep.subr.bf16.mxu0 0
    %410 = vmatpush1.bf16.xpose.msra.mxu0 0
    %411 = vmatprep.subr.bf16.mxu0 0
    %412 = vmatpush1.bf16.xpose.msra.mxu0 0
    %413 = vmatprep.subr.bf16.mxu0 0
    %414 = vmatpush1.bf16.xpose.msra.mxu0 0
    %415 = vmatprep.mubr.bf16.mxu0 0
    %416 = vmatmul.mubr.bf16.gmra.mrb[0].mxu0 %v378
    %v417 = vpop.f32.mrb[0].mxu0
    %v418 = vadd.f32 0.0, %v417
    %v419 = vpop.f32.mrb[0].mxu0
    %v420 = vpop.f32.mrb[0].mxu0
    %v421 = vpop.f32.mrb[0].mxu0
    %422 = vdwg.mxu0
    %423 = vrot.lane.b32.xlu0 %v273, 96
    %v424 = vpop.permute.xlu0 %423
    %v426 = vsel %vm280, %v273, 0
    %v429 = vsel %vm280, %v424, 0
    %431 = vmatprep.subr.bf16.mxu0 0
    %432 = vmatpush1.bf16.xpose.msra.mxu0 %v429
    %433 = vmatprep.subr.bf16.mxu0 0
    %434 = vmatpush1.bf16.xpose.msra.mxu0 0
    %435 = vmatprep.subr.bf16.mxu0 0
    %436 = vmatpush1.bf16.xpose.msra.mxu0 0
    %437 = vmatprep.subr.bf16.mxu0 0
    %438 = vmatpush1.bf16.xpose.msra.mxu0 0
    %439 = vmatprep.subr.bf16.mxu0 0
    %440 = vmatpush1.bf16.xpose.msra.mxu0 0
    %441 = vmatprep.subr.bf16.mxu0 0
    %442 = vmatpush1.bf16.xpose.msra.mxu0 0
    %443 = vmatprep.subr.bf16.mxu0 0
    %444 = vmatpush1.bf16.xpose.msra.mxu0 0
    %445 = vmatprep.subr.bf16.mxu0 0
    %446 = vmatpush1.bf16.xpose.msra.mxu0 0
    %447 = vmatprep.subr.bf16.mxu0 0
    %448 = vmatpush1.bf16.xpose.msra.mxu0 0
    %449 = vmatprep.subr.bf16.mxu0 0
    %450 = vmatpush1.bf16.xpose.msra.mxu0 0
    %451 = vmatprep.subr.bf16.mxu0 0
    %452 = vmatpush1.bf16.xpose.msra.mxu0 0
    %453 = vmatprep.subr.bf16.mxu0 0
    %454 = vmatpush1.bf16.xpose.msra.mxu0 0
    %455 = vmatprep.subr.bf16.mxu0 0
    %456 = vmatpush1.bf16.xpose.msra.mxu0 0
    %457 = vmatprep.subr.bf16.mxu0 0
    %458 = vmatpush1.bf16.xpose.msra.mxu0 0
    %459 = vmatprep.subr.bf16.mxu0 0
    %460 = vmatpush1.bf16.xpose.msra.mxu0 0
    %461 = vmatprep.subr.bf16.mxu0 0
    %462 = vmatpush1.bf16.xpose.msra.mxu0 0
    %463 = vmatprep.mubr.bf16.mxu0 0
    %464 = vmatmul.mubr.bf16.gmra.mrb[0].mxu0 %v426
    %v465 = vpop.f32.mrb[0].mxu0
    %v466 = vadd.f32 0.0, %v465
    %v467 = vpop.f32.mrb[0].mxu0
    %v468 = vpop.f32.mrb[0].mxu0
    %v469 = vpop.f32.mrb[0].mxu0
    %470 = vdwg.mxu0
    %471 = vrot.lane.b32.xlu0 %v274, 96
    %v472 = vpop.permute.xlu0 %471
    %v474 = vsel %vm280, %v274, 0
    %v477 = vsel %vm280, %v472, 0
    %479 = vmatprep.subr.bf16.mxu0 0
    %480 = vmatpush1.bf16.xpose.msra.mxu0 %v477
    %481 = vmatprep.subr.bf16.mxu0 0
    %482 = vmatpush1.bf16.xpose.msra.mxu0 0
    %483 = vmatprep.subr.bf16.mxu0 0
    %484 = vmatpush1.bf16.xpose.msra.mxu0 0
    %485 = vmatprep.subr.bf16.mxu0 0
    %486 = vmatpush1.bf16.xpose.msra.mxu0 0
    %487 = vmatprep.subr.bf16.mxu0 0
    %488 = vmatpush1.bf16.xpose.msra.mxu0 0
    %489 = vmatprep.subr.bf16.mxu0 0
    %490 = vmatpush1.bf16.xpose.msra.mxu0 0
    %491 = vmatprep.subr.bf16.mxu0 0
    %492 = vmatpush1.bf16.xpose.msra.mxu0 0
    %493 = vmatprep.subr.bf16.mxu0 0
    %494 = vmatpush1.bf16.xpose.msra.mxu0 0
    %495 = vmatprep.subr.bf16.mxu0 0
    %496 = vmatpush1.bf16.xpose.msra.mxu0 0
    %497 = vmatprep.subr.bf16.mxu0 0
    %498 = vmatpush1.bf16.xpose.msra.mxu0 0
    %499 = vmatprep.subr.bf16.mxu0 0
    %500 = vmatpush1.bf16.xpose.msra.mxu0 0
    %501 = vmatprep.subr.bf16.mxu0 0
    %502 = vmatpush1.bf16.xpose.msra.mxu0 0
    %503 = vmatprep.subr.bf16.mxu0 0
    %504 = vmatpush1.bf16.xpose.msra.mxu0 0
    %505 = vmatprep.subr.bf16.mxu0 0
    %506 = vmatpush1.bf16.xpose.msra.mxu0 0
    %507 = vmatprep.subr.bf16.mxu0 0
    %508 = vmatpush1.bf16.xpose.msra.mxu0 0
    %509 = vmatprep.subr.bf16.mxu0 0
    %510 = vmatpush1.bf16.xpose.msra.mxu0 0
    %511 = vmatprep.mubr.bf16.mxu0 0
    %512 = vmatmul.mubr.bf16.gmra.mrb[0].mxu0 %v474
    %v513 = vpop.f32.mrb[0].mxu0
    %v514 = vadd.f32 0.0, %v513
    %v515 = vpop.f32.mrb[0].mxu0
    %v516 = vpop.f32.mrb[0].mxu0
    %v517 = vpop.f32.mrb[0].mxu0
    %518 = vdwg.mxu0
    %519 = vrot.lane.b32.xlu0 %v275, 96
    %v520 = vpop.permute.xlu0 %519
    %v522 = vsel %vm280, %v275, 0
    %v525 = vsel %vm280, %v520, 0
    %527 = vmatprep.subr.bf16.mxu0 0
    %528 = vmatpush1.bf16.xpose.msra.mxu0 %v525
    %529 = vmatprep.subr.bf16.mxu0 0
    %530 = vmatpush1.bf16.xpose.msra.mxu0 0
    %531 = vmatprep.subr.bf16.mxu0 0
    %532 = vmatpush1.bf16.xpose.msra.mxu0 0
    %533 = vmatprep.subr.bf16.mxu0 0
    %534 = vmatpush1.bf16.xpose.msra.mxu0 0
    %535 = vmatprep.subr.bf16.mxu0 0
    %536 = vmatpush1.bf16.xpose.msra.mxu0 0
    %537 = vmatprep.subr.bf16.mxu0 0
    %538 = vmatpush1.bf16.xpose.msra.mxu0 0
    %539 = vmatprep.subr.bf16.mxu0 0
    %540 = vmatpush1.bf16.xpose.msra.mxu0 0
    %541 = vmatprep.subr.bf16.mxu0 0
    %542 = vmatpush1.bf16.xpose.msra.mxu0 0
    %543 = vmatprep.subr.bf16.mxu0 0
    %544 = vmatpush1.bf16.xpose.msra.mxu0 0
    %545 = vmatprep.subr.bf16.mxu0 0
    %546 = vmatpush1.bf16.xpose.msra.mxu0 0
    %547 = vmatprep.subr.bf16.mxu0 0
    %548 = vmatpush1.bf16.xpose.msra.mxu0 0
    %549 = vmatprep.subr.bf16.mxu0 0
    %550 = vmatpush1.bf16.xpose.msra.mxu0 0
    %551 = vmatprep.subr.bf16.mxu0 0
    %552 = vmatpush1.bf16.xpose.msra.mxu0 0
    %553 = vmatprep.subr.bf16.mxu0 0
    %554 = vmatpush1.bf16.xpose.msra.mxu0 0
    %555 = vmatprep.subr.bf16.mxu0 0
    %556 = vmatpush1.bf16.xpose.msra.mxu0 0
    %557 = vmatprep.subr.bf16.mxu0 0
    %558 = vmatpush1.bf16.xpose.msra.mxu0 0
    %559 = vmatprep.mubr.bf16.mxu0 0
    %560 = vmatmul.mubr.bf16.gmra.mrb[0].mxu0 %v522
    %v561 = vpop.f32.mrb[0].mxu0
    %v562 = vadd.f32 0.0, %v561
    %v563 = vpop.f32.mrb[0].mxu0
    %v564 = vpop.f32.mrb[0].mxu0
    %v565 = vpop.f32.mrb[0].mxu0
    %566 = vdwg.mxu0
    %567 = vrot.lane.b32.xlu0 %v276, 96
    %v568 = vpop.permute.xlu0 %567
    %v570 = vsel %vm280, %v276, 0
    %v573 = vsel %vm280, %v568, 0
    %575 = vmatprep.subr.bf16.mxu0 0
    %576 = vmatpush1.bf16.xpose.msra.mxu0 %v573
    %577 = vmatprep.subr.bf16.mxu0 0
    %578 = vmatpush1.bf16.xpose.msra.mxu0 0
    %579 = vmatprep.subr.bf16.mxu0 0
    %580 = vmatpush1.bf16.xpose.msra.mxu0 0
    %581 = vmatprep.subr.bf16.mxu0 0
    %582 = vmatpush1.bf16.xpose.msra.mxu0 0
    %583 = vmatprep.subr.bf16.mxu0 0
    %584 = vmatpush1.bf16.xpose.msra.mxu0 0
    %585 = vmatprep.subr.bf16.mxu0 0
    %586 = vmatpush1.bf16.xpose.msra.mxu0 0
    %587 = vmatprep.subr.bf16.mxu0 0
    %588 = vmatpush1.bf16.xpose.msra.mxu0 0
    %589 = vmatprep.subr.bf16.mxu0 0
    %590 = vmatpush1.bf16.xpose.msra.mxu0 0
    %591 = vmatprep.subr.bf16.mxu0 0
    %592 = vmatpush1.bf16.xpose.msra.mxu0 0
    %593 = vmatprep.subr.bf16.mxu0 0
    %594 = vmatpush1.bf16.xpose.msra.mxu0 0
    %595 = vmatprep.subr.bf16.mxu0 0
    %596 = vmatpush1.bf16.xpose.msra.mxu0 0
    %597 = vmatprep.subr.bf16.mxu0 0
    %598 = vmatpush1.bf16.xpose.msra.mxu0 0
    %599 = vmatprep.subr.bf16.mxu0 0
    %600 = vmatpush1.bf16.xpose.msra.mxu0 0
    %601 = vmatprep.subr.bf16.mxu0 0
    %602 = vmatpush1.bf16.xpose.msra.mxu0 0
    %603 = vmatprep.subr.bf16.mxu0 0
    %604 = vmatpush1.bf16.xpose.msra.mxu0 0
    %605 = vmatprep.subr.bf16.mxu0 0
    %606 = vmatpush1.bf16.xpose.msra.mxu0 0
    %607 = vmatprep.mubr.bf16.mxu0 0
    %608 = vmatmul.mubr.bf16.gmra.mrb[0].mxu0 %v570
    %v609 = vpop.f32.mrb[0].mxu0
    %v610 = vadd.f32 0.0, %v609
    %v611 = vpop.f32.mrb[0].mxu0
    %v612 = vpop.f32.mrb[0].mxu0
    %v613 = vpop.f32.mrb[0].mxu0
    %614 = vdwg.mxu0
    %615 = vrot.lane.b32.xlu0 %v277, 96
    %v616 = vpop.permute.xlu0 %615
    %v618 = vsel %vm280, %v277, 0
    %v621 = vsel %vm280, %v616, 0
    %623 = vmatprep.subr.bf16.mxu0 0
    %624 = vmatpush1.bf16.xpose.msra.mxu0 %v621
    %625 = vmatprep.subr.bf16.mxu0 0
    %626 = vmatpush1.bf16.xpose.msra.mxu0 0
    %627 = vmatprep.subr.bf16.mxu0 0
    %628 = vmatpush1.bf16.xpose.msra.mxu0 0
    %629 = vmatprep.subr.bf16.mxu0 0
    %630 = vmatpush1.bf16.xpose.msra.mxu0 0
    %631 = vmatprep.subr.bf16.mxu0 0
    %632 = vmatpush1.bf16.xpose.msra.mxu0 0
    %633 = vmatprep.subr.bf16.mxu0 0
    %634 = vmatpush1.bf16.xpose.msra.mxu0 0
    %635 = vmatprep.subr.bf16.mxu0 0
    %636 = vmatpush1.bf16.xpose.msra.mxu0 0
    %637 = vmatprep.subr.bf16.mxu0 0
    %638 = vmatpush1.bf16.xpose.msra.mxu0 0
    %639 = vmatprep.subr.bf16.mxu0 0
    %640 = vmatpush1.bf16.xpose.msra.mxu0 0
    %641 = vmatprep.subr.bf16.mxu0 0
    %642 = vmatpush1.bf16.xpose.msra.mxu0 0
    %643 = vmatprep.subr.bf16.mxu0 0
    %644 = vmatpush1.bf16.xpose.msra.mxu0 0
    %645 = vmatprep.subr.bf16.mxu0 0
    %646 = vmatpush1.bf16.xpose.msra.mxu0 0
    %647 = vmatprep.subr.bf16.mxu0 0
    %648 = vmatpush1.bf16.xpose.msra.mxu0 0
    %649 = vmatprep.subr.bf16.mxu0 0
    %650 = vmatpush1.bf16.xpose.msra.mxu0 0
    %651 = vmatprep.subr.bf16.mxu0 0
    %652 = vmatpush1.bf16.xpose.msra.mxu0 0
    %653 = vmatprep.subr.bf16.mxu0 0
    %654 = vmatpush1.bf16.xpose.msra.mxu0 0
    %655 = vmatprep.mubr.bf16.mxu0 0
    %656 = vmatmul.mubr.bf16.gmra.mrb[0].mxu0 %v618
    %v657 = vpop.f32.mrb[0].mxu0
    %v658 = vadd.f32 0.0, %v657
    %v659 = vpop.f32.mrb[0].mxu0
    %v660 = vpop.f32.mrb[0].mxu0
    %v661 = vpop.f32.mrb[0].mxu0
    %662 = vdwg.mxu0
    %v663 = vsel %vm135, 1, 0
    %vm664 = vcmp.eq.s32.totalorder %v663, 1
    %v665 = vsel %vm664, %v322, -inf
    %v666 = vsel %vm664, %v370, -inf
    %v667 = vsel %vm664, %v418, -inf
    %v668 = vsel %vm664, %v466, -inf
    %v669 = vsel %vm664, %v514, -inf
    %v670 = vsel %vm664, %v562, -inf
    %v671 = vsel %vm664, %v610, -inf
    %v672 = vsel %vm664, %v658, -inf
    %v673 = vsel %vm280, %v665, -inf
    %674 = vmax.xlane.f32.xlu0 %v673
    %v675 = vpop.xlane.xlu0 %674
    %v676 = vsel %vm280, %v666, -inf
    %677 = vmax.xlane.f32.xlu0 %v676
    %v678 = vpop.xlane.xlu0 %677
    %v679 = vsel %vm280, %v667, -inf
    %680 = vmax.xlane.f32.xlu0 %v679
    %v681 = vpop.xlane.xlu0 %680
    %v682 = vsel %vm280, %v668, -inf
    %683 = vmax.xlane.f32.xlu0 %v682
    %v684 = vpop.xlane.xlu0 %683
    %v685 = vsel %vm280, %v669, -inf
    %686 = vmax.xlane.f32.xlu0 %v685
    %v687 = vpop.xlane.xlu0 %686
    %v688 = vsel %vm280, %v670, -inf
    %689 = vmax.xlane.f32.xlu0 %v688
    %v690 = vpop.xlane.xlu0 %689
    %v691 = vsel %vm280, %v671, -inf
    %692 = vmax.xlane.f32.xlu0 %v691
    %v693 = vpop.xlane.xlu0 %692
    %v694 = vsel %vm280, %v672, -inf
    %695 = vmax.xlane.f32.xlu0 %v694
    %v696 = vpop.xlane.xlu0 %695
    %v697 = vsub.f32 %v665, %v675
    %v698 = vsub.f32 %v666, %v678
    %v699 = vsub.f32 %v667, %v681
    %v700 = vsub.f32 %v668, %v684
    %v701 = vsub.f32 %v669, %v687
    %v702 = vsub.f32 %v670, %v690
    %v703 = vsub.f32 %v671, %v693
    %v704 = vsub.f32 %v672, %v696
    %v705 = vmul.f32 %v697, 1.442695
    %v706 = vpow.pop %v705
    %v707 = vmul.f32 %v698, 1.442695
    %v708 = vpow.pop %v707
    %v709 = vmul.f32 %v699, 1.442695
    %v710 = vpow.pop %v709
    %v711 = vmul.f32 %v700, 1.442695
    %v712 = vpow.pop %v711
    %v713 = vmul.f32 %v701, 1.442695
    %v714 = vpow.pop %v713
    %v715 = vmul.f32 %v702, 1.442695
    %v716 = vpow.pop %v715
    %v717 = vmul.f32 %v703, 1.442695
    %v718 = vpow.pop %v717
    %v719 = vmul.f32 %v704, 1.442695
    %v720 = vpow.pop %v719
    %v721 = vsel %vm280, %v706, 0.0
    %722 = vadd.xlane.f32.xlu0 %v721
    %v723 = vpop.xlane.xlu0 %722
    %v724 = vsel %vm280, %v708, 0.0
    %725 = vadd.xlane.f32.xlu0 %v724
    %v726 = vpop.xlane.xlu0 %725
    %v727 = vsel %vm280, %v710, 0.0
    %728 = vadd.xlane.f32.xlu0 %v727
    %v729 = vpop.xlane.xlu0 %728
    %v730 = vsel %vm280, %v712, 0.0
    %731 = vadd.xlane.f32.xlu0 %v730
    %v732 = vpop.xlane.xlu0 %731
    %v733 = vsel %vm280, %v714, 0.0
    %734 = vadd.xlane.f32.xlu0 %v733
    %v735 = vpop.xlane.xlu0 %734
    %v736 = vsel %vm280, %v716, 0.0
    %737 = vadd.xlane.f32.xlu0 %v736
    %v738 = vpop.xlane.xlu0 %737
    %v739 = vsel %vm280, %v718, 0.0
    %740 = vadd.xlane.f32.xlu0 %v739
    %v741 = vpop.xlane.xlu0 %740
    %v742 = vsel %vm280, %v720, 0.0
    %743 = vadd.xlane.f32.xlu0 %v742
    %v744 = vpop.xlane.xlu0 %743
    %v745 = vrcp.pop %v723
    %v746 = vmul.f32 %v706, %v745
    %v747 = vrcp.pop %v726
    %v748 = vmul.f32 %v708, %v747
    %v749 = vrcp.pop %v729
    %v750 = vmul.f32 %v710, %v749
    %v751 = vrcp.pop %v732
    %v752 = vmul.f32 %v712, %v751
    %v753 = vrcp.pop %v735
    %v754 = vmul.f32 %v714, %v753
    %v755 = vrcp.pop %v738
    %v756 = vmul.f32 %v716, %v755
    %v757 = vrcp.pop %v741
    %v758 = vmul.f32 %v718, %v757
    %v759 = vrcp.pop %v744
    %v760 = vmul.f32 %v720, %v759
    %v761 = vpack.c.bf16 %v746, %v746
    %v762 = vpack.c.bf16 %v748, %v748
    %v763 = vpack.c.bf16 %v750, %v750
    %v764 = vpack.c.bf16 %v752, %v752
    %v765 = vpack.c.bf16 %v754, %v754
    %v766 = vpack.c.bf16 %v756, %v756
    %v767 = vpack.c.bf16 %v758, %v758
    %v768 = vpack.c.bf16 %v760, %v760
    %769 = vrot.lane.b32.xlu0 %v270, 64
    %v770 = vpop.permute.xlu0 %769
    %v772 = vsel %vm280, %v761, 0
    %vm774 = vcmask 1043456
    %v776 = vsel %vm774, %v770, 0
    %778 = vmatprep.subr.bf16.mxu0 0
    %779 = vmatpush1.bf16.msra.mxu0 %v776
    %780 = vmatprep.subr.bf16.mxu0 0
    %781 = vmatpush1.bf16.msra.mxu0 0
    %782 = vmatprep.subr.bf16.mxu0 0
    %783 = vmatpush1.bf16.msra.mxu0 0
    %784 = vmatprep.subr.bf16.mxu0 0
    %785 = vmatpush1.bf16.msra.mxu0 0
    %786 = vmatprep.subr.bf16.mxu0 0
    %787 = vmatpush1.bf16.msra.mxu0 0
    %788 = vmatprep.subr.bf16.mxu0 0
    %789 = vmatpush1.bf16.msra.mxu0 0
    %790 = vmatprep.subr.bf16.mxu0 0
    %791 = vmatpush1.bf16.msra.mxu0 0
    %792 = vmatprep.subr.bf16.mxu0 0
    %793 = vmatpush1.bf16.msra.mxu0 0
    %794 = vmatprep.subr.bf16.mxu0 0
    %795 = vmatpush1.bf16.msra.mxu0 0
    %796 = vmatprep.subr.bf16.mxu0 0
    %797 = vmatpush1.bf16.msra.mxu0 0
    %798 = vmatprep.subr.bf16.mxu0 0
    %799 = vmatpush1.bf16.msra.mxu0 0
    %800 = vmatprep.subr.bf16.mxu0 0
    %801 = vmatpush1.bf16.msra.mxu0 0
    %802 = vmatprep.subr.bf16.mxu0 0
    %803 = vmatpush1.bf16.msra.mxu0 0
    %804 = vmatprep.subr.bf16.mxu0 0
    %805 = vmatpush1.bf16.msra.mxu0 0
    %806 = vmatprep.subr.bf16.mxu0 0
    %807 = vmatpush1.bf16.msra.mxu0 0
    %808 = vmatprep.subr.bf16.mxu0 0
    %809 = vmatpush1.bf16.msra.mxu0 0
    %810 = vmatprep.mubr.bf16.mxu0 0
    %811 = vmatmul.mubr.bf16.gmra.mrb[0].mxu0 %v772
    %v812 = vpop.f32.mrb[0].mxu0
    %v813 = vadd.f32 0.0, %v812
    %v814 = vpop.f32.mrb[0].mxu0
    %v815 = vpop.f32.mrb[0].mxu0
    %v816 = vpop.f32.mrb[0].mxu0
    %817 = vdwg.mxu0
    %818 = vrot.lane.b32.xlu0 %v271, 64
    %v819 = vpop.permute.xlu0 %818
    %v821 = vsel %vm280, %v762, 0
    %v824 = vsel %vm774, %v819, 0
    %826 = vmatprep.subr.bf16.mxu0 0
    %827 = vmatpush1.bf16.msra.mxu0 %v824
    %828 = vmatprep.subr.bf16.mxu0 0
    %829 = vmatpush1.bf16.msra.mxu0 0
    %830 = vmatprep.subr.bf16.mxu0 0
    %831 = vmatpush1.bf16.msra.mxu0 0
    %832 = vmatprep.subr.bf16.mxu0 0
    %833 = vmatpush1.bf16.msra.mxu0 0
    %834 = vmatprep.subr.bf16.mxu0 0
    %835 = vmatpush1.bf16.msra.mxu0 0
    %836 = vmatprep.subr.bf16.mxu0 0
    %837 = vmatpush1.bf16.msra.mxu0 0
    %838 = vmatprep.subr.bf16.mxu0 0
    %839 = vmatpush1.bf16.msra.mxu0 0
    %840 = vmatprep.subr.bf16.mxu0 0
    %841 = vmatpush1.bf16.msra.mxu0 0
    %842 = vmatprep.subr.bf16.mxu0 0
    %843 = vmatpush1.bf16.msra.mxu0 0
    %844 = vmatprep.subr.bf16.mxu0 0
    %845 = vmatpush1.bf16.msra.mxu0 0
    %846 = vmatprep.subr.bf16.mxu0 0
    %847 = vmatpush1.bf16.msra.mxu0 0
    %848 = vmatprep.subr.bf16.mxu0 0
    %849 = vmatpush1.bf16.msra.mxu0 0
    %850 = vmatprep.subr.bf16.mxu0 0
    %851 = vmatpush1.bf16.msra.mxu0 0
    %852 = vmatprep.subr.bf16.mxu0 0
    %853 = vmatpush1.bf16.msra.mxu0 0
    %854 = vmatprep.subr.bf16.mxu0 0
    %855 = vmatpush1.bf16.msra.mxu0 0
    %856 = vmatprep.subr.bf16.mxu0 0
    %857 = vmatpush1.bf16.msra.mxu0 0
    %858 = vmatprep.mubr.bf16.mxu0 0
    %859 = vmatmul.mubr.bf16.gmra.mrb[0].mxu0 %v821
    %v860 = vpop.f32.mrb[0].mxu0
    %v861 = vadd.f32 0.0, %v860
    %v862 = vpop.f32.mrb[0].mxu0
    %v863 = vpop.f32.mrb[0].mxu0
    %v864 = vpop.f32.mrb[0].mxu0
    %865 = vdwg.mxu0
    %866 = vrot.lane.b32.xlu0 %v272, 64
    %v867 = vpop.permute.xlu0 %866
    %v869 = vsel %vm280, %v763, 0
    %v872 = vsel %vm774, %v867, 0
    %874 = vmatprep.subr.bf16.mxu0 0
    %875 = vmatpush1.bf16.msra.mxu0 %v872
    %876 = vmatprep.subr.bf16.mxu0 0
    %877 = vmatpush1.bf16.msra.mxu0 0
    %878 = vmatprep.subr.bf16.mxu0 0
    %879 = vmatpush1.bf16.msra.mxu0 0
    %880 = vmatprep.subr.bf16.mxu0 0
    %881 = vmatpush1.bf16.msra.mxu0 0
    %882 = vmatprep.subr.bf16.mxu0 0
    %883 = vmatpush1.bf16.msra.mxu0 0
    %884 = vmatprep.subr.bf16.mxu0 0
    %885 = vmatpush1.bf16.msra.mxu0 0
    %886 = vmatprep.subr.bf16.mxu0 0
    %887 = vmatpush1.bf16.msra.mxu0 0
    %888 = vmatprep.subr.bf16.mxu0 0
    %889 = vmatpush1.bf16.msra.mxu0 0
    %890 = vmatprep.subr.bf16.mxu0 0
    %891 = vmatpush1.bf16.msra.mxu0 0
    %892 = vmatprep.subr.bf16.mxu0 0
    %893 = vmatpush1.bf16.msra.mxu0 0
    %894 = vmatprep.subr.bf16.mxu0 0
    %895 = vmatpush1.bf16.msra.mxu0 0
    %896 = vmatprep.subr.bf16.mxu0 0
    %897 = vmatpush1.bf16.msra.mxu0 0
    %898 = vmatprep.subr.bf16.mxu0 0
    %899 = vmatpush1.bf16.msra.mxu0 0
    %900 = vmatprep.subr.bf16.mxu0 0
    %901 = vmatpush1.bf16.msra.mxu0 0
    %902 = vmatprep.subr.bf16.mxu0 0
    %903 = vmatpush1.bf16.msra.mxu0 0
    %904 = vmatprep.subr.bf16.mxu0 0
    %905 = vmatpush1.bf16.msra.mxu0 0
    %906 = vmatprep.mubr.bf16.mxu0 0
    %907 = vmatmul.mubr.bf16.gmra.mrb[0].mxu0 %v869
    %v908 = vpop.f32.mrb[0].mxu0
    %v909 = vadd.f32 0.0, %v908
    %v910 = vpop.f32.mrb[0].mxu0
    %v911 = vpop.f32.mrb[0].mxu0
    %v912 = vpop.f32.mrb[0].mxu0
    %913 = vdwg.mxu0
    %914 = vrot.lane.b32.xlu0 %v273, 64
    %v915 = vpop.permute.xlu0 %914
    %v917 = vsel %vm280, %v764, 0
    %v920 = vsel %vm774, %v915, 0
    %922 = vmatprep.subr.bf16.mxu0 0
    %923 = vmatpush1.bf16.msra.mxu0 %v920
    %924 = vmatprep.subr.bf16.mxu0 0
    %925 = vmatpush1.bf16.msra.mxu0 0
    %926 = vmatprep.subr.bf16.mxu0 0
    %927 = vmatpush1.bf16.msra.mxu0 0
    %928 = vmatprep.subr.bf16.mxu0 0
    %929 = vmatpush1.bf16.msra.mxu0 0
    %930 = vmatprep.subr.bf16.mxu0 0
    %931 = vmatpush1.bf16.msra.mxu0 0
    %932 = vmatprep.subr.bf16.mxu0 0
    %933 = vmatpush1.bf16.msra.mxu0 0
    %934 = vmatprep.subr.bf16.mxu0 0
    %935 = vmatpush1.bf16.msra.mxu0 0
    %936 = vmatprep.subr.bf16.mxu0 0
    %937 = vmatpush1.bf16.msra.mxu0 0
    %938 = vmatprep.subr.bf16.mxu0 0
    %939 = vmatpush1.bf16.msra.mxu0 0
    %940 = vmatprep.subr.bf16.mxu0 0
    %941 = vmatpush1.bf16.msra.mxu0 0
    %942 = vmatprep.subr.bf16.mxu0 0
    %943 = vmatpush1.bf16.msra.mxu0 0
    %944 = vmatprep.subr.bf16.mxu0 0
    %945 = vmatpush1.bf16.msra.mxu0 0
    %946 = vmatprep.subr.bf16.mxu0 0
    %947 = vmatpush1.bf16.msra.mxu0 0
    %948 = vmatprep.subr.bf16.mxu0 0
    %949 = vmatpush1.bf16.msra.mxu0 0
    %950 = vmatprep.subr.bf16.mxu0 0
    %951 = vmatpush1.bf16.msra.mxu0 0
    %952 = vmatprep.subr.bf16.mxu0 0
    %953 = vmatpush1.bf16.msra.mxu0 0
    %954 = vmatprep.mubr.bf16.mxu0 0
    %955 = vmatmul.mubr.bf16.gmra.mrb[0].mxu0 %v917
    %v956 = vpop.f32.mrb[0].mxu0
    %v957 = vadd.f32 0.0, %v956
    %v958 = vpop.f32.mrb[0].mxu0
    %v959 = vpop.f32.mrb[0].mxu0
    %v960 = vpop.f32.mrb[0].mxu0
    %961 = vdwg.mxu0
    %962 = vrot.lane.b32.xlu0 %v274, 64
    %v963 = vpop.permute.xlu0 %962
    %v965 = vsel %vm280, %v765, 0
    %v968 = vsel %vm774, %v963, 0
    %970 = vmatprep.subr.bf16.mxu0 0
    %971 = vmatpush1.bf16.msra.mxu0 %v968
    %972 = vmatprep.subr.bf16.mxu0 0
    %973 = vmatpush1.bf16.msra.mxu0 0
    %974 = vmatprep.subr.bf16.mxu0 0
    %975 = vmatpush1.bf16.msra.mxu0 0
    %976 = vmatprep.subr.bf16.mxu0 0
    %977 = vmatpush1.bf16.msra.mxu0 0
    %978 = vmatprep.subr.bf16.mxu0 0
    %979 = vmatpush1.bf16.msra.mxu0 0
    %980 = vmatprep.subr.bf16.mxu0 0
    %981 = vmatpush1.bf16.msra.mxu0 0
    %982 = vmatprep.subr.bf16.mxu0 0
    %983 = vmatpush1.bf16.msra.mxu0 0
    %984 = vmatprep.subr.bf16.mxu0 0
    %985 = vmatpush1.bf16.msra.mxu0 0
    %986 = vmatprep.subr.bf16.mxu0 0
    %987 = vmatpush1.bf16.msra.mxu0 0
    %988 = vmatprep.subr.bf16.mxu0 0
    %989 = vmatpush1.bf16.msra.mxu0 0
    %990 = vmatprep.subr.bf16.mxu0 0
    %991 = vmatpush1.bf16.msra.mxu0 0
    %992 = vmatprep.subr.bf16.mxu0 0
    %993 = vmatpush1.bf16.msra.mxu0 0
    %994 = vmatprep.subr.bf16.mxu0 0
    %995 = vmatpush1.bf16.msra.mxu0 0
    %996 = vmatprep.subr.bf16.mxu0 0
    %997 = vmatpush1.bf16.msra.mxu0 0
    %998 = vmatprep.subr.bf16.mxu0 0
    %999 = vmatpush1.bf16.msra.mxu0 0
    %1000 = vmatprep.subr.bf16.mxu0 0
    %1001 = vmatpush1.bf16.msra.mxu0 0
    %1002 = vmatprep.mubr.bf16.mxu0 0
    %1003 = vmatmul.mubr.bf16.gmra.mrb[0].mxu0 %v965
    %v1004 = vpop.f32.mrb[0].mxu0
    %v1005 = vadd.f32 0.0, %v1004
    %v1006 = vpop.f32.mrb[0].mxu0
    %v1007 = vpop.f32.mrb[0].mxu0
    %v1008 = vpop.f32.mrb[0].mxu0
    %1009 = vdwg.mxu0
    %1010 = vrot.lane.b32.xlu0 %v275, 64
    %v1011 = vpop.permute.xlu0 %1010
    %v1013 = vsel %vm280, %v766, 0
    %v1016 = vsel %vm774, %v1011, 0
    %1018 = vmatprep.subr.bf16.mxu0 0
    %1019 = vmatpush1.bf16.msra.mxu0 %v1016
    %1020 = vmatprep.subr.bf16.mxu0 0
    %1021 = vmatpush1.bf16.msra.mxu0 0
    %1022 = vmatprep.subr.bf16.mxu0 0
    %1023 = vmatpush1.bf16.msra.mxu0 0
    %1024 = vmatprep.subr.bf16.mxu0 0
    %1025 = vmatpush1.bf16.msra.mxu0 0
    %1026 = vmatprep.subr.bf16.mxu0 0
    %1027 = vmatpush1.bf16.msra.mxu0 0
    %1028 = vmatprep.subr.bf16.mxu0 0
    %1029 = vmatpush1.bf16.msra.mxu0 0
    %1030 = vmatprep.subr.bf16.mxu0 0
    %1031 = vmatpush1.bf16.msra.mxu0 0
    %1032 = vmatprep.subr.bf16.mxu0 0
    %1033 = vmatpush1.bf16.msra.mxu0 0
    %1034 = vmatprep.subr.bf16.mxu0 0
    %1035 = vmatpush1.bf16.msra.mxu0 0
    %1036 = vmatprep.subr.bf16.mxu0 0
    %1037 = vmatpush1.bf16.msra.mxu0 0
    %1038 = vmatprep.subr.bf16.mxu0 0
    %1039 = vmatpush1.bf16.msra.mxu0 0
    %1040 = vmatprep.subr.bf16.mxu0 0
    %1041 = vmatpush1.bf16.msra.mxu0 0
    %1042 = vmatprep.subr.bf16.mxu0 0
    %1043 = vmatpush1.bf16.msra.mxu0 0
    %1044 = vmatprep.subr.bf16.mxu0 0
    %1045 = vmatpush1.bf16.msra.mxu0 0
    %1046 = vmatprep.subr.bf16.mxu0 0
    %1047 = vmatpush1.bf16.msra.mxu0 0
    %1048 = vmatprep.subr.bf16.mxu0 0
    %1049 = vmatpush1.bf16.msra.mxu0 0
    %1050 = vmatprep.mubr.bf16.mxu0 0
    %1051 = vmatmul.mubr.bf16.gmra.mrb[0].mxu0 %v1013
    %v1052 = vpop.f32.mrb[0].mxu0
    %v1053 = vadd.f32 0.0, %v1052
    %v1054 = vpop.f32.mrb[0].mxu0
    %v1055 = vpop.f32.mrb[0].mxu0
    %v1056 = vpop.f32.mrb[0].mxu0
    %1057 = vdwg.mxu0
    %1058 = vrot.lane.b32.xlu0 %v276, 64
    %v1059 = vpop.permute.xlu0 %1058
    %v1061 = vsel %vm280, %v767, 0
    %v1064 = vsel %vm774, %v1059, 0
    %1066 = vmatprep.subr.bf16.mxu0 0
    %1067 = vmatpush1.bf16.msra.mxu0 %v1064
    %1068 = vmatprep.subr.bf16.mxu0 0
    %1069 = vmatpush1.bf16.msra.mxu0 0
    %1070 = vmatprep.subr.bf16.mxu0 0
    %1071 = vmatpush1.bf16.msra.mxu0 0
    %1072 = vmatprep.subr.bf16.mxu0 0
    %1073 = vmatpush1.bf16.msra.mxu0 0
    %1074 = vmatprep.subr.bf16.mxu0 0
    %1075 = vmatpush1.bf16.msra.mxu0 0
    %1076 = vmatprep.subr.bf16.mxu0 0
    %1077 = vmatpush1.bf16.msra.mxu0 0
    %1078 = vmatprep.subr.bf16.mxu0 0
    %1079 = vmatpush1.bf16.msra.mxu0 0
    %1080 = vmatprep.subr.bf16.mxu0 0
    %1081 = vmatpush1.bf16.msra.mxu0 0
    %1082 = vmatprep.subr.bf16.mxu0 0
    %1083 = vmatpush1.bf16.msra.mxu0 0
    %1084 = vmatprep.subr.bf16.mxu0 0
    %1085 = vmatpush1.bf16.msra.mxu0 0
    %1086 = vmatprep.subr.bf16.mxu0 0
    %1087 = vmatpush1.bf16.msra.mxu0 0
    %1088 = vmatprep.subr.bf16.mxu0 0
    %1089 = vmatpush1.bf16.msra.mxu0 0
    %1090 = vmatprep.subr.bf16.mxu0 0
    %1091 = vmatpush1.bf16.msra.mxu0 0
    %1092 = vmatprep.subr.bf16.mxu0 0
    %1093 = vmatpush1.bf16.msra.mxu0 0
    %1094 = vmatprep.subr.bf16.mxu0 0
    %1095 = vmatpush1.bf16.msra.mxu0 0
    %1096 = vmatprep.subr.bf16.mxu0 0
    %1097 = vmatpush1.bf16.msra.mxu0 0
    %1098 = vmatprep.mubr.bf16.mxu0 0
    %1099 = vmatmul.mubr.bf16.gmra.mrb[0].mxu0 %v1061
    %v1100 = vpop.f32.mrb[0].mxu0
    %v1101 = vadd.f32 0.0, %v1100
    %v1102 = vpop.f32.mrb[0].mxu0
    %v1103 = vpop.f32.mrb[0].mxu0
    %v1104 = vpop.f32.mrb[0].mxu0
    %1105 = vdwg.mxu0
    %1106 = vrot.lane.b32.xlu0 %v277, 64
    %v1107 = vpop.permute.xlu0 %1106
    %v1109 = vsel %vm280, %v768, 0
    %v1112 = vsel %vm774, %v1107, 0
    %1114 = vmatprep.subr.bf16.mxu0 0
    %1115 = vmatpush1.bf16.msra.mxu0 %v1112
    %1116 = vmatprep.subr.bf16.mxu0 0
    %1117 = vmatpush1.bf16.msra.mxu0 0
    %1118 = vmatprep.subr.bf16.mxu0 0
    %1119 = vmatpush1.bf16.msra.mxu0 0
    %1120 = vmatprep.subr.bf16.mxu0 0
    %1121 = vmatpush1.bf16.msra.mxu0 0
    %1122 = vmatprep.subr.bf16.mxu0 0
    %1123 = vmatpush1.bf16.msra.mxu0 0
    %1124 = vmatprep.subr.bf16.mxu0 0
    %1125 = vmatpush1.bf16.msra.mxu0 0
    %1126 = vmatprep.subr.bf16.mxu0 0
    %1127 = vmatpush1.bf16.msra.mxu0 0
    %1128 = vmatprep.subr.bf16.mxu0 0
    %1129 = vmatpush1.bf16.msra.mxu0 0
    %1130 = vmatprep.subr.bf16.mxu0 0
    %1131 = vmatpush1.bf16.msra.mxu0 0
    %1132 = vmatprep.subr.bf16.mxu0 0
    %1133 = vmatpush1.bf16.msra.mxu0 0
    %1134 = vmatprep.subr.bf16.mxu0 0
    %1135 = vmatpush1.bf16.msra.mxu0 0
    %1136 = vmatprep.subr.bf16.mxu0 0
    %1137 = vmatpush1.bf16.msra.mxu0 0
    %1138 = vmatprep.subr.bf16.mxu0 0
    %1139 = vmatpush1.bf16.msra.mxu0 0
    %1140 = vmatprep.subr.bf16.mxu0 0
    %1141 = vmatpush1.bf16.msra.mxu0 0
    %1142 = vmatprep.subr.bf16.mxu0 0
    %1143 = vmatpush1.bf16.msra.mxu0 0
    %1144 = vmatprep.subr.bf16.mxu0 0
    %1145 = vmatpush1.bf16.msra.mxu0 0
    %1146 = vmatprep.mubr.bf16.mxu0 0
    %1147 = vmatmul.mubr.bf16.gmra.mrb[0].mxu0 %v1109
    %v1148 = vpop.f32.mrb[0].mxu0
    %v1149 = vadd.f32 0.0, %v1148
    %v1150 = vpop.f32.mrb[0].mxu0
    %v1151 = vpop.f32.mrb[0].mxu0
    %v1152 = vpop.f32.mrb[0].mxu0
    %1153 = vdwg.mxu0
    %1156 = vrot.lane.b32.xlu0 %v909, 8
    %v1157 = vpop.permute.xlu0 %1156
    %1158 = vrot.lane.b32.xlu0 %v957, 8
    %v1159 = vpop.permute.xlu0 %1158
    %1164 = vrot.lane.b32.xlu0 %v1005, 16
    %v1165 = vpop.permute.xlu0 %1164
    %1166 = vrot.lane.b32.xlu0 %v1053, 16
    %v1167 = vpop.permute.xlu0 %1166
    %1172 = vrot.lane.b32.xlu0 %v1101, 24
    %v1173 = vpop.permute.xlu0 %1172
    %1174 = vrot.lane.b32.xlu0 %v1149, 24
    %v1175 = vpop.permute.xlu0 %1174
    %v1178 = vsel %vm280, %v813, %v1157
    %v1179 = vsel %vm280, %v861, %v1159
    %vm1180 = vcmask 130048
    %v1181 = vsel %vm1180, %v1178, %v1165
    %v1182 = vsel %vm1180, %v1179, %v1167
    %vm1183 = vcmask 195584
    %v1184 = vsel %vm1183, %v1181, %v1173
    %v1185 = vsel %vm1183, %v1182, %v1175
    %v1186 = vpack.c.bf16 %v1185, %v1184
    %v1187 = vlaneseq
    %v1188 = vshrl.u32 %v1187, 7
    %v1189 = vsub.s32 2, %v1188
    %v1190 = vrot.slane %v156, %v1189
    %1191 = vrot.lane.b32.xlu0 %v206, 32
    %v1192 = vpop.permute.xlu0 %1191
    %1193 = vrot.lane.b32.xlu0 %v207, 32
    %v1194 = vpop.permute.xlu0 %1193
    %v1198 = vsel %vm157, %v1186, 0
    %1200 = vmatprep.subr.bf16.mxu0 0
    %1201 = vmatpush1.bf16.msra.mxu0 %v1192
    %1202 = vmatprep.subr.bf16.mxu0 0
    %1203 = vmatpush1.bf16.msra.mxu0 %v1194
    %1204 = vmatprep.subr.bf16.mxu0 0
    %1205 = vmatpush1.bf16.msra.mxu0 0
    %1206 = vmatprep.subr.bf16.mxu0 0
    %1207 = vmatpush1.bf16.msra.mxu0 0
    %1208 = vmatprep.subr.bf16.mxu0 0
    %1209 = vmatpush1.bf16.msra.mxu0 0
    %1210 = vmatprep.subr.bf16.mxu0 0
    %1211 = vmatpush1.bf16.msra.mxu0 0
    %1212 = vmatprep.subr.bf16.mxu0 0
    %1213 = vmatpush1.bf16.msra.mxu0 0
    %1214 = vmatprep.subr.bf16.mxu0 0
    %1215 = vmatpush1.bf16.msra.mxu0 0
    %1216 = vmatprep.subr.bf16.mxu0 0
    %1217 = vmatpush1.bf16.msra.mxu0 0
    %1218 = vmatprep.subr.bf16.mxu0 0
    %1219 = vmatpush1.bf16.msra.mxu0 0
    %1220 = vmatprep.subr.bf16.mxu0 0
    %1221 = vmatpush1.bf16.msra.mxu0 0
    %1222 = vmatprep.subr.bf16.mxu0 0
    %1223 = vmatpush1.bf16.msra.mxu0 0
    %1224 = vmatprep.subr.bf16.mxu0 0
    %1225 = vmatpush1.bf16.msra.mxu0 0
    %1226 = vmatprep.subr.bf16.mxu0 0
    %1227 = vmatpush1.bf16.msra.mxu0 0
    %1228 = vmatprep.subr.bf16.mxu0 0
    %1229 = vmatpush1.bf16.msra.mxu0 0
    %1230 = vmatprep.subr.bf16.mxu0 0
    %1231 = vmatpush1.bf16.msra.mxu0 0
    %1232 = vmatprep.mubr.bf16.mxu0 0
    %1233 = vmatmul.mubr.bf16.gmra.mrb[0].mxu0 %v1198
    %v1234 = vpop.f32.mrb[0].mxu0
    %v1235 = vadd.f32 %v1190, %v1234
    %v1236 = vpop.f32.mrb[0].mxu0
    %v1237 = vpop.f32.mrb[0].mxu0
    %v1238 = vadd.f32 %v1190, %v1237
    %v1239 = vpop.f32.mrb[0].mxu0
    %1240 = vdwg.mxu0
    %v1241 = vadd.f32 %v125, %v1235
    %v1242 = vadd.f32 %v130, %v1238
    %v1243 = vsel %vm157, %v1241, 0.0
    %1244 = vadd.xlane.f32.xlu0 %v1243
    %v1245 = vpop.xlane.xlu0 %1244
    %v1246 = vsel %vm157, %v1242, 0.0
    %1247 = vadd.xlane.f32.xlu0 %v1246
    %v1248 = vpop.xlane.xlu0 %1247
    %v1249 = vmul.f32 %v1245, %v164
    %v1250 = vmul.f32 %v1248, %v164
    %v1251 = vsub.f32 %v1241, %v1249
    %v1252 = vsub.f32 %v1242, %v1250
    %v1253 = vmul.f32 %v1251, %v1251
    %v1254 = vmul.f32 %v1252, %v1252
    %v1255 = vsel %vm157, %v1253, 0.0
    %1256 = vadd.xlane.f32.xlu0 %v1255
    %v1257 = vpop.xlane.xlu0 %1256
    %v1258 = vsel %vm157, %v1254, 0.0
    %1259 = vadd.xlane.f32.xlu0 %v1258
    %v1260 = vpop.xlane.xlu0 %1259
    %v1261 = vmul.f32 %v1257, %v164
    %v1262 = vmul.f32 %v1260, %v164
    %v1263 = vadd.f32 %v1261, 1e-05
    %v1264 = vadd.f32 %v1262, 1e-05
    %v1265 = vrsqrt.pop %v1263
    %v1266 = vrsqrt.pop %v1264
    %v1267 = vmul.f32 %v1251, %v1265
    %v1268 = vmul.f32 %v1252, %v1266
    %v1269 = vlaneseq
    %v1270 = vshrl.u32 %v1269, 7
    %v1271 = vsub.s32 5, %v1270
    %v1272 = vrot.slane %v156, %v1271
    %v1273 = vmul.f32 %v1267, %v1272
    %v1274 = vmul.f32 %v1268, %v1272
    %v1275 = vlaneseq
    %v1276 = vshrl.u32 %v1275, 7
    %v1277 = vsub.s32 6, %v1276
    %v1278 = vrot.slane %v156, %v1277
    %v1279 = vadd.f32 %v1273, %v1278
    %v1280 = vadd.f32 %v1274, %v1278
    %v1281 = vpack.c.bf16 %v1280, %v1279
    %v1282 = vlaneseq
    %v1283 = vshrl.u32 %v1282, 7
    %v1284 = vsub.s32 3, %v1283
    %v1285 = vrot.slane %v156, %v1284
    %v1286 = vunpack.c.h.b16 %v136
    %v1287 = vunpack.c.h.b16 %v137
    %v1288 = vunpack.c.h.b16 %v138
    %v1289 = vunpack.c.h.b16 %v139
    %v1290 = vpack.c.b16 %v1287, %v1286
    %v1291 = vpack.c.b16 %v1289, %v1288
    %v1295 = vsel %vm157, %v1281, 0
    %1297 = vmatprep.subr.bf16.mxu0 0
    %1298 = vmatpush1.bf16.msra.mxu0 %v1290
    %1299 = vmatprep.subr.bf16.mxu0 0
    %1300 = vmatpush1.bf16.msra.mxu0 %v1291
    %1301 = vmatprep.subr.bf16.mxu0 0
    %1302 = vmatpush1.bf16.msra.mxu0 0
    %1303 = vmatprep.subr.bf16.mxu0 0
    %1304 = vmatpush1.bf16.msra.mxu0 0
    %1305 = vmatprep.subr.bf16.mxu0 0
    %1306 = vmatpush1.bf16.msra.mxu0 0
    %1307 = vmatprep.subr.bf16.mxu0 0
    %1308 = vmatpush1.bf16.msra.mxu0 0
    %1309 = vmatprep.subr.bf16.mxu0 0
    %1310 = vmatpush1.bf16.msra.mxu0 0
    %1311 = vmatprep.subr.bf16.mxu0 0
    %1312 = vmatpush1.bf16.msra.mxu0 0
    %1313 = vmatprep.subr.bf16.mxu0 0
    %1314 = vmatpush1.bf16.msra.mxu0 0
    %1315 = vmatprep.subr.bf16.mxu0 0
    %1316 = vmatpush1.bf16.msra.mxu0 0
    %1317 = vmatprep.subr.bf16.mxu0 0
    %1318 = vmatpush1.bf16.msra.mxu0 0
    %1319 = vmatprep.subr.bf16.mxu0 0
    %1320 = vmatpush1.bf16.msra.mxu0 0
    %1321 = vmatprep.subr.bf16.mxu0 0
    %1322 = vmatpush1.bf16.msra.mxu0 0
    %1323 = vmatprep.subr.bf16.mxu0 0
    %1324 = vmatpush1.bf16.msra.mxu0 0
    %1325 = vmatprep.subr.bf16.mxu0 0
    %1326 = vmatpush1.bf16.msra.mxu0 0
    %1327 = vmatprep.subr.bf16.mxu0 0
    %1328 = vmatpush1.bf16.msra.mxu0 0
    %1329 = vmatprep.mubr.bf16.mxu0 0
    %1330 = vmatmul.mubr.bf16.gmra.mrb[0].mxu0 %v1295
    %v1331 = vpop.f32.mrb[0].mxu0
    %v1332 = vadd.f32 %v1285, %v1331
    %v1333 = vpop.f32.mrb[0].mxu0
    %v1334 = vpop.f32.mrb[0].mxu0
    %v1335 = vadd.f32 %v1285, %v1334
    %v1336 = vpop.f32.mrb[0].mxu0
    %1337 = vdwg.mxu0
    %v1338 = vmax.f32 %v1332, 0.0
    %v1339 = vmax.f32 %v1335, 0.0
    %v1340 = vpack.c.bf16 %v1339, %v1338
    %v1341 = vlaneseq
    %v1342 = vshrl.u32 %v1341, 7
    %v1343 = vsub.s32 4, %v1342
    %v1344 = vrot.slane %v156, %v1343
    %v1361 = vunpack.c.l.b16 %v140
    %v1362 = vunpack.c.l.b16 %v141
    %v1363 = vunpack.c.l.b16 %v142
    %v1364 = vunpack.c.l.b16 %v143
    %v1365 = vunpack.c.l.b16 %v144
    %v1366 = vunpack.c.l.b16 %v145
    %v1367 = vunpack.c.l.b16 %v146
    %v1368 = vunpack.c.l.b16 %v147
    %v1369 = vunpack.c.l.b16 %v148
    %v1370 = vunpack.c.l.b16 %v149
    %v1371 = vunpack.c.l.b16 %v150
    %v1372 = vunpack.c.l.b16 %v151
    %v1373 = vunpack.c.l.b16 %v152
    %v1374 = vunpack.c.l.b16 %v153
    %v1375 = vunpack.c.l.b16 %v154
    %v1376 = vunpack.c.l.b16 %v155
    %v1377 = vpack.c.b16 %v1362, %v1361
    %v1378 = vpack.c.b16 %v1364, %v1363
    %v1379 = vpack.c.b16 %v1366, %v1365
    %v1380 = vpack.c.b16 %v1368, %v1367
    %v1381 = vpack.c.b16 %v1370, %v1369
    %v1382 = vpack.c.b16 %v1372, %v1371
    %v1383 = vpack.c.b16 %v1374, %v1373
    %v1384 = vpack.c.b16 %v1376, %v1375
    %1393 = vmatprep.subr.bf16.mxu0 0
    %1394 = vmatpush1.bf16.msra.mxu0 %v1377
    %1395 = vmatprep.subr.bf16.mxu0 0
    %1396 = vmatpush1.bf16.msra.mxu0 %v1378
    %1397 = vmatprep.subr.bf16.mxu0 0
    %1398 = vmatpush1.bf16.msra.mxu0 %v1379
    %1399 = vmatprep.subr.bf16.mxu0 0
    %1400 = vmatpush1.bf16.msra.mxu0 %v1380
    %1401 = vmatprep.subr.bf16.mxu0 0
    %1402 = vmatpush1.bf16.msra.mxu0 %v1381
    %1403 = vmatprep.subr.bf16.mxu0 0
    %1404 = vmatpush1.bf16.msra.mxu0 %v1382
    %1405 = vmatprep.subr.bf16.mxu0 0
    %1406 = vmatpush1.bf16.msra.mxu0 %v1383
    %1407 = vmatprep.subr.bf16.mxu0 0
    %1408 = vmatpush1.bf16.msra.mxu0 %v1384
    %1409 = vmatprep.subr.bf16.mxu0 0
    %1410 = vmatpush1.bf16.msra.mxu0 0
    %1411 = vmatprep.subr.bf16.mxu0 0
    %1412 = vmatpush1.bf16.msra.mxu0 0
    %1413 = vmatprep.subr.bf16.mxu0 0
    %1414 = vmatpush1.bf16.msra.mxu0 0
    %1415 = vmatprep.subr.bf16.mxu0 0
    %1416 = vmatpush1.bf16.msra.mxu0 0
    %1417 = vmatprep.subr.bf16.mxu0 0
    %1418 = vmatpush1.bf16.msra.mxu0 0
    %1419 = vmatprep.subr.bf16.mxu0 0
    %1420 = vmatpush1.bf16.msra.mxu0 0
    %1421 = vmatprep.subr.bf16.mxu0 0
    %1422 = vmatpush1.bf16.msra.mxu0 0
    %1423 = vmatprep.subr.bf16.mxu0 0
    %1424 = vmatpush1.bf16.msra.mxu0 0
    %1425 = vmatprep.mubr.bf16.mxu0 0
    %1426 = vmatmul.mubr.bf16.gmra.mrb[0].mxu0 %v1340
    %v1427 = vpop.f32.mrb[0].mxu0
    %v1428 = vadd.f32 %v1344, %v1427
    %v1429 = vpop.f32.mrb[0].mxu0
    %v1430 = vpop.f32.mrb[0].mxu0
    %v1431 = vadd.f32 %v1344, %v1430
    %v1432 = vpop.f32.mrb[0].mxu0
    %1433 = vdwg.mxu0
    %v1434 = vadd.f32 %v1241, %v1428
    %v1435 = vadd.f32 %v1242, %v1431
    %s1436 = scalar_lea.vmem %s3, 32
    %v1437 = vld [vmem:[%s1436] sm:$0xff]
    %v1438 = vld [vmem:[%s1436 + $0x8] sm:$0xff]
    %v1439 = vld [vmem:[%s1436 + $0x10] sm:$0xff]
    %v1440 = vld [vmem:[%s1436 + $0x18] sm:$0xff]
    %s1441 = scalar_lea.vmem %s4, 64
    %v1442 = vld [vmem:[%s1441] sm:$0xf]
    %v1443 = vld [vmem:[%s1441 + $0x4] sm:$0xf]
    %v1444 = vld [vmem:[%s1441 + $0x8] sm:$0xf]
    %v1445 = vld [vmem:[%s1441 + $0xc] sm:$0xf]
    %v1446 = vld [vmem:[%s1441 + $0x10] sm:$0xf]
    %v1447 = vld [vmem:[%s1441 + $0x14] sm:$0xf]
    %v1448 = vld [vmem:[%s1441 + $0x18] sm:$0xf]
    %v1449 = vld [vmem:[%s1441 + $0x1c] sm:$0xf]
    %v1450 = vld [vmem:[%s1441 + $0x20] sm:$0xf]
    %v1451 = vld [vmem:[%s1441 + $0x24] sm:$0xf]
    %v1452 = vld [vmem:[%s1441 + $0x28] sm:$0xf]
    %v1453 = vld [vmem:[%s1441 + $0x2c] sm:$0xf]
    %v1454 = vld [vmem:[%s1441 + $0x30] sm:$0xf]
    %v1455 = vld [vmem:[%s1441 + $0x34] sm:$0xf]
    %v1456 = vld [vmem:[%s1441 + $0x38] sm:$0xf]
    %v1457 = vld [vmem:[%s1441 + $0x3c] sm:$0xf]
    %s1458 = scalar_lea.vmem %s5, 8
    %v1459 = vld [vmem:[%s1458] sm:$0xff]
    %v1460 = vsel %vm157, %v1434, 0.0
    %1461 = vadd.xlane.f32.xlu0 %v1460
    %v1462 = vpop.xlane.xlu0 %1461
    %v1463 = vsel %vm157, %v1435, 0.0
    %1464 = vadd.xlane.f32.xlu0 %v1463
    %v1465 = vpop.xlane.xlu0 %1464
    %v1466 = vmul.f32 %v1462, %v164
    %v1467 = vmul.f32 %v1465, %v164
    %v1468 = vsub.f32 %v1434, %v1466
    %v1469 = vsub.f32 %v1435, %v1467
    %v1470 = vmul.f32 %v1468, %v1468
    %v1471 = vmul.f32 %v1469, %v1469
    %v1472 = vsel %vm157, %v1470, 0.0
    %1473 = vadd.xlane.f32.xlu0 %v1472
    %v1474 = vpop.xlane.xlu0 %1473
    %v1475 = vsel %vm157, %v1471, 0.0
    %1476 = vadd.xlane.f32.xlu0 %v1475
    %v1477 = vpop.xlane.xlu0 %1476
    %v1478 = vmul.f32 %v1474, %v164
    %v1479 = vmul.f32 %v1477, %v164
    %v1480 = vadd.f32 %v1478, 1e-05
    %v1481 = vadd.f32 %v1479, 1e-05
    %v1482 = vrsqrt.pop %v1480
    %v1483 = vrsqrt.pop %v1481
    %v1484 = vmul.f32 %v1468, %v1482
    %v1485 = vmul.f32 %v1469, %v1483
    %v1486 = vlaneseq
    %v1487 = vshrl.u32 %v1486, 7
    %v1488 = vsub.s32 0, %v1487
    %v1489 = vrot.slane %v1459, %v1488
    %v1490 = vmul.f32 %v1484, %v1489
    %v1491 = vmul.f32 %v1485, %v1489
    %v1492 = vlaneseq
    %v1493 = vshrl.u32 %v1492, 7
    %v1494 = vsub.s32 1, %v1493
    %v1495 = vrot.slane %v1459, %v1494
    %v1496 = vadd.f32 %v1490, %v1495
    %v1497 = vadd.f32 %v1491, %v1495
    %v1498 = vpack.c.bf16 %v1497, %v1496
    %v1503 = vunpack.c.l.b16 %v1437
    %v1504 = vunpack.c.l.b16 %v1438
    %v1505 = vunpack.c.l.b16 %v1439
    %v1506 = vunpack.c.l.b16 %v1440
    %v1507 = vpack.c.b16 %v1504, %v1503
    %v1508 = vpack.c.b16 %v1506, %v1505
    %v1512 = vsel %vm157, %v1498, 0
    %1514 = vmatprep.subr.bf16.mxu0 0
    %1515 = vmatpush1.bf16.msra.mxu0 %v1507
    %1516 = vmatprep.subr.bf16.mxu0 0
    %1517 = vmatpush1.bf16.msra.mxu0 %v1508
    %1518 = vmatprep.subr.bf16.mxu0 0
    %1519 = vmatpush1.bf16.msra.mxu0 0
    %1520 = vmatprep.subr.bf16.mxu0 0
    %1521 = vmatpush1.bf16.msra.mxu0 0
    %1522 = vmatprep.subr.bf16.mxu0 0
    %1523 = vmatpush1.bf16.msra.mxu0 0
    %1524 = vmatprep.subr.bf16.mxu0 0
    %1525 = vmatpush1.bf16.msra.mxu0 0
    %1526 = vmatprep.subr.bf16.mxu0 0
    %1527 = vmatpush1.bf16.msra.mxu0 0
    %1528 = vmatprep.subr.bf16.mxu0 0
    %1529 = vmatpush1.bf16.msra.mxu0 0
    %1530 = vmatprep.subr.bf16.mxu0 0
    %1531 = vmatpush1.bf16.msra.mxu0 0
    %1532 = vmatprep.subr.bf16.mxu0 0
    %1533 = vmatpush1.bf16.msra.mxu0 0
    %1534 = vmatprep.subr.bf16.mxu0 0
    %1535 = vmatpush1.bf16.msra.mxu0 0
    %1536 = vmatprep.subr.bf16.mxu0 0
    %1537 = vmatpush1.bf16.msra.mxu0 0
    %1538 = vmatprep.subr.bf16.mxu0 0
    %1539 = vmatpush1.bf16.msra.mxu0 0
    %1540 = vmatprep.subr.bf16.mxu0 0
    %1541 = vmatpush1.bf16.msra.mxu0 0
    %1542 = vmatprep.subr.bf16.mxu0 0
    %1543 = vmatpush1.bf16.msra.mxu0 0
    %1544 = vmatprep.subr.bf16.mxu0 0
    %1545 = vmatpush1.bf16.msra.mxu0 0
    %1546 = vmatprep.mubr.bf16.mxu0 0
    %1547 = vmatmul.mubr.bf16.gmra.mrb[0].mxu0 %v1512
    %v1548 = vpop.f32.mrb[0].mxu0
    %v1549 = vadd.f32 0.0, %v1548
    %v1550 = vpop.f32.mrb[0].mxu0
    %v1551 = vpop.f32.mrb[0].mxu0
    %v1552 = vadd.f32 0.0, %v1551
    %v1553 = vpop.f32.mrb[0].mxu0
    %1554 = vdwg.mxu0
    %v1555 = vpack.c.bf16 %v1552, %v1549
    %1557 = vrot.lane.b32.xlu0 %v1555, 120
    %v1558 = vpop.permute.xlu0 %1557
    %1559 = vrot.lane.b32.xlu0 %v1555, 112
    %v1560 = vpop.permute.xlu0 %1559
    %1561 = vrot.lane.b32.xlu0 %v1555, 104
    %v1562 = vpop.permute.xlu0 %1561
    %v1563 = vunpack.c.l.b16 %v1555
    %v1564 = vunpack.c.h.b16 %v1555
    %v1565 = vunpack.c.l.b16 %v1558
    %v1566 = vunpack.c.h.b16 %v1558
    %v1567 = vunpack.c.l.b16 %v1560
    %v1568 = vunpack.c.h.b16 %v1560
    %v1569 = vunpack.c.l.b16 %v1562
    %v1570 = vunpack.c.h.b16 %v1562
    %v1571 = vpack.c.b16 %v1563, %v1563
    %v1572 = vpack.c.b16 %v1564, %v1564
    %v1573 = vpack.c.b16 %v1565, %v1565
    %v1574 = vpack.c.b16 %v1566, %v1566
    %v1575 = vpack.c.b16 %v1567, %v1567
    %v1576 = vpack.c.b16 %v1568, %v1568
    %v1577 = vpack.c.b16 %v1569, %v1569
    %v1578 = vpack.c.b16 %v1570, %v1570
    %1579 = vrot.lane.b32.xlu0 %v1571, 96
    %v1580 = vpop.permute.xlu0 %1579
    %v1582 = vsel %vm280, %v1571, 0
    %v1585 = vsel %vm280, %v1580, 0
    %1587 = vmatprep.subr.bf16.mxu0 0
    %1588 = vmatpush1.bf16.xpose.msra.mxu0 %v1585
    %1589 = vmatprep.subr.bf16.mxu0 0
    %1590 = vmatpush1.bf16.xpose.msra.mxu0 0
    %1591 = vmatprep.subr.bf16.mxu0 0
    %1592 = vmatpush1.bf16.xpose.msra.mxu0 0
    %1593 = vmatprep.subr.bf16.mxu0 0
    %1594 = vmatpush1.bf16.xpose.msra.mxu0 0
    %1595 = vmatprep.subr.bf16.mxu0 0
    %1596 = vmatpush1.bf16.xpose.msra.mxu0 0
    %1597 = vmatprep.subr.bf16.mxu0 0
    %1598 = vmatpush1.bf16.xpose.msra.mxu0 0
    %1599 = vmatprep.subr.bf16.mxu0 0
    %1600 = vmatpush1.bf16.xpose.msra.mxu0 0
    %1601 = vmatprep.subr.bf16.mxu0 0
    %1602 = vmatpush1.bf16.xpose.msra.mxu0 0
    %1603 = vmatprep.subr.bf16.mxu0 0
    %1604 = vmatpush1.bf16.xpose.msra.mxu0 0
    %1605 = vmatprep.subr.bf16.mxu0 0
    %1606 = vmatpush1.bf16.xpose.msra.mxu0 0
    %1607 = vmatprep.subr.bf16.mxu0 0
    %1608 = vmatpush1.bf16.xpose.msra.mxu0 0
    %1609 = vmatprep.subr.bf16.mxu0 0
    %1610 = vmatpush1.bf16.xpose.msra.mxu0 0
    %1611 = vmatprep.subr.bf16.mxu0 0
    %1612 = vmatpush1.bf16.xpose.msra.mxu0 0
    %1613 = vmatprep.subr.bf16.mxu0 0
    %1614 = vmatpush1.bf16.xpose.msra.mxu0 0
    %1615 = vmatprep.subr.bf16.mxu0 0
    %1616 = vmatpush1.bf16.xpose.msra.mxu0 0
    %1617 = vmatprep.subr.bf16.mxu0 0
    %1618 = vmatpush1.bf16.xpose.msra.mxu0 0
    %1619 = vmatprep.mubr.bf16.mxu0 0
    %1620 = vmatmul.mubr.bf16.gmra.mrb[0].mxu0 %v1582
    %v1621 = vpop.f32.mrb[0].mxu0
    %v1622 = vadd.f32 0.0, %v1621
    %v1623 = vpop.f32.mrb[0].mxu0
    %v1624 = vpop.f32.mrb[0].mxu0
    %v1625 = vpop.f32.mrb[0].mxu0
    %1626 = vdwg.mxu0
    %1627 = vrot.lane.b32.xlu0 %v1572, 96
    %v1628 = vpop.permute.xlu0 %1627
    %v1630 = vsel %vm280, %v1572, 0
    %v1633 = vsel %vm280, %v1628, 0
    %1635 = vmatprep.subr.bf16.mxu0 0
    %1636 = vmatpush1.bf16.xpose.msra.mxu0 %v1633
    %1637 = vmatprep.subr.bf16.mxu0 0
    %1638 = vmatpush1.bf16.xpose.msra.mxu0 0
    %1639 = vmatprep.subr.bf16.mxu0 0
    %1640 = vmatpush1.bf16.xpose.msra.mxu0 0
    %1641 = vmatprep.subr.bf16.mxu0 0
    %1642 = vmatpush1.bf16.xpose.msra.mxu0 0
    %1643 = vmatprep.subr.bf16.mxu0 0
    %1644 = vmatpush1.bf16.xpose.msra.mxu0 0
    %1645 = vmatprep.subr.bf16.mxu0 0
    %1646 = vmatpush1.bf16.xpose.msra.mxu0 0
    %1647 = vmatprep.subr.bf16.mxu0 0
    %1648 = vmatpush1.bf16.xpose.msra.mxu0 0
    %1649 = vmatprep.subr.bf16.mxu0 0
    %1650 = vmatpush1.bf16.xpose.msra.mxu0 0
    %1651 = vmatprep.subr.bf16.mxu0 0
    %1652 = vmatpush1.bf16.xpose.msra.mxu0 0
    %1653 = vmatprep.subr.bf16.mxu0 0
    %1654 = vmatpush1.bf16.xpose.msra.mxu0 0
    %1655 = vmatprep.subr.bf16.mxu0 0
    %1656 = vmatpush1.bf16.xpose.msra.mxu0 0
    %1657 = vmatprep.subr.bf16.mxu0 0
    %1658 = vmatpush1.bf16.xpose.msra.mxu0 0
    %1659 = vmatprep.subr.bf16.mxu0 0
    %1660 = vmatpush1.bf16.xpose.msra.mxu0 0
    %1661 = vmatprep.subr.bf16.mxu0 0
    %1662 = vmatpush1.bf16.xpose.msra.mxu0 0
    %1663 = vmatprep.subr.bf16.mxu0 0
    %1664 = vmatpush1.bf16.xpose.msra.mxu0 0
    %1665 = vmatprep.subr.bf16.mxu0 0
    %1666 = vmatpush1.bf16.xpose.msra.mxu0 0
    %1667 = vmatprep.mubr.bf16.mxu0 0
    %1668 = vmatmul.mubr.bf16.gmra.mrb[0].mxu0 %v1630
    %v1669 = vpop.f32.mrb[0].mxu0
    %v1670 = vadd.f32 0.0, %v1669
    %v1671 = vpop.f32.mrb[0].mxu0
    %v1672 = vpop.f32.mrb[0].mxu0
    %v1673 = vpop.f32.mrb[0].mxu0
    %1674 = vdwg.mxu0
    %1675 = vrot.lane.b32.xlu0 %v1573, 96
    %v1676 = vpop.permute.xlu0 %1675
    %v1678 = vsel %vm280, %v1573, 0
    %v1681 = vsel %vm280, %v1676, 0
    %1683 = vmatprep.subr.bf16.mxu0 0
    %1684 = vmatpush1.bf16.xpose.msra.mxu0 %v1681
    %1685 = vmatprep.subr.bf16.mxu0 0
    %1686 = vmatpush1.bf16.xpose.msra.mxu0 0
    %1687 = vmatprep.subr.bf16.mxu0 0
    %1688 = vmatpush1.bf16.xpose.msra.mxu0 0
    %1689 = vmatprep.subr.bf16.mxu0 0
    %1690 = vmatpush1.bf16.xpose.msra.mxu0 0
    %1691 = vmatprep.subr.bf16.mxu0 0
    %1692 = vmatpush1.bf16.xpose.msra.mxu0 0
    %1693 = vmatprep.subr.bf16.mxu0 0
    %1694 = vmatpush1.bf16.xpose.msra.mxu0 0
    %1695 = vmatprep.subr.bf16.mxu0 0
    %1696 = vmatpush1.bf16.xpose.msra.mxu0 0
    %1697 = vmatprep.subr.bf16.mxu0 0
    %1698 = vmatpush1.bf16.xpose.msra.mxu0 0
    %1699 = vmatprep.subr.bf16.mxu0 0
    %1700 = vmatpush1.bf16.xpose.msra.mxu0 0
    %1701 = vmatprep.subr.bf16.mxu0 0
    %1702 = vmatpush1.bf16.xpose.msra.mxu0 0
    %1703 = vmatprep.subr.bf16.mxu0 0
    %1704 = vmatpush1.bf16.xpose.msra.mxu0 0
    %1705 = vmatprep.subr.bf16.mxu0 0
    %1706 = vmatpush1.bf16.xpose.msra.mxu0 0
    %1707 = vmatprep.subr.bf16.mxu0 0
    %1708 = vmatpush1.bf16.xpose.msra.mxu0 0
    %1709 = vmatprep.subr.bf16.mxu0 0
    %1710 = vmatpush1.bf16.xpose.msra.mxu0 0
    %1711 = vmatprep.subr.bf16.mxu0 0
    %1712 = vmatpush1.bf16.xpose.msra.mxu0 0
    %1713 = vmatprep.subr.bf16.mxu0 0
    %1714 = vmatpush1.bf16.xpose.msra.mxu0 0
    %1715 = vmatprep.mubr.bf16.mxu0 0
    %1716 = vmatmul.mubr.bf16.gmra.mrb[0].mxu0 %v1678
    %v1717 = vpop.f32.mrb[0].mxu0
    %v1718 = vadd.f32 0.0, %v1717
    %v1719 = vpop.f32.mrb[0].mxu0
    %v1720 = vpop.f32.mrb[0].mxu0
    %v1721 = vpop.f32.mrb[0].mxu0
    %1722 = vdwg.mxu0
    %1723 = vrot.lane.b32.xlu0 %v1574, 96
    %v1724 = vpop.permute.xlu0 %1723
    %v1726 = vsel %vm280, %v1574, 0
    %v1729 = vsel %vm280, %v1724, 0
    %1731 = vmatprep.subr.bf16.mxu0 0
    %1732 = vmatpush1.bf16.xpose.msra.mxu0 %v1729
    %1733 = vmatprep.subr.bf16.mxu0 0
    %1734 = vmatpush1.bf16.xpose.msra.mxu0 0
    %1735 = vmatprep.subr.bf16.mxu0 0
    %1736 = vmatpush1.bf16.xpose.msra.mxu0 0
    %1737 = vmatprep.subr.bf16.mxu0 0
    %1738 = vmatpush1.bf16.xpose.msra.mxu0 0
    %1739 = vmatprep.subr.bf16.mxu0 0
    %1740 = vmatpush1.bf16.xpose.msra.mxu0 0
    %1741 = vmatprep.subr.bf16.mxu0 0
    %1742 = vmatpush1.bf16.xpose.msra.mxu0 0
    %1743 = vmatprep.subr.bf16.mxu0 0
    %1744 = vmatpush1.bf16.xpose.msra.mxu0 0
    %1745 = vmatprep.subr.bf16.mxu0 0
    %1746 = vmatpush1.bf16.xpose.msra.mxu0 0
    %1747 = vmatprep.subr.bf16.mxu0 0
    %1748 = vmatpush1.bf16.xpose.msra.mxu0 0
    %1749 = vmatprep.subr.bf16.mxu0 0
    %1750 = vmatpush1.bf16.xpose.msra.mxu0 0
    %1751 = vmatprep.subr.bf16.mxu0 0
    %1752 = vmatpush1.bf16.xpose.msra.mxu0 0
    %1753 = vmatprep.subr.bf16.mxu0 0
    %1754 = vmatpush1.bf16.xpose.msra.mxu0 0
    %1755 = vmatprep.subr.bf16.mxu0 0
    %1756 = vmatpush1.bf16.xpose.msra.mxu0 0
    %1757 = vmatprep.subr.bf16.mxu0 0
    %1758 = vmatpush1.bf16.xpose.msra.mxu0 0
    %1759 = vmatprep.subr.bf16.mxu0 0
    %1760 = vmatpush1.bf16.xpose.msra.mxu0 0
    %1761 = vmatprep.subr.bf16.mxu0 0
    %1762 = vmatpush1.bf16.xpose.msra.mxu0 0
    %1763 = vmatprep.mubr.bf16.mxu0 0
    %1764 = vmatmul.mubr.bf16.gmra.mrb[0].mxu0 %v1726
    %v1765 = vpop.f32.mrb[0].mxu0
    %v1766 = vadd.f32 0.0, %v1765
    %v1767 = vpop.f32.mrb[0].mxu0
    %v1768 = vpop.f32.mrb[0].mxu0
    %v1769 = vpop.f32.mrb[0].mxu0
    %1770 = vdwg.mxu0
    %1771 = vrot.lane.b32.xlu0 %v1575, 96
    %v1772 = vpop.permute.xlu0 %1771
    %v1774 = vsel %vm280, %v1575, 0
    %v1777 = vsel %vm280, %v1772, 0
    %1779 = vmatprep.subr.bf16.mxu0 0
    %1780 = vmatpush1.bf16.xpose.msra.mxu0 %v1777
    %1781 = vmatprep.subr.bf16.mxu0 0
    %1782 = vmatpush1.bf16.xpose.msra.mxu0 0
    %1783 = vmatprep.subr.bf16.mxu0 0
    %1784 = vmatpush1.bf16.xpose.msra.mxu0 0
    %1785 = vmatprep.subr.bf16.mxu0 0
    %1786 = vmatpush1.bf16.xpose.msra.mxu0 0
    %1787 = vmatprep.subr.bf16.mxu0 0
    %1788 = vmatpush1.bf16.xpose.msra.mxu0 0
    %1789 = vmatprep.subr.bf16.mxu0 0
    %1790 = vmatpush1.bf16.xpose.msra.mxu0 0
    %1791 = vmatprep.subr.bf16.mxu0 0
    %1792 = vmatpush1.bf16.xpose.msra.mxu0 0
    %1793 = vmatprep.subr.bf16.mxu0 0
    %1794 = vmatpush1.bf16.xpose.msra.mxu0 0
    %1795 = vmatprep.subr.bf16.mxu0 0
    %1796 = vmatpush1.bf16.xpose.msra.mxu0 0
    %1797 = vmatprep.subr.bf16.mxu0 0
    %1798 = vmatpush1.bf16.xpose.msra.mxu0 0
    %1799 = vmatprep.subr.bf16.mxu0 0
    %1800 = vmatpush1.bf16.xpose.msra.mxu0 0
    %1801 = vmatprep.subr.bf16.mxu0 0
    %1802 = vmatpush1.bf16.xpose.msra.mxu0 0
    %1803 = vmatprep.subr.bf16.mxu0 0
    %1804 = vmatpush1.bf16.xpose.msra.mxu0 0
    %1805 = vmatprep.subr.bf16.mxu0 0
    %1806 = vmatpush1.bf16.xpose.msra.mxu0 0
    %1807 = vmatprep.subr.bf16.mxu0 0
    %1808 = vmatpush1.bf16.xpose.msra.mxu0 0
    %1809 = vmatprep.subr.bf16.mxu0 0
    %1810 = vmatpush1.bf16.xpose.msra.mxu0 0
    %1811 = vmatprep.mubr.bf16.mxu0 0
    %1812 = vmatmul.mubr.bf16.gmra.mrb[0].mxu0 %v1774
    %v1813 = vpop.f32.mrb[0].mxu0
    %v1814 = vadd.f32 0.0, %v1813
    %v1815 = vpop.f32.mrb[0].mxu0
    %v1816 = vpop.f32.mrb[0].mxu0
    %v1817 = vpop.f32.mrb[0].mxu0
    %1818 = vdwg.mxu0
    %1819 = vrot.lane.b32.xlu0 %v1576, 96
    %v1820 = vpop.permute.xlu0 %1819
    %v1822 = vsel %vm280, %v1576, 0
    %v1825 = vsel %vm280, %v1820, 0
    %1827 = vmatprep.subr.bf16.mxu0 0
    %1828 = vmatpush1.bf16.xpose.msra.mxu0 %v1825
    %1829 = vmatprep.subr.bf16.mxu0 0
    %1830 = vmatpush1.bf16.xpose.msra.mxu0 0
    %1831 = vmatprep.subr.bf16.mxu0 0
    %1832 = vmatpush1.bf16.xpose.msra.mxu0 0
    %1833 = vmatprep.subr.bf16.mxu0 0
    %1834 = vmatpush1.bf16.xpose.msra.mxu0 0
    %1835 = vmatprep.subr.bf16.mxu0 0
    %1836 = vmatpush1.bf16.xpose.msra.mxu0 0
    %1837 = vmatprep.subr.bf16.mxu0 0
    %1838 = vmatpush1.bf16.xpose.msra.mxu0 0
    %1839 = vmatprep.subr.bf16.mxu0 0
    %1840 = vmatpush1.bf16.xpose.msra.mxu0 0
    %1841 = vmatprep.subr.bf16.mxu0 0
    %1842 = vmatpush1.bf16.xpose.msra.mxu0 0
    %1843 = vmatprep.subr.bf16.mxu0 0
    %1844 = vmatpush1.bf16.xpose.msra.mxu0 0
    %1845 = vmatprep.subr.bf16.mxu0 0
    %1846 = vmatpush1.bf16.xpose.msra.mxu0 0
    %1847 = vmatprep.subr.bf16.mxu0 0
    %1848 = vmatpush1.bf16.xpose.msra.mxu0 0
    %1849 = vmatprep.subr.bf16.mxu0 0
    %1850 = vmatpush1.bf16.xpose.msra.mxu0 0
    %1851 = vmatprep.subr.bf16.mxu0 0
    %1852 = vmatpush1.bf16.xpose.msra.mxu0 0
    %1853 = vmatprep.subr.bf16.mxu0 0
    %1854 = vmatpush1.bf16.xpose.msra.mxu0 0
    %1855 = vmatprep.subr.bf16.mxu0 0
    %1856 = vmatpush1.bf16.xpose.msra.mxu0 0
    %1857 = vmatprep.subr.bf16.mxu0 0
    %1858 = vmatpush1.bf16.xpose.msra.mxu0 0
    %1859 = vmatprep.mubr.bf16.mxu0 0
    %1860 = vmatmul.mubr.bf16.gmra.mrb[0].mxu0 %v1822
    %v1861 = vpop.f32.mrb[0].mxu0
    %v1862 = vadd.f32 0.0, %v1861
    %v1863 = vpop.f32.mrb[0].mxu0
    %v1864 = vpop.f32.mrb[0].mxu0
    %v1865 = vpop.f32.mrb[0].mxu0
    %1866 = vdwg.mxu0
    %1867 = vrot.lane.b32.xlu0 %v1577, 96
    %v1868 = vpop.permute.xlu0 %1867
    %v1870 = vsel %vm280, %v1577, 0
    %v1873 = vsel %vm280, %v1868, 0
    %1875 = vmatprep.subr.bf16.mxu0 0
    %1876 = vmatpush1.bf16.xpose.msra.mxu0 %v1873
    %1877 = vmatprep.subr.bf16.mxu0 0
    %1878 = vmatpush1.bf16.xpose.msra.mxu0 0
    %1879 = vmatprep.subr.bf16.mxu0 0
    %1880 = vmatpush1.bf16.xpose.msra.mxu0 0
    %1881 = vmatprep.subr.bf16.mxu0 0
    %1882 = vmatpush1.bf16.xpose.msra.mxu0 0
    %1883 = vmatprep.subr.bf16.mxu0 0
    %1884 = vmatpush1.bf16.xpose.msra.mxu0 0
    %1885 = vmatprep.subr.bf16.mxu0 0
    %1886 = vmatpush1.bf16.xpose.msra.mxu0 0
    %1887 = vmatprep.subr.bf16.mxu0 0
    %1888 = vmatpush1.bf16.xpose.msra.mxu0 0
    %1889 = vmatprep.subr.bf16.mxu0 0
    %1890 = vmatpush1.bf16.xpose.msra.mxu0 0
    %1891 = vmatprep.subr.bf16.mxu0 0
    %1892 = vmatpush1.bf16.xpose.msra.mxu0 0
    %1893 = vmatprep.subr.bf16.mxu0 0
    %1894 = vmatpush1.bf16.xpose.msra.mxu0 0
    %1895 = vmatprep.subr.bf16.mxu0 0
    %1896 = vmatpush1.bf16.xpose.msra.mxu0 0
    %1897 = vmatprep.subr.bf16.mxu0 0
    %1898 = vmatpush1.bf16.xpose.msra.mxu0 0
    %1899 = vmatprep.subr.bf16.mxu0 0
    %1900 = vmatpush1.bf16.xpose.msra.mxu0 0
    %1901 = vmatprep.subr.bf16.mxu0 0
    %1902 = vmatpush1.bf16.xpose.msra.mxu0 0
    %1903 = vmatprep.subr.bf16.mxu0 0
    %1904 = vmatpush1.bf16.xpose.msra.mxu0 0
    %1905 = vmatprep.subr.bf16.mxu0 0
    %1906 = vmatpush1.bf16.xpose.msra.mxu0 0
    %1907 = vmatprep.mubr.bf16.mxu0 0
    %1908 = vmatmul.mubr.bf16.gmra.mrb[0].mxu0 %v1870
    %v1909 = vpop.f32.mrb[0].mxu0
    %v1910 = vadd.f32 0.0, %v1909
    %v1911 = vpop.f32.mrb[0].mxu0
    %v1912 = vpop.f32.mrb[0].mxu0
    %v1913 = vpop.f32.mrb[0].mxu0
    %1914 = vdwg.mxu0
    %1915 = vrot.lane.b32.xlu0 %v1578, 96
    %v1916 = vpop.permute.xlu0 %1915
    %v1918 = vsel %vm280, %v1578, 0
    %v1921 = vsel %vm280, %v1916, 0
    %1923 = vmatprep.subr.bf16.mxu0 0
    %1924 = vmatpush1.bf16.xpose.msra.mxu0 %v1921
    %1925 = vmatprep.subr.bf16.mxu0 0
    %1926 = vmatpush1.bf16.xpose.msra.mxu0 0
    %1927 = vmatprep.subr.bf16.mxu0 0
    %1928 = vmatpush1.bf16.xpose.msra.mxu0 0
    %1929 = vmatprep.subr.bf16.mxu0 0
    %1930 = vmatpush1.bf16.xpose.msra.mxu0 0
    %1931 = vmatprep.subr.bf16.mxu0 0
    %1932 = vmatpush1.bf16.xpose.msra.mxu0 0
    %1933 = vmatprep.subr.bf16.mxu0 0
    %1934 = vmatpush1.bf16.xpose.msra.mxu0 0
    %1935 = vmatprep.subr.bf16.mxu0 0
    %1936 = vmatpush1.bf16.xpose.msra.mxu0 0
    %1937 = vmatprep.subr.bf16.mxu0 0
    %1938 = vmatpush1.bf16.xpose.msra.mxu0 0
    %1939 = vmatprep.subr.bf16.mxu0 0
    %1940 = vmatpush1.bf16.xpose.msra.mxu0 0
    %1941 = vmatprep.subr.bf16.mxu0 0
    %1942 = vmatpush1.bf16.xpose.msra.mxu0 0
    %1943 = vmatprep.subr.bf16.mxu0 0
    %1944 = vmatpush1.bf16.xpose.msra.mxu0 0
    %1945 = vmatprep.subr.bf16.mxu0 0
    %1946 = vmatpush1.bf16.xpose.msra.mxu0 0
    %1947 = vmatprep.subr.bf16.mxu0 0
    %1948 = vmatpush1.bf16.xpose.msra.mxu0 0
    %1949 = vmatprep.subr.bf16.mxu0 0
    %1950 = vmatpush1.bf16.xpose.msra.mxu0 0
    %1951 = vmatprep.subr.bf16.mxu0 0
    %1952 = vmatpush1.bf16.xpose.msra.mxu0 0
    %1953 = vmatprep.subr.bf16.mxu0 0
    %1954 = vmatpush1.bf16.xpose.msra.mxu0 0
    %1955 = vmatprep.mubr.bf16.mxu0 0
    %1956 = vmatmul.mubr.bf16.gmra.mrb[0].mxu0 %v1918
    %v1957 = vpop.f32.mrb[0].mxu0
    %v1958 = vadd.f32 0.0, %v1957
    %v1959 = vpop.f32.mrb[0].mxu0
    %v1960 = vpop.f32.mrb[0].mxu0
    %v1961 = vpop.f32.mrb[0].mxu0
    %1962 = vdwg.mxu0
    %v1963 = vsel %vm664, %v1622, -inf
    %v1964 = vsel %vm664, %v1670, -inf
    %v1965 = vsel %vm664, %v1718, -inf
    %v1966 = vsel %vm664, %v1766, -inf
    %v1967 = vsel %vm664, %v1814, -inf
    %v1968 = vsel %vm664, %v1862, -inf
    %v1969 = vsel %vm664, %v1910, -inf
    %v1970 = vsel %vm664, %v1958, -inf
    %v1971 = vsel %vm280, %v1963, -inf
    %1972 = vmax.xlane.f32.xlu0 %v1971
    %v1973 = vpop.xlane.xlu0 %1972
    %v1974 = vsel %vm280, %v1964, -inf
    %1975 = vmax.xlane.f32.xlu0 %v1974
    %v1976 = vpop.xlane.xlu0 %1975
    %v1977 = vsel %vm280, %v1965, -inf
    %1978 = vmax.xlane.f32.xlu0 %v1977
    %v1979 = vpop.xlane.xlu0 %1978
    %v1980 = vsel %vm280, %v1966, -inf
    %1981 = vmax.xlane.f32.xlu0 %v1980
    %v1982 = vpop.xlane.xlu0 %1981
    %v1983 = vsel %vm280, %v1967, -inf
    %1984 = vmax.xlane.f32.xlu0 %v1983
    %v1985 = vpop.xlane.xlu0 %1984
    %v1986 = vsel %vm280, %v1968, -inf
    %1987 = vmax.xlane.f32.xlu0 %v1986
    %v1988 = vpop.xlane.xlu0 %1987
    %v1989 = vsel %vm280, %v1969, -inf
    %1990 = vmax.xlane.f32.xlu0 %v1989
    %v1991 = vpop.xlane.xlu0 %1990
    %v1992 = vsel %vm280, %v1970, -inf
    %1993 = vmax.xlane.f32.xlu0 %v1992
    %v1994 = vpop.xlane.xlu0 %1993
    %v1995 = vsub.f32 %v1963, %v1973
    %v1996 = vsub.f32 %v1964, %v1976
    %v1997 = vsub.f32 %v1965, %v1979
    %v1998 = vsub.f32 %v1966, %v1982
    %v1999 = vsub.f32 %v1967, %v1985
    %v2000 = vsub.f32 %v1968, %v1988
    %v2001 = vsub.f32 %v1969, %v1991
    %v2002 = vsub.f32 %v1970, %v1994
    %v2003 = vmul.f32 %v1995, 1.442695
    %v2004 = vpow.pop %v2003
    %v2005 = vmul.f32 %v1996, 1.442695
    %v2006 = vpow.pop %v2005
    %v2007 = vmul.f32 %v1997, 1.442695
    %v2008 = vpow.pop %v2007
    %v2009 = vmul.f32 %v1998, 1.442695
    %v2010 = vpow.pop %v2009
    %v2011 = vmul.f32 %v1999, 1.442695
    %v2012 = vpow.pop %v2011
    %v2013 = vmul.f32 %v2000, 1.442695
    %v2014 = vpow.pop %v2013
    %v2015 = vmul.f32 %v2001, 1.442695
    %v2016 = vpow.pop %v2015
    %v2017 = vmul.f32 %v2002, 1.442695
    %v2018 = vpow.pop %v2017
    %v2019 = vsel %vm280, %v2004, 0.0
    %2020 = vadd.xlane.f32.xlu0 %v2019
    %v2021 = vpop.xlane.xlu0 %2020
    %v2022 = vsel %vm280, %v2006, 0.0
    %2023 = vadd.xlane.f32.xlu0 %v2022
    %v2024 = vpop.xlane.xlu0 %2023
    %v2025 = vsel %vm280, %v2008, 0.0
    %2026 = vadd.xlane.f32.xlu0 %v2025
    %v2027 = vpop.xlane.xlu0 %2026
    %v2028 = vsel %vm280, %v2010, 0.0
    %2029 = vadd.xlane.f32.xlu0 %v2028
    %v2030 = vpop.xlane.xlu0 %2029
    %v2031 = vsel %vm280, %v2012, 0.0
    %2032 = vadd.xlane.f32.xlu0 %v2031
    %v2033 = vpop.xlane.xlu0 %2032
    %v2034 = vsel %vm280, %v2014, 0.0
    %2035 = vadd.xlane.f32.xlu0 %v2034
    %v2036 = vpop.xlane.xlu0 %2035
    %v2037 = vsel %vm280, %v2016, 0.0
    %2038 = vadd.xlane.f32.xlu0 %v2037
    %v2039 = vpop.xlane.xlu0 %2038
    %v2040 = vsel %vm280, %v2018, 0.0
    %2041 = vadd.xlane.f32.xlu0 %v2040
    %v2042 = vpop.xlane.xlu0 %2041
    %v2043 = vrcp.pop %v2021
    %v2044 = vmul.f32 %v2004, %v2043
    %v2045 = vrcp.pop %v2024
    %v2046 = vmul.f32 %v2006, %v2045
    %v2047 = vrcp.pop %v2027
    %v2048 = vmul.f32 %v2008, %v2047
    %v2049 = vrcp.pop %v2030
    %v2050 = vmul.f32 %v2010, %v2049
    %v2051 = vrcp.pop %v2033
    %v2052 = vmul.f32 %v2012, %v2051
    %v2053 = vrcp.pop %v2036
    %v2054 = vmul.f32 %v2014, %v2053
    %v2055 = vrcp.pop %v2039
    %v2056 = vmul.f32 %v2016, %v2055
    %v2057 = vrcp.pop %v2042
    %v2058 = vmul.f32 %v2018, %v2057
    %v2059 = vpack.c.bf16 %v2044, %v2044
    %v2060 = vpack.c.bf16 %v2046, %v2046
    %v2061 = vpack.c.bf16 %v2048, %v2048
    %v2062 = vpack.c.bf16 %v2050, %v2050
    %v2063 = vpack.c.bf16 %v2052, %v2052
    %v2064 = vpack.c.bf16 %v2054, %v2054
    %v2065 = vpack.c.bf16 %v2056, %v2056
    %v2066 = vpack.c.bf16 %v2058, %v2058
    %2067 = vrot.lane.b32.xlu0 %v1571, 64
    %v2068 = vpop.permute.xlu0 %2067
    %v2070 = vsel %vm280, %v2059, 0
    %v2073 = vsel %vm774, %v2068, 0
    %2075 = vmatprep.subr.bf16.mxu0 0
    %2076 = vmatpush1.bf16.msra.mxu0 %v2073
    %2077 = vmatprep.subr.bf16.mxu0 0
    %2078 = vmatpush1.bf16.msra.mxu0 0
    %2079 = vmatprep.subr.bf16.mxu0 0
    %2080 = vmatpush1.bf16.msra.mxu0 0
    %2081 = vmatprep.subr.bf16.mxu0 0
    %2082 = vmatpush1.bf16.msra.mxu0 0
    %2083 = vmatprep.subr.bf16.mxu0 0
    %2084 = vmatpush1.bf16.msra.mxu0 0
    %2085 = vmatprep.subr.bf16.mxu0 0
    %2086 = vmatpush1.bf16.msra.mxu0 0
    %2087 = vmatprep.subr.bf16.mxu0 0
    %2088 = vmatpush1.bf16.msra.mxu0 0
    %2089 = vmatprep.subr.bf16.mxu0 0
    %2090 = vmatpush1.bf16.msra.mxu0 0
    %2091 = vmatprep.subr.bf16.mxu0 0
    %2092 = vmatpush1.bf16.msra.mxu0 0
    %2093 = vmatprep.subr.bf16.mxu0 0
    %2094 = vmatpush1.bf16.msra.mxu0 0
    %2095 = vmatprep.subr.bf16.mxu0 0
    %2096 = vmatpush1.bf16.msra.mxu0 0
    %2097 = vmatprep.subr.bf16.mxu0 0
    %2098 = vmatpush1.bf16.msra.mxu0 0
    %2099 = vmatprep.subr.bf16.mxu0 0
    %2100 = vmatpush1.bf16.msra.mxu0 0
    %2101 = vmatprep.subr.bf16.mxu0 0
    %2102 = vmatpush1.bf16.msra.mxu0 0
    %2103 = vmatprep.subr.bf16.mxu0 0
    %2104 = vmatpush1.bf16.msra.mxu0 0
    %2105 = vmatprep.subr.bf16.mxu0 0
    %2106 = vmatpush1.bf16.msra.mxu0 0
    %2107 = vmatprep.mubr.bf16.mxu0 0
    %2108 = vmatmul.mubr.bf16.gmra.mrb[0].mxu0 %v2070
    %v2109 = vpop.f32.mrb[0].mxu0
    %v2110 = vadd.f32 0.0, %v2109
    %v2111 = vpop.f32.mrb[0].mxu0
    %v2112 = vpop.f32.mrb[0].mxu0
    %v2113 = vpop.f32.mrb[0].mxu0
    %2114 = vdwg.mxu0
    %2115 = vrot.lane.b32.xlu0 %v1572, 64
    %v2116 = vpop.permute.xlu0 %2115
    %v2118 = vsel %vm280, %v2060, 0
    %v2121 = vsel %vm774, %v2116, 0
    %2123 = vmatprep.subr.bf16.mxu0 0
    %2124 = vmatpush1.bf16.msra.mxu0 %v2121
    %2125 = vmatprep.subr.bf16.mxu0 0
    %2126 = vmatpush1.bf16.msra.mxu0 0
    %2127 = vmatprep.subr.bf16.mxu0 0
    %2128 = vmatpush1.bf16.msra.mxu0 0
    %2129 = vmatprep.subr.bf16.mxu0 0
    %2130 = vmatpush1.bf16.msra.mxu0 0
    %2131 = vmatprep.subr.bf16.mxu0 0
    %2132 = vmatpush1.bf16.msra.mxu0 0
    %2133 = vmatprep.subr.bf16.mxu0 0
    %2134 = vmatpush1.bf16.msra.mxu0 0
    %2135 = vmatprep.subr.bf16.mxu0 0
    %2136 = vmatpush1.bf16.msra.mxu0 0
    %2137 = vmatprep.subr.bf16.mxu0 0
    %2138 = vmatpush1.bf16.msra.mxu0 0
    %2139 = vmatprep.subr.bf16.mxu0 0
    %2140 = vmatpush1.bf16.msra.mxu0 0
    %2141 = vmatprep.subr.bf16.mxu0 0
    %2142 = vmatpush1.bf16.msra.mxu0 0
    %2143 = vmatprep.subr.bf16.mxu0 0
    %2144 = vmatpush1.bf16.msra.mxu0 0
    %2145 = vmatprep.subr.bf16.mxu0 0
    %2146 = vmatpush1.bf16.msra.mxu0 0
    %2147 = vmatprep.subr.bf16.mxu0 0
    %2148 = vmatpush1.bf16.msra.mxu0 0
    %2149 = vmatprep.subr.bf16.mxu0 0
    %2150 = vmatpush1.bf16.msra.mxu0 0
    %2151 = vmatprep.subr.bf16.mxu0 0
    %2152 = vmatpush1.bf16.msra.mxu0 0
    %2153 = vmatprep.subr.bf16.mxu0 0
    %2154 = vmatpush1.bf16.msra.mxu0 0
    %2155 = vmatprep.mubr.bf16.mxu0 0
    %2156 = vmatmul.mubr.bf16.gmra.mrb[0].mxu0 %v2118
    %v2157 = vpop.f32.mrb[0].mxu0
    %v2158 = vadd.f32 0.0, %v2157
    %v2159 = vpop.f32.mrb[0].mxu0
    %v2160 = vpop.f32.mrb[0].mxu0
    %v2161 = vpop.f32.mrb[0].mxu0
    %2162 = vdwg.mxu0
    %2163 = vrot.lane.b32.xlu0 %v1573, 64
    %v2164 = vpop.permute.xlu0 %2163
    %v2166 = vsel %vm280, %v2061, 0
    %v2169 = vsel %vm774, %v2164, 0
    %2171 = vmatprep.subr.bf16.mxu0 0
    %2172 = vmatpush1.bf16.msra.mxu0 %v2169
    %2173 = vmatprep.subr.bf16.mxu0 0
    %2174 = vmatpush1.bf16.msra.mxu0 0
    %2175 = vmatprep.subr.bf16.mxu0 0
    %2176 = vmatpush1.bf16.msra.mxu0 0
    %2177 = vmatprep.subr.bf16.mxu0 0
    %2178 = vmatpush1.bf16.msra.mxu0 0
    %2179 = vmatprep.subr.bf16.mxu0 0
    %2180 = vmatpush1.bf16.msra.mxu0 0
    %2181 = vmatprep.subr.bf16.mxu0 0
    %2182 = vmatpush1.bf16.msra.mxu0 0
    %2183 = vmatprep.subr.bf16.mxu0 0
    %2184 = vmatpush1.bf16.msra.mxu0 0
    %2185 = vmatprep.subr.bf16.mxu0 0
    %2186 = vmatpush1.bf16.msra.mxu0 0
    %2187 = vmatprep.subr.bf16.mxu0 0
    %2188 = vmatpush1.bf16.msra.mxu0 0
    %2189 = vmatprep.subr.bf16.mxu0 0
    %2190 = vmatpush1.bf16.msra.mxu0 0
    %2191 = vmatprep.subr.bf16.mxu0 0
    %2192 = vmatpush1.bf16.msra.mxu0 0
    %2193 = vmatprep.subr.bf16.mxu0 0
    %2194 = vmatpush1.bf16.msra.mxu0 0
    %2195 = vmatprep.subr.bf16.mxu0 0
    %2196 = vmatpush1.bf16.msra.mxu0 0
    %2197 = vmatprep.subr.bf16.mxu0 0
    %2198 = vmatpush1.bf16.msra.mxu0 0
    %2199 = vmatprep.subr.bf16.mxu0 0
    %2200 = vmatpush1.bf16.msra.mxu0 0
    %2201 = vmatprep.subr.bf16.mxu0 0
    %2202 = vmatpush1.bf16.msra.mxu0 0
    %2203 = vmatprep.mubr.bf16.mxu0 0
    %2204 = vmatmul.mubr.bf16.gmra.mrb[0].mxu0 %v2166
    %v2205 = vpop.f32.mrb[0].mxu0
    %v2206 = vadd.f32 0.0, %v2205
    %v2207 = vpop.f32.mrb[0].mxu0
    %v2208 = vpop.f32.mrb[0].mxu0
    %v2209 = vpop.f32.mrb[0].mxu0
    %2210 = vdwg.mxu0
    %2211 = vrot.lane.b32.xlu0 %v1574, 64
    %v2212 = vpop.permute.xlu0 %2211
    %v2214 = vsel %vm280, %v2062, 0
    %v2217 = vsel %vm774, %v2212, 0
    %2219 = vmatprep.subr.bf16.mxu0 0
    %2220 = vmatpush1.bf16.msra.mxu0 %v2217
    %2221 = vmatprep.subr.bf16.mxu0 0
    %2222 = vmatpush1.bf16.msra.mxu0 0
    %2223 = vmatprep.subr.bf16.mxu0 0
    %2224 = vmatpush1.bf16.msra.mxu0 0
    %2225 = vmatprep.subr.bf16.mxu0 0
    %2226 = vmatpush1.bf16.msra.mxu0 0
    %2227 = vmatprep.subr.bf16.mxu0 0
    %2228 = vmatpush1.bf16.msra.mxu0 0
    %2229 = vmatprep.subr.bf16.mxu0 0
    %2230 = vmatpush1.bf16.msra.mxu0 0
    %2231 = vmatprep.subr.bf16.mxu0 0
    %2232 = vmatpush1.bf16.msra.mxu0 0
    %2233 = vmatprep.subr.bf16.mxu0 0
    %2234 = vmatpush1.bf16.msra.mxu0 0
    %2235 = vmatprep.subr.bf16.mxu0 0
    %2236 = vmatpush1.bf16.msra.mxu0 0
    %2237 = vmatprep.subr.bf16.mxu0 0
    %2238 = vmatpush1.bf16.msra.mxu0 0
    %2239 = vmatprep.subr.bf16.mxu0 0
    %2240 = vmatpush1.bf16.msra.mxu0 0
    %2241 = vmatprep.subr.bf16.mxu0 0
    %2242 = vmatpush1.bf16.msra.mxu0 0
    %2243 = vmatprep.subr.bf16.mxu0 0
    %2244 = vmatpush1.bf16.msra.mxu0 0
    %2245 = vmatprep.subr.bf16.mxu0 0
    %2246 = vmatpush1.bf16.msra.mxu0 0
    %2247 = vmatprep.subr.bf16.mxu0 0
    %2248 = vmatpush1.bf16.msra.mxu0 0
    %2249 = vmatprep.subr.bf16.mxu0 0
    %2250 = vmatpush1.bf16.msra.mxu0 0
    %2251 = vmatprep.mubr.bf16.mxu0 0
    %2252 = vmatmul.mubr.bf16.gmra.mrb[0].mxu0 %v2214
    %v2253 = vpop.f32.mrb[0].mxu0
    %v2254 = vadd.f32 0.0, %v2253
    %v2255 = vpop.f32.mrb[0].mxu0
    %v2256 = vpop.f32.mrb[0].mxu0
    %v2257 = vpop.f32.mrb[0].mxu0
    %2258 = vdwg.mxu0
    %2259 = vrot.lane.b32.xlu0 %v1575, 64
    %v2260 = vpop.permute.xlu0 %2259
    %v2262 = vsel %vm280, %v2063, 0
    %v2265 = vsel %vm774, %v2260, 0
    %2267 = vmatprep.subr.bf16.mxu0 0
    %2268 = vmatpush1.bf16.msra.mxu0 %v2265
    %2269 = vmatprep.subr.bf16.mxu0 0
    %2270 = vmatpush1.bf16.msra.mxu0 0
    %2271 = vmatprep.subr.bf16.mxu0 0
    %2272 = vmatpush1.bf16.msra.mxu0 0
    %2273 = vmatprep.subr.bf16.mxu0 0
    %2274 = vmatpush1.bf16.msra.mxu0 0
    %2275 = vmatprep.subr.bf16.mxu0 0
    %2276 = vmatpush1.bf16.msra.mxu0 0
    %2277 = vmatprep.subr.bf16.mxu0 0
    %2278 = vmatpush1.bf16.msra.mxu0 0
    %2279 = vmatprep.subr.bf16.mxu0 0
    %2280 = vmatpush1.bf16.msra.mxu0 0
    %2281 = vmatprep.subr.bf16.mxu0 0
    %2282 = vmatpush1.bf16.msra.mxu0 0
    %2283 = vmatprep.subr.bf16.mxu0 0
    %2284 = vmatpush1.bf16.msra.mxu0 0
    %2285 = vmatprep.subr.bf16.mxu0 0
    %2286 = vmatpush1.bf16.msra.mxu0 0
    %2287 = vmatprep.subr.bf16.mxu0 0
    %2288 = vmatpush1.bf16.msra.mxu0 0
    %2289 = vmatprep.subr.bf16.mxu0 0
    %2290 = vmatpush1.bf16.msra.mxu0 0
    %2291 = vmatprep.subr.bf16.mxu0 0
    %2292 = vmatpush1.bf16.msra.mxu0 0
    %2293 = vmatprep.subr.bf16.mxu0 0
    %2294 = vmatpush1.bf16.msra.mxu0 0
    %2295 = vmatprep.subr.bf16.mxu0 0
    %2296 = vmatpush1.bf16.msra.mxu0 0
    %2297 = vmatprep.subr.bf16.mxu0 0
    %2298 = vmatpush1.bf16.msra.mxu0 0
    %2299 = vmatprep.mubr.bf16.mxu0 0
    %2300 = vmatmul.mubr.bf16.gmra.mrb[0].mxu0 %v2262
    %v2301 = vpop.f32.mrb[0].mxu0
    %v2302 = vadd.f32 0.0, %v2301
    %v2303 = vpop.f32.mrb[0].mxu0
    %v2304 = vpop.f32.mrb[0].mxu0
    %v2305 = vpop.f32.mrb[0].mxu0
    %2306 = vdwg.mxu0
    %2307 = vrot.lane.b32.xlu0 %v1576, 64
    %v2308 = vpop.permute.xlu0 %2307
    %v2310 = vsel %vm280, %v2064, 0
    %v2313 = vsel %vm774, %v2308, 0
    %2315 = vmatprep.subr.bf16.mxu0 0
    %2316 = vmatpush1.bf16.msra.mxu0 %v2313
    %2317 = vmatprep.subr.bf16.mxu0 0
    %2318 = vmatpush1.bf16.msra.mxu0 0
    %2319 = vmatprep.subr.bf16.mxu0 0
    %2320 = vmatpush1.bf16.msra.mxu0 0
    %2321 = vmatprep.subr.bf16.mxu0 0
    %2322 = vmatpush1.bf16.msra.mxu0 0
    %2323 = vmatprep.subr.bf16.mxu0 0
    %2324 = vmatpush1.bf16.msra.mxu0 0
    %2325 = vmatprep.subr.bf16.mxu0 0
    %2326 = vmatpush1.bf16.msra.mxu0 0
    %2327 = vmatprep.subr.bf16.mxu0 0
    %2328 = vmatpush1.bf16.msra.mxu0 0
    %2329 = vmatprep.subr.bf16.mxu0 0
    %2330 = vmatpush1.bf16.msra.mxu0 0
    %2331 = vmatprep.subr.bf16.mxu0 0
    %2332 = vmatpush1.bf16.msra.mxu0 0
    %2333 = vmatprep.subr.bf16.mxu0 0
    %2334 = vmatpush1.bf16.msra.mxu0 0
    %2335 = vmatprep.subr.bf16.mxu0 0
    %2336 = vmatpush1.bf16.msra.mxu0 0
    %2337 = vmatprep.subr.bf16.mxu0 0
    %2338 = vmatpush1.bf16.msra.mxu0 0
    %2339 = vmatprep.subr.bf16.mxu0 0
    %2340 = vmatpush1.bf16.msra.mxu0 0
    %2341 = vmatprep.subr.bf16.mxu0 0
    %2342 = vmatpush1.bf16.msra.mxu0 0
    %2343 = vmatprep.subr.bf16.mxu0 0
    %2344 = vmatpush1.bf16.msra.mxu0 0
    %2345 = vmatprep.subr.bf16.mxu0 0
    %2346 = vmatpush1.bf16.msra.mxu0 0
    %2347 = vmatprep.mubr.bf16.mxu0 0
    %2348 = vmatmul.mubr.bf16.gmra.mrb[0].mxu0 %v2310
    %v2349 = vpop.f32.mrb[0].mxu0
    %v2350 = vadd.f32 0.0, %v2349
    %v2351 = vpop.f32.mrb[0].mxu0
    %v2352 = vpop.f32.mrb[0].mxu0
    %v2353 = vpop.f32.mrb[0].mxu0
    %2354 = vdwg.mxu0
    %2355 = vrot.lane.b32.xlu0 %v1577, 64
    %v2356 = vpop.permute.xlu0 %2355
    %v2358 = vsel %vm280, %v2065, 0
    %v2361 = vsel %vm774, %v2356, 0
    %2363 = vmatprep.subr.bf16.mxu0 0
    %2364 = vmatpush1.bf16.msra.mxu0 %v2361
    %2365 = vmatprep.subr.bf16.mxu0 0
    %2366 = vmatpush1.bf16.msra.mxu0 0
    %2367 = vmatprep.subr.bf16.mxu0 0
    %2368 = vmatpush1.bf16.msra.mxu0 0
    %2369 = vmatprep.subr.bf16.mxu0 0
    %2370 = vmatpush1.bf16.msra.mxu0 0
    %2371 = vmatprep.subr.bf16.mxu0 0
    %2372 = vmatpush1.bf16.msra.mxu0 0
    %2373 = vmatprep.subr.bf16.mxu0 0
    %2374 = vmatpush1.bf16.msra.mxu0 0
    %2375 = vmatprep.subr.bf16.mxu0 0
    %2376 = vmatpush1.bf16.msra.mxu0 0
    %2377 = vmatprep.subr.bf16.mxu0 0
    %2378 = vmatpush1.bf16.msra.mxu0 0
    %2379 = vmatprep.subr.bf16.mxu0 0
    %2380 = vmatpush1.bf16.msra.mxu0 0
    %2381 = vmatprep.subr.bf16.mxu0 0
    %2382 = vmatpush1.bf16.msra.mxu0 0
    %2383 = vmatprep.subr.bf16.mxu0 0
    %2384 = vmatpush1.bf16.msra.mxu0 0
    %2385 = vmatprep.subr.bf16.mxu0 0
    %2386 = vmatpush1.bf16.msra.mxu0 0
    %2387 = vmatprep.subr.bf16.mxu0 0
    %2388 = vmatpush1.bf16.msra.mxu0 0
    %2389 = vmatprep.subr.bf16.mxu0 0
    %2390 = vmatpush1.bf16.msra.mxu0 0
    %2391 = vmatprep.subr.bf16.mxu0 0
    %2392 = vmatpush1.bf16.msra.mxu0 0
    %2393 = vmatprep.subr.bf16.mxu0 0
    %2394 = vmatpush1.bf16.msra.mxu0 0
    %2395 = vmatprep.mubr.bf16.mxu0 0
    %2396 = vmatmul.mubr.bf16.gmra.mrb[0].mxu0 %v2358
    %v2397 = vpop.f32.mrb[0].mxu0
    %v2398 = vadd.f32 0.0, %v2397
    %v2399 = vpop.f32.mrb[0].mxu0
    %v2400 = vpop.f32.mrb[0].mxu0
    %v2401 = vpop.f32.mrb[0].mxu0
    %2402 = vdwg.mxu0
    %2403 = vrot.lane.b32.xlu0 %v1578, 64
    %v2404 = vpop.permute.xlu0 %2403
    %v2406 = vsel %vm280, %v2066, 0
    %v2409 = vsel %vm774, %v2404, 0
    %2411 = vmatprep.subr.bf16.mxu0 0
    %2412 = vmatpush1.bf16.msra.mxu0 %v2409
    %2413 = vmatprep.subr.bf16.mxu0 0
    %2414 = vmatpush1.bf16.msra.mxu0 0
    %2415 = vmatprep.subr.bf16.mxu0 0
    %2416 = vmatpush1.bf16.msra.mxu0 0
    %2417 = vmatprep.subr.bf16.mxu0 0
    %2418 = vmatpush1.bf16.msra.mxu0 0
    %2419 = vmatprep.subr.bf16.mxu0 0
    %2420 = vmatpush1.bf16.msra.mxu0 0
    %2421 = vmatprep.subr.bf16.mxu0 0
    %2422 = vmatpush1.bf16.msra.mxu0 0
    %2423 = vmatprep.subr.bf16.mxu0 0
    %2424 = vmatpush1.bf16.msra.mxu0 0
    %2425 = vmatprep.subr.bf16.mxu0 0
    %2426 = vmatpush1.bf16.msra.mxu0 0
    %2427 = vmatprep.subr.bf16.mxu0 0
    %2428 = vmatpush1.bf16.msra.mxu0 0
    %2429 = vmatprep.subr.bf16.mxu0 0
    %2430 = vmatpush1.bf16.msra.mxu0 0
    %2431 = vmatprep.subr.bf16.mxu0 0
    %2432 = vmatpush1.bf16.msra.mxu0 0
    %2433 = vmatprep.subr.bf16.mxu0 0
    %2434 = vmatpush1.bf16.msra.mxu0 0
    %2435 = vmatprep.subr.bf16.mxu0 0
    %2436 = vmatpush1.bf16.msra.mxu0 0
    %2437 = vmatprep.subr.bf16.mxu0 0
    %2438 = vmatpush1.bf16.msra.mxu0 0
    %2439 = vmatprep.subr.bf16.mxu0 0
    %2440 = vmatpush1.bf16.msra.mxu0 0
    %2441 = vmatprep.subr.bf16.mxu0 0
    %2442 = vmatpush1.bf16.msra.mxu0 0
    %2443 = vmatprep.mubr.bf16.mxu0 0
    %2444 = vmatmul.mubr.bf16.gmra.mrb[0].mxu0 %v2406
    %v2445 = vpop.f32.mrb[0].mxu0
    %v2446 = vadd.f32 0.0, %v2445
    %v2447 = vpop.f32.mrb[0].mxu0
    %v2448 = vpop.f32.mrb[0].mxu0
    %v2449 = vpop.f32.mrb[0].mxu0
    %2450 = vdwg.mxu0
    %2453 = vrot.lane.b32.xlu0 %v2206, 8
    %v2454 = vpop.permute.xlu0 %2453
    %2455 = vrot.lane.b32.xlu0 %v2254, 8
    %v2456 = vpop.permute.xlu0 %2455
    %2461 = vrot.lane.b32.xlu0 %v2302, 16
    %v2462 = vpop.permute.xlu0 %2461
    %2463 = vrot.lane.b32.xlu0 %v2350, 16
    %v2464 = vpop.permute.xlu0 %2463
    %2469 = vrot.lane.b32.xlu0 %v2398, 24
    %v2470 = vpop.permute.xlu0 %2469
    %2471 = vrot.lane.b32.xlu0 %v2446, 24
    %v2472 = vpop.permute.xlu0 %2471
    %v2475 = vsel %vm280, %v2110, %v2454
    %v2476 = vsel %vm280, %v2158, %v2456
    %v2477 = vsel %vm1180, %v2475, %v2462
    %v2478 = vsel %vm1180, %v2476, %v2464
    %v2479 = vsel %vm1183, %v2477, %v2470
    %v2480 = vsel %vm1183, %v2478, %v2472
    %v2481 = vpack.c.bf16 %v2480, %v2479
    %v2482 = vlaneseq
    %v2483 = vshrl.u32 %v2482, 7
    %v2484 = vsub.s32 2, %v2483
    %v2485 = vrot.slane %v1459, %v2484
    %2486 = vrot.lane.b32.xlu0 %v1507, 32
    %v2487 = vpop.permute.xlu0 %2486
    %2488 = vrot.lane.b32.xlu0 %v1508, 32
    %v2489 = vpop.permute.xlu0 %2488
    %v2493 = vsel %vm157, %v2481, 0
    %2495 = vmatprep.subr.bf16.mxu0 0
    %2496 = vmatpush1.bf16.msra.mxu0 %v2487
    %2497 = vmatprep.subr.bf16.mxu0 0
    %2498 = vmatpush1.bf16.msra.mxu0 %v2489
    %2499 = vmatprep.subr.bf16.mxu0 0
    %2500 = vmatpush1.bf16.msra.mxu0 0
    %2501 = vmatprep.subr.bf16.mxu0 0
    %2502 = vmatpush1.bf16.msra.mxu0 0
    %2503 = vmatprep.subr.bf16.mxu0 0
    %2504 = vmatpush1.bf16.msra.mxu0 0
    %2505 = vmatprep.subr.bf16.mxu0 0
    %2506 = vmatpush1.bf16.msra.mxu0 0
    %2507 = vmatprep.subr.bf16.mxu0 0
    %2508 = vmatpush1.bf16.msra.mxu0 0
    %2509 = vmatprep.subr.bf16.mxu0 0
    %2510 = vmatpush1.bf16.msra.mxu0 0
    %2511 = vmatprep.subr.bf16.mxu0 0
    %2512 = vmatpush1.bf16.msra.mxu0 0
    %2513 = vmatprep.subr.bf16.mxu0 0
    %2514 = vmatpush1.bf16.msra.mxu0 0
    %2515 = vmatprep.subr.bf16.mxu0 0
    %2516 = vmatpush1.bf16.msra.mxu0 0
    %2517 = vmatprep.subr.bf16.mxu0 0
    %2518 = vmatpush1.bf16.msra.mxu0 0
    %2519 = vmatprep.subr.bf16.mxu0 0
    %2520 = vmatpush1.bf16.msra.mxu0 0
    %2521 = vmatprep.subr.bf16.mxu0 0
    %2522 = vmatpush1.bf16.msra.mxu0 0
    %2523 = vmatprep.subr.bf16.mxu0 0
    %2524 = vmatpush1.bf16.msra.mxu0 0
    %2525 = vmatprep.subr.bf16.mxu0 0
    %2526 = vmatpush1.bf16.msra.mxu0 0
    %2527 = vmatprep.mubr.bf16.mxu0 0
    %2528 = vmatmul.mubr.bf16.gmra.mrb[0].mxu0 %v2493
    %v2529 = vpop.f32.mrb[0].mxu0
    %v2530 = vadd.f32 %v2485, %v2529
    %v2531 = vpop.f32.mrb[0].mxu0
    %v2532 = vpop.f32.mrb[0].mxu0
    %v2533 = vadd.f32 %v2485, %v2532
    %v2534 = vpop.f32.mrb[0].mxu0
    %2535 = vdwg.mxu0
    %v2536 = vadd.f32 %v1434, %v2530
    %v2537 = vadd.f32 %v1435, %v2533
    %v2538 = vsel %vm157, %v2536, 0.0
    %2539 = vadd.xlane.f32.xlu0 %v2538
    %v2540 = vpop.xlane.xlu0 %2539
    %v2541 = vsel %vm157, %v2537, 0.0
    %2542 = vadd.xlane.f32.xlu0 %v2541
    %v2543 = vpop.xlane.xlu0 %2542
    %v2544 = vmul.f32 %v2540, %v164
    %v2545 = vmul.f32 %v2543, %v164
    %v2546 = vsub.f32 %v2536, %v2544
    %v2547 = vsub.f32 %v2537, %v2545
    %v2548 = vmul.f32 %v2546, %v2546
    %v2549 = vmul.f32 %v2547, %v2547
    %v2550 = vsel %vm157, %v2548, 0.0
    %2551 = vadd.xlane.f32.xlu0 %v2550
    %v2552 = vpop.xlane.xlu0 %2551
    %v2553 = vsel %vm157, %v2549, 0.0
    %2554 = vadd.xlane.f32.xlu0 %v2553
    %v2555 = vpop.xlane.xlu0 %2554
    %v2556 = vmul.f32 %v2552, %v164
    %v2557 = vmul.f32 %v2555, %v164
    %v2558 = vadd.f32 %v2556, 1e-05
    %v2559 = vadd.f32 %v2557, 1e-05
    %v2560 = vrsqrt.pop %v2558
    %v2561 = vrsqrt.pop %v2559
    %v2562 = vmul.f32 %v2546, %v2560
    %v2563 = vmul.f32 %v2547, %v2561
    %v2564 = vlaneseq
    %v2565 = vshrl.u32 %v2564, 7
    %v2566 = vsub.s32 5, %v2565
    %v2567 = vrot.slane %v1459, %v2566
    %v2568 = vmul.f32 %v2562, %v2567
    %v2569 = vmul.f32 %v2563, %v2567
    %v2570 = vlaneseq
    %v2571 = vshrl.u32 %v2570, 7
    %v2572 = vsub.s32 6, %v2571
    %v2573 = vrot.slane %v1459, %v2572
    %v2574 = vadd.f32 %v2568, %v2573
    %v2575 = vadd.f32 %v2569, %v2573
    %v2576 = vpack.c.bf16 %v2575, %v2574
    %v2577 = vlaneseq
    %v2578 = vshrl.u32 %v2577, 7
    %v2579 = vsub.s32 3, %v2578
    %v2580 = vrot.slane %v1459, %v2579
    %v2581 = vunpack.c.h.b16 %v1437
    %v2582 = vunpack.c.h.b16 %v1438
    %v2583 = vunpack.c.h.b16 %v1439
    %v2584 = vunpack.c.h.b16 %v1440
    %v2585 = vpack.c.b16 %v2582, %v2581
    %v2586 = vpack.c.b16 %v2584, %v2583
    %v2590 = vsel %vm157, %v2576, 0
    %2592 = vmatprep.subr.bf16.mxu0 0
    %2593 = vmatpush1.bf16.msra.mxu0 %v2585
    %2594 = vmatprep.subr.bf16.mxu0 0
    %2595 = vmatpush1.bf16.msra.mxu0 %v2586
    %2596 = vmatprep.subr.bf16.mxu0 0
    %2597 = vmatpush1.bf16.msra.mxu0 0
    %2598 = vmatprep.subr.bf16.mxu0 0
    %2599 = vmatpush1.bf16.msra.mxu0 0
    %2600 = vmatprep.subr.bf16.mxu0 0
    %2601 = vmatpush1.bf16.msra.mxu0 0
    %2602 = vmatprep.subr.bf16.mxu0 0
    %2603 = vmatpush1.bf16.msra.mxu0 0
    %2604 = vmatprep.subr.bf16.mxu0 0
    %2605 = vmatpush1.bf16.msra.mxu0 0
    %2606 = vmatprep.subr.bf16.mxu0 0
    %2607 = vmatpush1.bf16.msra.mxu0 0
    %2608 = vmatprep.subr.bf16.mxu0 0
    %2609 = vmatpush1.bf16.msra.mxu0 0
    %2610 = vmatprep.subr.bf16.mxu0 0
    %2611 = vmatpush1.bf16.msra.mxu0 0
    %2612 = vmatprep.subr.bf16.mxu0 0
    %2613 = vmatpush1.bf16.msra.mxu0 0
    %2614 = vmatprep.subr.bf16.mxu0 0
    %2615 = vmatpush1.bf16.msra.mxu0 0
    %2616 = vmatprep.subr.bf16.mxu0 0
    %2617 = vmatpush1.bf16.msra.mxu0 0
    %2618 = vmatprep.subr.bf16.mxu0 0
    %2619 = vmatpush1.bf16.msra.mxu0 0
    %2620 = vmatprep.subr.bf16.mxu0 0
    %2621 = vmatpush1.bf16.msra.mxu0 0
    %2622 = vmatprep.subr.bf16.mxu0 0
    %2623 = vmatpush1.bf16.msra.mxu0 0
    %2624 = vmatprep.mubr.bf16.mxu0 0
    %2625 = vmatmul.mubr.bf16.gmra.mrb[0].mxu0 %v2590
    %v2626 = vpop.f32.mrb[0].mxu0
    %v2627 = vadd.f32 %v2580, %v2626
    %v2628 = vpop.f32.mrb[0].mxu0
    %v2629 = vpop.f32.mrb[0].mxu0
    %v2630 = vadd.f32 %v2580, %v2629
    %v2631 = vpop.f32.mrb[0].mxu0
    %2632 = vdwg.mxu0
    %v2633 = vmax.f32 %v2627, 0.0
    %v2634 = vmax.f32 %v2630, 0.0
    %v2635 = vpack.c.bf16 %v2634, %v2633
    %v2636 = vlaneseq
    %v2637 = vshrl.u32 %v2636, 7
    %v2638 = vsub.s32 4, %v2637
    %v2639 = vrot.slane %v1459, %v2638
    %v2656 = vunpack.c.l.b16 %v1442
    %v2657 = vunpack.c.l.b16 %v1443
    %v2658 = vunpack.c.l.b16 %v1444
    %v2659 = vunpack.c.l.b16 %v1445
    %v2660 = vunpack.c.l.b16 %v1446
    %v2661 = vunpack.c.l.b16 %v1447
    %v2662 = vunpack.c.l.b16 %v1448
    %v2663 = vunpack.c.l.b16 %v1449
    %v2664 = vunpack.c.l.b16 %v1450
    %v2665 = vunpack.c.l.b16 %v1451
    %v2666 = vunpack.c.l.b16 %v1452
    %v2667 = vunpack.c.l.b16 %v1453
    %v2668 = vunpack.c.l.b16 %v1454
    %v2669 = vunpack.c.l.b16 %v1455
    %v2670 = vunpack.c.l.b16 %v1456
    %v2671 = vunpack.c.l.b16 %v1457
    %v2672 = vpack.c.b16 %v2657, %v2656
    %v2673 = vpack.c.b16 %v2659, %v2658
    %v2674 = vpack.c.b16 %v2661, %v2660
    %v2675 = vpack.c.b16 %v2663, %v2662
    %v2676 = vpack.c.b16 %v2665, %v2664
    %v2677 = vpack.c.b16 %v2667, %v2666
    %v2678 = vpack.c.b16 %v2669, %v2668
    %v2679 = vpack.c.b16 %v2671, %v2670
    %2688 = vmatprep.subr.bf16.mxu0 0
    %2689 = vmatpush1.bf16.msra.mxu0 %v2672
    %2690 = vmatprep.subr.bf16.mxu0 0
    %2691 = vmatpush1.bf16.msra.mxu0 %v2673
    %2692 = vmatprep.subr.bf16.mxu0 0
    %2693 = vmatpush1.bf16.msra.mxu0 %v2674
    %2694 = vmatprep.subr.bf16.mxu0 0
    %2695 = vmatpush1.bf16.msra.mxu0 %v2675
    %2696 = vmatprep.subr.bf16.mxu0 0
    %2697 = vmatpush1.bf16.msra.mxu0 %v2676
    %2698 = vmatprep.subr.bf16.mxu0 0
    %2699 = vmatpush1.bf16.msra.mxu0 %v2677
    %2700 = vmatprep.subr.bf16.mxu0 0
    %2701 = vmatpush1.bf16.msra.mxu0 %v2678
    %2702 = vmatprep.subr.bf16.mxu0 0
    %2703 = vmatpush1.bf16.msra.mxu0 %v2679
    %2704 = vmatprep.subr.bf16.mxu0 0
    %2705 = vmatpush1.bf16.msra.mxu0 0
    %2706 = vmatprep.subr.bf16.mxu0 0
    %2707 = vmatpush1.bf16.msra.mxu0 0
    %2708 = vmatprep.subr.bf16.mxu0 0
    %2709 = vmatpush1.bf16.msra.mxu0 0
    %2710 = vmatprep.subr.bf16.mxu0 0
    %2711 = vmatpush1.bf16.msra.mxu0 0
    %2712 = vmatprep.subr.bf16.mxu0 0
    %2713 = vmatpush1.bf16.msra.mxu0 0
    %2714 = vmatprep.subr.bf16.mxu0 0
    %2715 = vmatpush1.bf16.msra.mxu0 0
    %2716 = vmatprep.subr.bf16.mxu0 0
    %2717 = vmatpush1.bf16.msra.mxu0 0
    %2718 = vmatprep.subr.bf16.mxu0 0
    %2719 = vmatpush1.bf16.msra.mxu0 0
    %2720 = vmatprep.mubr.bf16.mxu0 0
    %2721 = vmatmul.mubr.bf16.gmra.mrb[0].mxu0 %v2635
    %v2722 = vpop.f32.mrb[0].mxu0
    %v2723 = vadd.f32 %v2639, %v2722
    %v2724 = vpop.f32.mrb[0].mxu0
    %v2725 = vpop.f32.mrb[0].mxu0
    %v2726 = vadd.f32 %v2639, %v2725
    %v2727 = vpop.f32.mrb[0].mxu0
    %2728 = vdwg.mxu0
    %v2729 = vadd.f32 %v2536, %v2723
    %v2730 = vadd.f32 %v2537, %v2726
    %s2731 = scalar_lea.vmem %s3, 64
    %v2732 = vld [vmem:[%s2731] sm:$0xff]
    %v2733 = vld [vmem:[%s2731 + $0x8] sm:$0xff]
    %v2734 = vld [vmem:[%s2731 + $0x10] sm:$0xff]
    %v2735 = vld [vmem:[%s2731 + $0x18] sm:$0xff]
    %s2736 = scalar_lea.vmem %s4, 128
    %v2737 = vld [vmem:[%s2736] sm:$0xf]
    %v2738 = vld [vmem:[%s2736 + $0x4] sm:$0xf]
    %v2739 = vld [vmem:[%s2736 + $0x8] sm:$0xf]
    %v2740 = vld [vmem:[%s2736 + $0xc] sm:$0xf]
    %v2741 = vld [vmem:[%s2736 + $0x10] sm:$0xf]
    %v2742 = vld [vmem:[%s2736 + $0x14] sm:$0xf]
    %v2743 = vld [vmem:[%s2736 + $0x18] sm:$0xf]
    %v2744 = vld [vmem:[%s2736 + $0x1c] sm:$0xf]
    %v2745 = vld [vmem:[%s2736 + $0x20] sm:$0xf]
    %v2746 = vld [vmem:[%s2736 + $0x24] sm:$0xf]
    %v2747 = vld [vmem:[%s2736 + $0x28] sm:$0xf]
    %v2748 = vld [vmem:[%s2736 + $0x2c] sm:$0xf]
    %v2749 = vld [vmem:[%s2736 + $0x30] sm:$0xf]
    %v2750 = vld [vmem:[%s2736 + $0x34] sm:$0xf]
    %v2751 = vld [vmem:[%s2736 + $0x38] sm:$0xf]
    %v2752 = vld [vmem:[%s2736 + $0x3c] sm:$0xf]
    %s2753 = scalar_lea.vmem %s5, 16
    %v2754 = vld [vmem:[%s2753] sm:$0xff]
    %v2755 = vsel %vm157, %v2729, 0.0
    %2756 = vadd.xlane.f32.xlu0 %v2755
    %v2757 = vpop.xlane.xlu0 %2756
    %v2758 = vsel %vm157, %v2730, 0.0
    %2759 = vadd.xlane.f32.xlu0 %v2758
    %v2760 = vpop.xlane.xlu0 %2759
    %v2761 = vmul.f32 %v2757, %v164
    %v2762 = vmul.f32 %v2760, %v164
    %v2763 = vsub.f32 %v2729, %v2761
    %v2764 = vsub.f32 %v2730, %v2762
    %v2765 = vmul.f32 %v2763, %v2763
    %v2766 = vmul.f32 %v2764, %v2764
    %v2767 = vsel %vm157, %v2765, 0.0
    %2768 = vadd.xlane.f32.xlu0 %v2767
    %v2769 = vpop.xlane.xlu0 %2768
    %v2770 = vsel %vm157, %v2766, 0.0
    %2771 = vadd.xlane.f32.xlu0 %v2770
    %v2772 = vpop.xlane.xlu0 %2771
    %v2773 = vmul.f32 %v2769, %v164
    %v2774 = vmul.f32 %v2772, %v164
    %v2775 = vadd.f32 %v2773, 1e-05
    %v2776 = vadd.f32 %v2774, 1e-05
    %v2777 = vrsqrt.pop %v2775
    %v2778 = vrsqrt.pop %v2776
    %v2779 = vmul.f32 %v2763, %v2777
    %v2780 = vmul.f32 %v2764, %v2778
    %v2781 = vlaneseq
    %v2782 = vshrl.u32 %v2781, 7
    %v2783 = vsub.s32 0, %v2782
    %v2784 = vrot.slane %v2754, %v2783
    %v2785 = vmul.f32 %v2779, %v2784
    %v2786 = vmul.f32 %v2780, %v2784
    %v2787 = vlaneseq
    %v2788 = vshrl.u32 %v2787, 7
    %v2789 = vsub.s32 1, %v2788
    %v2790 = vrot.slane %v2754, %v2789
    %v2791 = vadd.f32 %v2785, %v2790
    %v2792 = vadd.f32 %v2786, %v2790
    %v2793 = vpack.c.bf16 %v2792, %v2791
    %v2794 = vlaneseq
    %v2795 = vshrl.u32 %v2794, 7
    %v2796 = vsub.s32 3, %v2795
    %v2797 = vrot.slane %v2754, %v2796
    %v2802 = vunpack.c.l.b16 %v2732
    %v2803 = vunpack.c.l.b16 %v2733
    %v2804 = vunpack.c.l.b16 %v2734
    %v2805 = vunpack.c.l.b16 %v2735
    %v2806 = vpack.c.b16 %v2803, %v2802
    %v2807 = vpack.c.b16 %v2805, %v2804
    %v2811 = vsel %vm157, %v2793, 0
    %2813 = vmatprep.subr.bf16.mxu0 0
    %2814 = vmatpush1.bf16.msra.mxu0 %v2806
    %2815 = vmatprep.subr.bf16.mxu0 0
    %2816 = vmatpush1.bf16.msra.mxu0 %v2807
    %2817 = vmatprep.subr.bf16.mxu0 0
    %2818 = vmatpush1.bf16.msra.mxu0 0
    %2819 = vmatprep.subr.bf16.mxu0 0
    %2820 = vmatpush1.bf16.msra.mxu0 0
    %2821 = vmatprep.subr.bf16.mxu0 0
    %2822 = vmatpush1.bf16.msra.mxu0 0
    %2823 = vmatprep.subr.bf16.mxu0 0
    %2824 = vmatpush1.bf16.msra.mxu0 0
    %2825 = vmatprep.subr.bf16.mxu0 0
    %2826 = vmatpush1.bf16.msra.mxu0 0
    %2827 = vmatprep.subr.bf16.mxu0 0
    %2828 = vmatpush1.bf16.msra.mxu0 0
    %2829 = vmatprep.subr.bf16.mxu0 0
    %2830 = vmatpush1.bf16.msra.mxu0 0
    %2831 = vmatprep.subr.bf16.mxu0 0
    %2832 = vmatpush1.bf16.msra.mxu0 0
    %2833 = vmatprep.subr.bf16.mxu0 0
    %2834 = vmatpush1.bf16.msra.mxu0 0
    %2835 = vmatprep.subr.bf16.mxu0 0
    %2836 = vmatpush1.bf16.msra.mxu0 0
    %2837 = vmatprep.subr.bf16.mxu0 0
    %2838 = vmatpush1.bf16.msra.mxu0 0
    %2839 = vmatprep.subr.bf16.mxu0 0
    %2840 = vmatpush1.bf16.msra.mxu0 0
    %2841 = vmatprep.subr.bf16.mxu0 0
    %2842 = vmatpush1.bf16.msra.mxu0 0
    %2843 = vmatprep.subr.bf16.mxu0 0
    %2844 = vmatpush1.bf16.msra.mxu0 0
    %2845 = vmatprep.mubr.bf16.mxu0 0
    %2846 = vmatmul.mubr.bf16.gmra.mrb[0].mxu0 %v2811
    %v2847 = vpop.f32.mrb[0].mxu0
    %v2848 = vadd.f32 %v2797, %v2847
    %v2849 = vpop.f32.mrb[0].mxu0
    %v2850 = vpop.f32.mrb[0].mxu0
    %v2851 = vadd.f32 %v2797, %v2850
    %v2852 = vpop.f32.mrb[0].mxu0
    %2853 = vdwg.mxu0
    %v2854 = vmax.f32 %v2848, 0.0
    %v2855 = vmax.f32 %v2851, 0.0
    %v2856 = vpack.c.bf16 %v2855, %v2854
    %v2857 = vlaneseq
    %v2858 = vshrl.u32 %v2857, 7
    %v2859 = vsub.s32 2, %v2858
    %v2860 = vrot.slane %v2754, %v2859
    %v2877 = vunpack.c.l.b16 %v2737
    %v2878 = vunpack.c.l.b16 %v2738
    %v2879 = vunpack.c.l.b16 %v2739
    %v2880 = vunpack.c.l.b16 %v2740
    %v2881 = vunpack.c.l.b16 %v2741
    %v2882 = vunpack.c.l.b16 %v2742
    %v2883 = vunpack.c.l.b16 %v2743
    %v2884 = vunpack.c.l.b16 %v2744
    %v2885 = vunpack.c.l.b16 %v2745
    %v2886 = vunpack.c.l.b16 %v2746
    %v2887 = vunpack.c.l.b16 %v2747
    %v2888 = vunpack.c.l.b16 %v2748
    %v2889 = vunpack.c.l.b16 %v2749
    %v2890 = vunpack.c.l.b16 %v2750
    %v2891 = vunpack.c.l.b16 %v2751
    %v2892 = vunpack.c.l.b16 %v2752
    %v2893 = vpack.c.b16 %v2878, %v2877
    %v2894 = vpack.c.b16 %v2880, %v2879
    %v2895 = vpack.c.b16 %v2882, %v2881
    %v2896 = vpack.c.b16 %v2884, %v2883
    %v2897 = vpack.c.b16 %v2886, %v2885
    %v2898 = vpack.c.b16 %v2888, %v2887
    %v2899 = vpack.c.b16 %v2890, %v2889
    %v2900 = vpack.c.b16 %v2892, %v2891
    %2909 = vmatprep.subr.bf16.mxu0 0
    %2910 = vmatpush1.bf16.msra.mxu0 %v2893
    %2911 = vmatprep.subr.bf16.mxu0 0
    %2912 = vmatpush1.bf16.msra.mxu0 %v2894
    %2913 = vmatprep.subr.bf16.mxu0 0
    %2914 = vmatpush1.bf16.msra.mxu0 %v2895
    %2915 = vmatprep.subr.bf16.mxu0 0
    %2916 = vmatpush1.bf16.msra.mxu0 %v2896
    %2917 = vmatprep.subr.bf16.mxu0 0
    %2918 = vmatpush1.bf16.msra.mxu0 %v2897
    %2919 = vmatprep.subr.bf16.mxu0 0
    %2920 = vmatpush1.bf16.msra.mxu0 %v2898
    %2921 = vmatprep.subr.bf16.mxu0 0
    %2922 = vmatpush1.bf16.msra.mxu0 %v2899
    %2923 = vmatprep.subr.bf16.mxu0 0
    %2924 = vmatpush1.bf16.msra.mxu0 %v2900
    %2925 = vmatprep.subr.bf16.mxu0 0
    %2926 = vmatpush1.bf16.msra.mxu0 0
    %2927 = vmatprep.subr.bf16.mxu0 0
    %2928 = vmatpush1.bf16.msra.mxu0 0
    %2929 = vmatprep.subr.bf16.mxu0 0
    %2930 = vmatpush1.bf16.msra.mxu0 0
    %2931 = vmatprep.subr.bf16.mxu0 0
    %2932 = vmatpush1.bf16.msra.mxu0 0
    %2933 = vmatprep.subr.bf16.mxu0 0
    %2934 = vmatpush1.bf16.msra.mxu0 0
    %2935 = vmatprep.subr.bf16.mxu0 0
    %2936 = vmatpush1.bf16.msra.mxu0 0
    %2937 = vmatprep.subr.bf16.mxu0 0
    %2938 = vmatpush1.bf16.msra.mxu0 0
    %2939 = vmatprep.subr.bf16.mxu0 0
    %2940 = vmatpush1.bf16.msra.mxu0 0
    %2941 = vmatprep.mubr.bf16.mxu0 0
    %2942 = vmatmul.mubr.bf16.gmra.mrb[0].mxu0 %v2856
    %v2943 = vpop.f32.mrb[0].mxu0
    %v2944 = vadd.f32 %v2860, %v2943
    %v2945 = vpop.f32.mrb[0].mxu0
    %v2946 = vpop.f32.mrb[0].mxu0
    %v2947 = vadd.f32 %v2860, %v2946
    %v2948 = vpop.f32.mrb[0].mxu0
    %2949 = vdwg.mxu0
    %v2950 = vpack.c.bf16 %v2947, %v2944
    %v2951 = vlaneseq
    %v2952 = vshrl.u32 %v2951, 7
    %v2953 = vsub.s32 4, %v2952
    %v2954 = vrot.slane %v2754, %v2953
    %v2955 = vunpack.c.h.b16 %v2732
    %v2956 = vunpack.c.h.b16 %v2733
    %v2957 = vunpack.c.h.b16 %v2734
    %v2958 = vunpack.c.h.b16 %v2735
    %v2959 = vpack.c.b16 %v2956, %v2955
    %v2960 = vpack.c.b16 %v2958, %v2957
    %v2964 = vsel %vm157, %v2950, 0
    %2966 = vmatprep.subr.bf16.mxu0 0
    %2967 = vmatpush1.bf16.msra.mxu0 %v2959
    %2968 = vmatprep.subr.bf16.mxu0 0
    %2969 = vmatpush1.bf16.msra.mxu0 %v2960
    %2970 = vmatprep.subr.bf16.mxu0 0
    %2971 = vmatpush1.bf16.msra.mxu0 0
    %2972 = vmatprep.subr.bf16.mxu0 0
    %2973 = vmatpush1.bf16.msra.mxu0 0
    %2974 = vmatprep.subr.bf16.mxu0 0
    %2975 = vmatpush1.bf16.msra.mxu0 0
    %2976 = vmatprep.subr.bf16.mxu0 0
    %2977 = vmatpush1.bf16.msra.mxu0 0
    %2978 = vmatprep.subr.bf16.mxu0 0
    %2979 = vmatpush1.bf16.msra.mxu0 0
    %2980 = vmatprep.subr.bf16.mxu0 0
    %2981 = vmatpush1.bf16.msra.mxu0 0
    %2982 = vmatprep.subr.bf16.mxu0 0
    %2983 = vmatpush1.bf16.msra.mxu0 0
    %2984 = vmatprep.subr.bf16.mxu0 0
    %2985 = vmatpush1.bf16.msra.mxu0 0
    %2986 = vmatprep.subr.bf16.mxu0 0
    %2987 = vmatpush1.bf16.msra.mxu0 0
    %2988 = vmatprep.subr.bf16.mxu0 0
    %2989 = vmatpush1.bf16.msra.mxu0 0
    %2990 = vmatprep.subr.bf16.mxu0 0
    %2991 = vmatpush1.bf16.msra.mxu0 0
    %2992 = vmatprep.subr.bf16.mxu0 0
    %2993 = vmatpush1.bf16.msra.mxu0 0
    %2994 = vmatprep.subr.bf16.mxu0 0
    %2995 = vmatpush1.bf16.msra.mxu0 0
    %2996 = vmatprep.subr.bf16.mxu0 0
    %2997 = vmatpush1.bf16.msra.mxu0 0
    %2998 = vmatprep.mubr.bf16.mxu0 0
    %2999 = vmatmul.mubr.bf16.gmra.mrb[0].mxu0 %v2964
    %v3000 = vpop.f32.mrb[0].mxu0
    %v3001 = vadd.f32 %v2954, %v3000
    %v3002 = vpop.f32.mrb[0].mxu0
    %v3003 = vpop.f32.mrb[0].mxu0
    %v3004 = vadd.f32 %v2954, %v3003
    %v3005 = vpop.f32.mrb[0].mxu0
    %3006 = vdwg.mxu0
    %3007 = vst [vmem:[#allocation2] sm:$0xff] %v3001
    %3008 = vst [vmem:[#allocation2 + $0x8] sm:$0xff] %v3004
    // Predicated region
    $region26: #{language_model_forward.1} parent=1 // pred_check
      _
    $region27: #{language_model_forward.1} parent=1 // pred_check_branch
      %3010 = sbr.rel (0) target = $region29
    $region28: #{language_model_forward.1} parent=1 // pred_region
      %s3012 = ssub.s32 256, 256
      %3013 = vsyncadd [#allocation3], %s3012
      %s3014 = sshll.u32 [#allocation2], 4
      %s3015 = int_to_ptr.vmem [resolvable:$true] %s3014
      %3020 = dma.vmem_to_hbm [thread:$0]  %s3015, 256, %s6, [#allocation3], 128, 128, 8
    $region29: #{language_model_forward.1} parent=1 // pred_fallthru
      _
    // Predicated region
    $region30: #{language_model_forward.1} parent=1 // pred_check
      _
    $region31: #{language_model_forward.1} parent=1 // pred_check_branch
      %3022 = sbr.rel (0) target = $region33
    $region32: #{language_model_forward.1} parent=1 // pred_region
      %3023 = dma.done [#allocation3], 256
    $region33: #{language_model_forward.1} parent=1 // pred_fallthru
      _
    %3024 = vsyncpa [#allocation3], 1

</llo_original>
